<compile_context>
chip_gen: v7x
topology: tpu7x:2x2x1
jax: 0.10.0
libtpu: 0.0.40
codegen_flags: <defaults>
</compile_context>

<pallas_src>
import functools

import jax
import jax.numpy as jnp
from jax.experimental import pallas as pl
from jax.experimental.pallas import tpu as pltpu

_LANE = 128
_SUB = 8

# TODO(synk): GANs.Discriminator architecture is not given; a deterministic
# 2-layer MLP (Linear -> ReLU -> Linear -> sigmoid) is used as a stand-in.


def _round_up(v, m):
    return (v + m - 1) // m * m


def _log_sigmoid(z):
    # Stable log(sigmoid(z)) = min(z, 0) - log(1 + exp(-|z|)); no -inf underflow.
    return jnp.minimum(z, 0.0) - jnp.log(1.0 + jnp.exp(-jnp.abs(z)))


def _noiaware_kernel(x_ref, neg_ref, w1_ref, b1_ref, w2_ref, b2_ref, out_ref,
                     *, margin, inv_num_blocks):
    x = x_ref[...]                                                  # (TB, D) f32

    # ---- positive L1 distance & score ----
    pos_dist = jnp.sum(jnp.abs(x), axis=-1, keepdims=True)          # (TB, 1)
    pos_scores = -_log_sigmoid(margin - pos_dist)

    # ---- discriminator MLP on input_disc = h + r - t ----
    h1 = jnp.dot(x, w1_ref[...], preferred_element_type=jnp.float32,
                 precision=jax.lax.Precision.HIGHEST)               # (TB, H)
    h1 = jnp.maximum(h1 + b1_ref[...], 0.0)
    # layer 2: (H, 1) matmul done as a VPU lane reduction (exact f32).
    logit = jnp.sum(h1 * w2_ref[...], axis=-1, keepdims=True) + b2_ref[0]
    conf = jax.nn.sigmoid(logit)                                    # (TB, 1)

    # ---- negatives: one grouped reduction over the embedding axis ----
    # (TB, N, D) -> abs -> reduce lanes -> (TB, N); single log-sigmoid; one
    # more lane reduce over N.  No per-negative unaligned slices / loop.
    neg_dist = jnp.sum(jnp.abs(neg_ref[...]), axis=-1)              # (TB, N)
    neg_scores = jnp.sum(_log_sigmoid(margin - neg_dist),
                         axis=-1, keepdims=True) * inv_num_blocks   # (TB, 1)

    # Packed (TB, 1) store: HBM writeback is 4 B/row instead of 512 B/row.
    out_ref[...] = conf * (pos_scores + neg_scores)                 # (TB, 1)


def _choose_tile(B, N, D, H, block_b):
    """Pick the batch tile from the chip's VMEM; keep >= 2 grid steps."""
    x_row = _round_up(D, _LANE) * 4                                  # per-row bytes
    neg_row = _round_up(N, _SUB) * _round_up(D, _LANE) * 4
    out_row = _LANE * 4
    per_row = x_row + neg_row + out_row
    resident = (_round_up(D, _SUB) * _round_up(H, _LANE)             # w1
                + 2 * _SUB * _round_up(H, _LANE)) * 4                # b1, w2
    try:
        vmem_cap = int(pltpu.get_tpu_info().vmem_capacity_bytes)
    except Exception:  # be conservative if the query is unavailable
        vmem_cap = 64 << 20                                          # v7x VMEM
    budget = vmem_cap // 3                       # headroom for compiler temps
    tb_vmem = max(_SUB, (budget - 2 * resident) // (2 * per_row))

    tb = min(block_b, tb_vmem)
    b8 = _round_up(B, _SUB)
    if b8 >= 2 * _SUB:                           # keep grid >= 2 (v7x megacore)
        tb = min(tb, _round_up(b8, 2 * _SUB) // 2)
    tb = max(_SUB, min(tb, b8))
    tb = (tb // _SUB) * _SUB
    bp = _round_up(B, tb)

    vmem_limit = 2 * (per_row * tb + resident) + (8 << 20)
    vmem_limit = min(max(vmem_limit, 32 << 20), vmem_cap)
    return tb, bp, vmem_limit


def noiaware_forward(pos_triples, neg_triples, ent_emb, rel_emb,
                     w1, b1, w2, b2, margin, *, block_b=512):
    """pos_triples: (B, 3) int32; neg_triples: (B, N, 3) int32."""
    B = pos_triples.shape[0]
    N = neg_triples.shape[1]
    D = ent_emb.shape[1]
    H = w1.shape[1]

    # --- XLA glue: embedding gathers + fused h + r - t ---
    # TODO(synk): for very large batches, scalar-prefetched indices + in-kernel
    # gather would remove this HBM round trip of the fused negative tensor.
    x = (jnp.take(ent_emb, pos_triples[:, 0], axis=0)
         + jnp.take(rel_emb, pos_triples[:, 1], axis=0)
         - jnp.take(ent_emb, pos_triples[:, 2], axis=0)).astype(jnp.float32)
    neg = (jnp.take(ent_emb, neg_triples[:, :, 0], axis=0)
           + jnp.take(rel_emb, neg_triples[:, :, 1], axis=0)
           - jnp.take(ent_emb, neg_triples[:, :, 2], axis=0)).astype(jnp.float32)

    TB, Bp, vmem_limit = _choose_tile(B, N, D, H, block_b)
    if Bp != B:
        x = jnp.pad(x, ((0, Bp - B), (0, 0)))
        neg = jnp.pad(neg, ((0, Bp - B), (0, 0), (0, 0)))

    w1_f = w1.astype(jnp.float32)
    b1_row = b1.reshape(1, H).astype(jnp.float32)
    w2_row = w2.reshape(1, H).astype(jnp.float32)
    b2_vec = b2.reshape(-1).astype(jnp.float32)          # (1,) scalar -> SMEM

    kernel = functools.partial(
        _noiaware_kernel, margin=float(margin),
        inv_num_blocks=1.0 / float(B))   # len(block_of_negative_triples) == B

    out = pl.pallas_call(
        kernel,
        out_shape=jax.ShapeDtypeStruct((Bp, 1), jnp.float32),
        grid_spec=pltpu.PrefetchScalarGridSpec(
            num_scalar_prefetch=0,
            grid=(Bp // TB,),
            in_specs=[
                pl.BlockSpec((TB, D), lambda i: (i, 0)),             # x
                pl.BlockSpec((TB, N, D), lambda i: (i, 0, 0)),       # negatives
                pl.BlockSpec((D, H), lambda i: (0, 0)),              # w1 (resident)
                pl.BlockSpec((1, H), lambda i: (0, 0)),              # b1 (resident)
                pl.BlockSpec((1, H), lambda i: (0, 0)),              # w2 (resident)
                pl.BlockSpec(memory_space=pltpu.MemorySpace.SMEM),   # b2 scalar
            ],
            out_specs=pl.BlockSpec((TB, 1), lambda i: (i, 0)),       # packed out
        ),
        compiler_params=pltpu.CompilerParams(
            dimension_semantics=("parallel",),
            vmem_limit_bytes=int(vmem_limit),
        ),
    )(x, neg, w1_f, b1_row, w2_row, b2_vec)

    return out[:B, 0]       # sum_scores, shape (B,)


def _reference(pos_triples, neg_triples, ent_emb, rel_emb, w1, b1, w2, b2, margin):
    B = pos_triples.shape[0]
    x = (ent_emb[pos_triples[:, 0]] + rel_emb[pos_triples[:, 1]]
         - ent_emb[pos_triples[:, 2]])
    pos_dist = jnp.sum(jnp.abs(x), axis=-1)
    pos_scores = -jax.nn.log_sigmoid(margin - pos_dist)
    h1 = jnp.maximum(
        jnp.dot(x, w1, precision=jax.lax.Precision.HIGHEST) + b1[0], 0.0)
    conf = jax.nn.sigmoid(jnp.sum(h1 * w2[:, 0], axis=-1) + b2[0, 0])
    neg_x = (ent_emb[neg_triples[:, :, 0]] + rel_emb[neg_triples[:, :, 1]]
             - ent_emb[neg_triples[:, :, 2]])
    neg_dist = jnp.sum(jnp.abs(neg_x), axis=-1)
    neg_scores = jnp.sum(jax.nn.log_sigmoid(margin - neg_dist), axis=-1) / B
    return conf * (pos_scores + neg_scores)


if __name__ == "__main__":
    key = jax.random.PRNGKey(0)
    k_ent, k_rel, k_w1, k_b1, k_w2, k_b2, k_pos, k_neg = jax.random.split(key, 8)

    ENTITY_COUNT = 64
    RELATION_COUNT = 16
    EMB_DIM = 32
    HIDDEN = 16
    B = 200        # exercises a 2-step grid plus batch padding
    N_NEG = 4      # negatives per block
    MARGIN = 24.0

    # deterministic "pretrained" embedding tables + discriminator params
    ent_emb = jax.random.normal(k_ent, (ENTITY_COUNT, EMB_DIM), jnp.float32) * 0.5
    rel_emb = jax.random.normal(k_rel, (RELATION_COUNT, EMB_DIM), jnp.float32) * 0.5
    w1 = jax.random.normal(k_w1, (EMB_DIM, HIDDEN), jnp.float32) * 0.1
    b1 = jax.random.normal(k_b1, (1, HIDDEN), jnp.float32) * 0.1
    w2 = jax.random.normal(k_w2, (HIDDEN, 1), jnp.float32) * 0.1
    b2 = jax.random.normal(k_b2, (1, 1), jnp.float32) * 0.1

    pos_triples = jnp.stack([
        jax.random.randint(jax.random.fold_in(k_pos, 0), (B,), 0, ENTITY_COUNT),
        jax.random.randint(jax.random.fold_in(k_pos, 1), (B,), 0, RELATION_COUNT),
        jax.random.randint(jax.random.fold_in(k_pos, 2), (B,), 0, ENTITY_COUNT),
    ], axis=1).astype(jnp.int32)                                    # (B, 3)

    neg_triples = jnp.stack([
        jax.random.randint(jax.random.fold_in(k_neg, 0), (B, N_NEG), 0, ENTITY_COUNT),
        jax.random.randint(jax.random.fold_in(k_neg, 1), (B, N_NEG), 0, RELATION_COUNT),
        jax.random.randint(jax.random.fold_in(k_neg, 2), (B, N_NEG), 0, ENTITY_COUNT),
    ], axis=2).astype(jnp.int32)                                    # (B, N, 3)

    out = noiaware_forward(pos_triples, neg_triples, ent_emb, rel_emb,
                           w1, b1, w2, b2, MARGIN)
    out = jax.block_until_ready(out)

    ref = _reference(pos_triples, neg_triples, ent_emb, rel_emb,
                     w1, b1, w2, b2, MARGIN)
    assert out.shape == (B,)
    assert jnp.allclose(out, ref, rtol=1e-5, atol=1e-5), (out, ref)

    print("KERNEL_OK")
</pallas_src>

<mosaic_0001>
module attributes {stable_mosaic.version = 11 : i64} {
  func.func @_noiaware_kernel(%arg0: i32, %arg1: memref<104x32xf32, #tpu.memory_space<vmem>>, %arg2: memref<104x4x32xf32, #tpu.memory_space<vmem>>, %arg3: memref<32x16xf32, #tpu.memory_space<vmem>>, %arg4: memref<1x16xf32, #tpu.memory_space<vmem>>, %arg5: memref<1x16xf32, #tpu.memory_space<vmem>>, %arg6: memref<1xf32, #tpu.memory_space<smem>>, %arg7: memref<104x1xf32, #tpu.memory_space<vmem>>) attributes {dimension_semantics = [#tpu.dimension_semantics<parallel>], iteration_bounds = array<i64: 2>, scalar_prefetch = 0 : i64, scratch_operands = 0 : i64, tpu.core_type = #tpu.core_type<tc>, window_params = [{transform_indices = @transform_0, window_bounds = array<i64: 104, 32>}, {transform_indices = @transform_1, window_bounds = array<i64: 104, 4, 32>}, {pipeline_mode = #tpu.pipeline_mode<synchronous>, transform_indices = @transform_2, window_bounds = array<i64: 32, 16>}, {pipeline_mode = #tpu.pipeline_mode<synchronous>, transform_indices = @transform_3, window_bounds = array<i64: 1, 16>}, {pipeline_mode = #tpu.pipeline_mode<synchronous>, transform_indices = @transform_4, window_bounds = array<i64: 1, 16>}, {transform_indices = @transform_5, window_bounds = array<i64: 1>}, {transform_indices = @transform_6, window_bounds = array<i64: 104, 1>}]} {
    %c0 = arith.constant 0 : index
    %c0_0 = arith.constant 0 : index
    %0 = vector.load %arg1[%c0, %c0_0] : memref<104x32xf32, #tpu.memory_space<vmem>>, vector<104x32xf32>
    %1 = math.absf %0 : vector<104x32xf32>
    %cst = arith.constant dense<0.000000e+00> : vector<104xf32>
    %2 = vector.multi_reduction <add>, %1, %cst [1] : vector<104x32xf32> to vector<104xf32>
    %3 = vector.shape_cast %2 : vector<104xf32> to vector<104x1xf32>
    %cst_1 = arith.constant 2.400000e+01 : f32
    %4 = vector.broadcast %cst_1 : f32 to vector<104x1xf32>
    %5 = arith.subf %4, %3 : vector<104x1xf32>
    %cst_2 = arith.constant 0.000000e+00 : f32
    %6 = vector.broadcast %cst_2 : f32 to vector<104x1xf32>
    %7 = arith.minimumf %5, %6 : vector<104x1xf32>
    %8 = math.absf %5 : vector<104x1xf32>
    %cst_3 = arith.constant 0.000000e+00 : f32
    %9 = vector.broadcast %cst_3 : f32 to vector<104x1xf32>
    %10 = arith.subf %9, %8 : vector<104x1xf32>
    %11 = math.exp %10 : vector<104x1xf32>
    %cst_4 = arith.constant 1.000000e+00 : f32
    %12 = vector.broadcast %cst_4 : f32 to vector<104x1xf32>
    %13 = arith.addf %12, %11 : vector<104x1xf32>
    %14 = math.log %13 : vector<104x1xf32>
    %15 = arith.subf %7, %14 : vector<104x1xf32>
    %cst_5 = arith.constant 0.000000e+00 : f32
    %16 = vector.broadcast %cst_5 : f32 to vector<104x1xf32>
    %17 = arith.subf %16, %15 : vector<104x1xf32>
    %c0_6 = arith.constant 0 : index
    %c0_7 = arith.constant 0 : index
    %18 = vector.load %arg3[%c0_6, %c0_7] : memref<32x16xf32, #tpu.memory_space<vmem>>, vector<32x16xf32>
    %cst_8 = arith.constant dense<0.000000e+00> : vector<104x16xf32>
    %19 = tpu.matmul %0, %18, %cst_8 {dimension_numbers = #tpu.dot_dimension_numbers<[1], [0], [0], [1], [0, 0, 1, 1], [], []>, precision = #tpu.contract_precision<fp32>} : vector<104x32xf32>, vector<32x16xf32>, vector<104x16xf32> -> vector<104x16xf32>
    %c0_9 = arith.constant 0 : index
    %c0_10 = arith.constant 0 : index
    %20 = vector.load %arg4[%c0_9, %c0_10] : memref<1x16xf32, #tpu.memory_space<vmem>>, vector<1x16xf32>
    %21 = vector.broadcast %20 : vector<1x16xf32> to vector<104x16xf32>
    %22 = arith.addf %19, %21 : vector<104x16xf32>
    %cst_11 = arith.constant 0.000000e+00 : f32
    %23 = vector.broadcast %cst_11 : f32 to vector<104x16xf32>
    %24 = arith.maximumf %22, %23 : vector<104x16xf32>
    %c0_12 = arith.constant 0 : index
    %c0_13 = arith.constant 0 : index
    %25 = vector.load %arg5[%c0_12, %c0_13] : memref<1x16xf32, #tpu.memory_space<vmem>>, vector<1x16xf32>
    %26 = vector.broadcast %25 : vector<1x16xf32> to vector<104x16xf32>
    %27 = arith.mulf %24, %26 : vector<104x16xf32>
    %cst_14 = arith.constant dense<0.000000e+00> : vector<104xf32>
    %28 = vector.multi_reduction <add>, %27, %cst_14 [1] : vector<104x16xf32> to vector<104xf32>
    %29 = vector.shape_cast %28 : vector<104xf32> to vector<104x1xf32>
    %c0_15 = arith.constant 0 : index
    %30 = memref.load %arg6[%c0_15] : memref<1xf32, #tpu.memory_space<smem>>
    %31 = vector.broadcast %30 : f32 to vector<104x1xf32>
    %32 = arith.addf %29, %31 : vector<104x1xf32>
    %33 = arith.negf %32 : vector<104x1xf32>
    %34 = math.exp %33 : vector<104x1xf32>
    %cst_16 = arith.constant 1.000000e+00 : f32
    %35 = vector.broadcast %cst_16 : f32 to vector<104x1xf32>
    %36 = arith.addf %35, %34 : vector<104x1xf32>
    %37 = arith.divf %35, %36 : vector<104x1xf32>
    %c0_17 = arith.constant 0 : index
    %c0_18 = arith.constant 0 : index
    %c0_19 = arith.constant 0 : index
    %38 = vector.load %arg2[%c0_17, %c0_18, %c0_19] : memref<104x4x32xf32, #tpu.memory_space<vmem>>, vector<104x4x32xf32>
    %39 = math.absf %38 : vector<104x4x32xf32>
    %cst_20 = arith.constant dense<0.000000e+00> : vector<104x4xf32>
    %40 = vector.multi_reduction <add>, %39, %cst_20 [2] : vector<104x4x32xf32> to vector<104x4xf32>
    %cst_21 = arith.constant 2.400000e+01 : f32
    %41 = vector.broadcast %cst_21 : f32 to vector<104x4xf32>
    %42 = arith.subf %41, %40 : vector<104x4xf32>
    %cst_22 = arith.constant 0.000000e+00 : f32
    %43 = vector.broadcast %cst_22 : f32 to vector<104x4xf32>
    %44 = arith.minimumf %42, %43 : vector<104x4xf32>
    %45 = math.absf %42 : vector<104x4xf32>
    %cst_23 = arith.constant 0.000000e+00 : f32
    %46 = vector.broadcast %cst_23 : f32 to vector<104x4xf32>
    %47 = arith.subf %46, %45 : vector<104x4xf32>
    %48 = math.exp %47 : vector<104x4xf32>
    %cst_24 = arith.constant 1.000000e+00 : f32
    %49 = vector.broadcast %cst_24 : f32 to vector<104x4xf32>
    %50 = arith.addf %49, %48 : vector<104x4xf32>
    %51 = math.log %50 : vector<104x4xf32>
    %52 = arith.subf %44, %51 : vector<104x4xf32>
    %cst_25 = arith.constant dense<0.000000e+00> : vector<104xf32>
    %53 = vector.multi_reduction <add>, %52, %cst_25 [1] : vector<104x4xf32> to vector<104xf32>
    %54 = vector.shape_cast %53 : vector<104xf32> to vector<104x1xf32>
    %cst_26 = arith.constant 5.000000e-03 : f32
    %55 = vector.broadcast %cst_26 : f32 to vector<104x1xf32>
    %56 = arith.mulf %54, %55 : vector<104x1xf32>
    %57 = arith.addf %17, %56 : vector<104x1xf32>
    %58 = arith.mulf %37, %57 : vector<104x1xf32>
    %c0_27 = arith.constant 0 : index
    %c0_28 = arith.constant 0 : index
    %59 = vector.load %arg7[%c0_27, %c0_28] : memref<104x1xf32, #tpu.memory_space<vmem>>, vector<104x1xf32>
    tpu.vector_store %arg7[%c0_27, %c0_28], %58 {strides = array<i32>} : memref<104x1xf32, #tpu.memory_space<vmem>>, vector<104x1xf32>,
    return
  }
  func.func @transform_0(%arg0: i32) -> (i32, i32) {
    %c0_i32 = arith.constant 0 : i32
    %c0_i32_0 = arith.constant 0 : i32
    return %arg0, %c0_i32 : i32, i32
  }
  func.func @transform_1(%arg0: i32) -> (i32, i32, i32) {
    %c0_i32 = arith.constant 0 : i32
    %c0_i32_0 = arith.constant 0 : i32
    %c0_i32_1 = arith.constant 0 : i32
    return %arg0, %c0_i32, %c0_i32_0 : i32, i32, i32
  }
  func.func @transform_2(%arg0: i32) -> (i32, i32) {
    %c0_i32 = arith.constant 0 : i32
    %c0_i32_0 = arith.constant 0 : i32
    %c0_i32_1 = arith.constant 0 : i32
    return %c0_i32, %c0_i32_0 : i32, i32
  }
  func.func @transform_3(%arg0: i32) -> (i32, i32) {
    %c0_i32 = arith.constant 0 : i32
    %c0_i32_0 = arith.constant 0 : i32
    %c0_i32_1 = arith.constant 0 : i32
    return %c0_i32, %c0_i32_0 : i32, i32
  }
  func.func @transform_4(%arg0: i32) -> (i32, i32) {
    %c0_i32 = arith.constant 0 : i32
    %c0_i32_0 = arith.constant 0 : i32
    %c0_i32_1 = arith.constant 0 : i32
    return %c0_i32, %c0_i32_0 : i32, i32
  }
  func.func @transform_5(%arg0: i32) -> i32 {
    %c0_i32 = arith.constant 0 : i32
    %c0_i32_0 = arith.constant 0 : i32
    return %c0_i32 : i32
  }
  func.func @transform_6(%arg0: i32) -> (i32, i32) {
    %c0_i32 = arith.constant 0 : i32
    %c0_i32_0 = arith.constant 0 : i32
    return %arg0, %c0_i32 : i32, i32
  }
}

</mosaic_0001>

<llo_original>
// kernel: tpu_custom_call.1
$region0: #{tpu_custom_call.1}
  #allocation0 [shape = 'u32[]', space=smem, size = 0x4, offset = 0x4, fixed_abs, tag = 'smem constant byte address 0x4 - core index']
  #allocation1 [shape = 'u32[144,128]{1,0:T(1,128)}', space=vmem, size = 0x12000, scoped, tag = 'internal scratch']
  #allocation2 [shape = 'f32[1]{0:T(128)S(6)}', space=smem, size = 0x200, scoped, tag = 'scoped memory for tpu_custom_call.1']
  %s0 = inlined_call_operand.vmem [shape: f32[208,32], index: 0, kind: input, shape index: {}]
  %s1 = inlined_call_operand.vmem [shape: f32[208,4,32], index: 1, kind: input, shape index: {}]
  %s2 = inlined_call_operand.vmem [shape: f32[32,16], index: 2, kind: input, shape index: {}]
  %s3 = inlined_call_operand.vmem [shape: f32[1,16], index: 3, kind: input, shape index: {}]
  %s4 = inlined_call_operand.vmem [shape: f32[1,16], index: 4, kind: input, shape index: {}]
  %s5 = inlined_call_operand.<no memory space> [shape: f32[1], index: 5, kind: input, shape index: {}]
  %s6 = inlined_call_operand.vmem [shape: f32[208,1], index: 6, kind: output, shape index: {}]
  %s7 = sld [smem:[#allocation0]]
  $region57: #{tpu_custom_call.1} parent=0
    _
  %s9 = ssub.s32 1, %s7
  %s10 = scalar_select 0, %s9, %s7
  %11 = sst [smem:[#allocation2]] %s5
  loop: start=0, step=1, limit=4
  $region2: #{tpu_custom_call.1} parent=0 // loop_pre_header
    _
  $region3: #{tpu_custom_call.1} parent=0 // loop_header
    %s13 = sphi 0, %s17
    %p14 = scmp.ge.s32.totalorder %s13, 4
    %s23 = sphi 0, %s25
    %s26 = sphi 0, %s23
    %s27 = sphi 0, %s26
    %s43 = sphi 0, %s27
    %s49 = sphi 0, %s51
    %s52 = sphi 0, %s49
    %s53 = sphi 0, %s52
    %s69 = sphi 0, %s53
    %s73 = sphi 0, %s73
    %s75 = sphi 0, %s73
    %s76 = sphi 0, %s75
    %s90 = sphi 0, %s76
    %s94 = sphi 0, %s94
    %s96 = sphi 0, %s94
    %s97 = sphi 0, %s96
    %s111 = sphi 0, %s97
    %s115 = sphi 0, %s115
    %s117 = sphi 0, %s115
    %s118 = sphi 0, %s117
    %s132 = sphi 0, %s118
    %s136 = sphi 0, %s136
    %s138 = sphi 0, %s136
    %s139 = sphi 0, %s138
    %s153 = sphi 0, %s139
    %s159 = sphi 0, %s161
    %s162 = sphi 0, %s159
    %s163 = sphi 0, %s162
    %s179 = sphi 0, %s163
  $region4: #{tpu_custom_call.1} parent=0 // loop_header_branch
    %16 = sbr.rel (%p14) target = $region8
  $region5: #{tpu_custom_call.1} parent=0 // loop_body
    %s18 = ssub.s32 %s13, 1
    %s19 = ssub.s32 %s13, 2
    %s20 = sadd.s32 %s13, 1
    %s21 = ssub.s32 %s13, %s20
    %p22 = scmp.eq.s32.totalorder %s21, 0
    %s24 = sadd.s32 %s23, 1
    %s25 = scalar_select %p22, %s23, %s24
    %p28 = pneg %p22
    %p29 = scmp.eq.s32.totalorder %s13, 1
    %p30 = por %p28, %p29
    %p31 = scmp.ne.s32.totalorder %s23, %s26
    %p32 = scmp.eq.s32.totalorder %s13, 0
    %p33 = por %p31, %p32
    %p34 = scmp.ne.s32.totalorder %s23, %s26
    %p35 = scmp.eq.s32.totalorder %s18, 1
    %p36 = por %p34, %p35
    %p37 = scmp.ne.s32.totalorder %s26, %s27
    %p38 = scmp.eq.s32.totalorder %s18, 0
    %p39 = por %p37, %p38
    %p40 = scmp.ne.s32.totalorder %s26, %s27
    %p41 = scmp.eq.s32.totalorder %s19, 1
    %p42 = por %p40, %p41
    %p44 = scmp.ne.s32.totalorder %s27, %s43
    %p45 = scmp.eq.s32.totalorder %s19, 0
    %p46 = por %p44, %p45
    %s47 = ssub.s32 %s13, %s20
    %p48 = scmp.eq.s32.totalorder %s47, 0
    %s50 = sadd.s32 %s49, 1
    %s51 = scalar_select %p48, %s49, %s50
    %p54 = pneg %p48
    %p55 = scmp.eq.s32.totalorder %s13, 1
    %p56 = por %p54, %p55
    %p57 = scmp.ne.s32.totalorder %s49, %s52
    %p58 = scmp.eq.s32.totalorder %s13, 0
    %p59 = por %p57, %p58
    %p60 = scmp.ne.s32.totalorder %s49, %s52
    %p61 = scmp.eq.s32.totalorder %s18, 1
    %p62 = por %p60, %p61
    %p63 = scmp.ne.s32.totalorder %s52, %s53
    %p64 = scmp.eq.s32.totalorder %s18, 0
    %p65 = por %p63, %p64
    %p66 = scmp.ne.s32.totalorder %s52, %s53
    %p67 = scmp.eq.s32.totalorder %s19, 1
    %p68 = por %p66, %p67
    %p70 = scmp.ne.s32.totalorder %s53, %s69
    %p71 = scmp.eq.s32.totalorder %s19, 0
    %p72 = por %p70, %p71
    %s74 = sadd.s32 %s73, 1
    %p77 = scmp.eq.s32.totalorder %s13, 1
    %p78 = scmp.ne.s32.totalorder %s73, %s75
    %p79 = scmp.eq.s32.totalorder %s13, 0
    %p80 = por %p78, %p79
    %p81 = scmp.ne.s32.totalorder %s73, %s75
    %p82 = scmp.eq.s32.totalorder %s18, 1
    %p83 = por %p81, %p82
    %p84 = scmp.ne.s32.totalorder %s75, %s76
    %p85 = scmp.eq.s32.totalorder %s18, 0
    %p86 = por %p84, %p85
    %p87 = scmp.ne.s32.totalorder %s75, %s76
    %p88 = scmp.eq.s32.totalorder %s19, 1
    %p89 = por %p87, %p88
    %p91 = scmp.ne.s32.totalorder %s76, %s90
    %p92 = scmp.eq.s32.totalorder %s19, 0
    %p93 = por %p91, %p92
    %s95 = sadd.s32 %s94, 1
    %p98 = scmp.eq.s32.totalorder %s13, 1
    %p99 = scmp.ne.s32.totalorder %s94, %s96
    %p100 = scmp.eq.s32.totalorder %s13, 0
    %p101 = por %p99, %p100
    %p102 = scmp.ne.s32.totalorder %s94, %s96
    %p103 = scmp.eq.s32.totalorder %s18, 1
    %p104 = por %p102, %p103
    %p105 = scmp.ne.s32.totalorder %s96, %s97
    %p106 = scmp.eq.s32.totalorder %s18, 0
    %p107 = por %p105, %p106
    %p108 = scmp.ne.s32.totalorder %s96, %s97
    %p109 = scmp.eq.s32.totalorder %s19, 1
    %p110 = por %p108, %p109
    %p112 = scmp.ne.s32.totalorder %s97, %s111
    %p113 = scmp.eq.s32.totalorder %s19, 0
    %p114 = por %p112, %p113
    %s116 = sadd.s32 %s115, 1
    %p119 = scmp.eq.s32.totalorder %s13, 1
    %p120 = scmp.ne.s32.totalorder %s115, %s117
    %p121 = scmp.eq.s32.totalorder %s13, 0
    %p122 = por %p120, %p121
    %p123 = scmp.ne.s32.totalorder %s115, %s117
    %p124 = scmp.eq.s32.totalorder %s18, 1
    %p125 = por %p123, %p124
    %p126 = scmp.ne.s32.totalorder %s117, %s118
    %p127 = scmp.eq.s32.totalorder %s18, 0
    %p128 = por %p126, %p127
    %p129 = scmp.ne.s32.totalorder %s117, %s118
    %p130 = scmp.eq.s32.totalorder %s19, 1
    %p131 = por %p129, %p130
    %p133 = scmp.ne.s32.totalorder %s118, %s132
    %p134 = scmp.eq.s32.totalorder %s19, 0
    %p135 = por %p133, %p134
    %s137 = sadd.s32 %s136, 1
    %p140 = scmp.eq.s32.totalorder %s13, 1
    %p141 = scmp.ne.s32.totalorder %s136, %s138
    %p142 = scmp.eq.s32.totalorder %s13, 0
    %p143 = por %p141, %p142
    %p144 = scmp.ne.s32.totalorder %s136, %s138
    %p145 = scmp.eq.s32.totalorder %s18, 1
    %p146 = por %p144, %p145
    %p147 = scmp.ne.s32.totalorder %s138, %s139
    %p148 = scmp.eq.s32.totalorder %s18, 0
    %p149 = por %p147, %p148
    %p150 = scmp.ne.s32.totalorder %s138, %s139
    %p151 = scmp.eq.s32.totalorder %s19, 1
    %p152 = por %p150, %p151
    %p154 = scmp.ne.s32.totalorder %s139, %s153
    %p155 = scmp.eq.s32.totalorder %s19, 0
    %p156 = por %p154, %p155
    %s157 = ssub.s32 %s13, %s20
    %p158 = scmp.eq.s32.totalorder %s157, 0
    %s160 = sadd.s32 %s159, 1
    %s161 = scalar_select %p158, %s159, %s160
    %p164 = pneg %p158
    %p165 = scmp.eq.s32.totalorder %s13, 1
    %p166 = por %p164, %p165
    %p167 = scmp.ne.s32.totalorder %s159, %s162
    %p168 = scmp.eq.s32.totalorder %s13, 0
    %p169 = por %p167, %p168
    %p170 = scmp.ne.s32.totalorder %s159, %s162
    %p171 = scmp.eq.s32.totalorder %s18, 1
    %p172 = por %p170, %p171
    %p173 = scmp.ne.s32.totalorder %s162, %s163
    %p174 = scmp.eq.s32.totalorder %s18, 0
    %p175 = por %p173, %p174
    %p176 = scmp.ne.s32.totalorder %s162, %s163
    %p177 = scmp.eq.s32.totalorder %s19, 1
    %p178 = por %p176, %p177
    %p180 = scmp.ne.s32.totalorder %s163, %s179
    %p181 = scmp.eq.s32.totalorder %s19, 0
    %p182 = por %p180, %p181
    %p183 = scmp.le.s32.totalorder 1, %s13
    %p184 = scmp.lt.s32.totalorder %s13, 3
    %p185 = pnand %p183, %p184
    %p186 = pneg %p185
    // Predicated region
    $region9: #{tpu_custom_call.1} parent=5 // pred_check
      _
    $region10: #{tpu_custom_call.1} parent=5 // pred_check_branch
      %188 = sbr.rel (%p185) target = $region12
    $region11: #{tpu_custom_call.1} parent=5 // pred_region
      %s189 = ssub.s32 %s13, 1
      // Predicated region
      $region13: #{tpu_custom_call.1} parent=11 // pred_check
        %p190 = pneg %p86
      $region14: #{tpu_custom_call.1} parent=11 // pred_check_branch
        %192 = sbr.rel (%p190) target = $region16
      $region15: #{tpu_custom_call.1} parent=11 // pred_region
        _
      $region16: #{tpu_custom_call.1} parent=11 // pred_fallthru
        _
      // Predicated region
      $region17: #{tpu_custom_call.1} parent=11 // pred_check
        %p193 = pneg %p107
      $region18: #{tpu_custom_call.1} parent=11 // pred_check_branch
        %195 = sbr.rel (%p193) target = $region20
      $region19: #{tpu_custom_call.1} parent=11 // pred_region
        _
      $region20: #{tpu_custom_call.1} parent=11 // pred_fallthru
        _
      // Predicated region
      $region21: #{tpu_custom_call.1} parent=11 // pred_check
        %p196 = pneg %p128
      $region22: #{tpu_custom_call.1} parent=11 // pred_check_branch
        %198 = sbr.rel (%p196) target = $region24
      $region23: #{tpu_custom_call.1} parent=11 // pred_region
        _
      $region24: #{tpu_custom_call.1} parent=11 // pred_fallthru
        _
      // Predicated region
      $region25: #{tpu_custom_call.1} parent=11 // pred_check
        %p199 = pneg %p149
      $region26: #{tpu_custom_call.1} parent=11 // pred_check_branch
        %201 = sbr.rel (%p199) target = $region28
      $region27: #{tpu_custom_call.1} parent=11 // pred_region
        _
      $region28: #{tpu_custom_call.1} parent=11 // pred_fallthru
        _
    $region12: #{tpu_custom_call.1} parent=5 // pred_fallthru
      _
    %p202 = scmp.lt.s32.totalorder %s13, 2
    // Predicated region
    $region29: #{tpu_custom_call.1} parent=5 // pred_check
      %p203 = pneg %p202
    $region30: #{tpu_custom_call.1} parent=5 // pred_check_branch
      %205 = sbr.rel (%p203) target = $region32
    $region31: #{tpu_custom_call.1} parent=5 // pred_region
      // Predicated region
      $region33: #{tpu_custom_call.1} parent=31 // pred_check
        %p206 = pneg %p33
      $region34: #{tpu_custom_call.1} parent=31 // pred_check_branch
        %208 = sbr.rel (%p206) target = $region36
      $region35: #{tpu_custom_call.1} parent=31 // pred_region
        %s209 = smul.u32 13, %s13
        %p210 = scmp.lt.s32.totalorder %s209, 25
        %s211 = scalar_select %p210, %s209, 25
        %s212 = smul.addr %s211, 8
        %s213 = scalar_lea.vmem %s0, %s212
        %s214 = smul.u32 13, %s13
      $region36: #{tpu_custom_call.1} parent=31 // pred_fallthru
        _
      // Predicated region
      $region37: #{tpu_custom_call.1} parent=31 // pred_check
        %p215 = pneg %p59
      $region38: #{tpu_custom_call.1} parent=31 // pred_check_branch
        %217 = sbr.rel (%p215) target = $region40
      $region39: #{tpu_custom_call.1} parent=31 // pred_region
        %s218 = smul.u32 104, %s13
        %p219 = scmp.lt.s32.totalorder %s218, 207
        %s220 = scalar_select %p219, %s218, 207
        %s221 = smul.addr %s220, 4
        %s222 = scalar_lea.vmem %s1, %s221
        %s223 = smul.u32 104, %s13
      $region40: #{tpu_custom_call.1} parent=31 // pred_fallthru
        _
    $region32: #{tpu_custom_call.1} parent=5 // pred_fallthru
      _
    %p224 = scmp.le.s32.totalorder 1, %s13
    %p225 = scmp.lt.s32.totalorder %s13, 3
    %p226 = pnand %p224, %p225
    %p227 = pneg %p226
    // Predicated region
    $region41: #{tpu_custom_call.1} parent=5 // pred_check
      _
    $region42: #{tpu_custom_call.1} parent=5 // pred_check_branch
      %229 = sbr.rel (%p226) target = $region44
    $region43: #{tpu_custom_call.1} parent=5 // pred_region
      %s230 = ssub.s32 %s13, 1
      %s231 = smul.u32 13, %s18
      %p232 = scmp.lt.s32.totalorder %s231, 25
      %s233 = scalar_select %p232, %s231, 25
      %s234 = smul.addr %s233, 8
      %s235 = scalar_lea.vmem %s0, %s234
      %p236 = pneg %p39
      %p237 = pneg %p36
      %s238 = smul.u32 104, %s18
      %p239 = scmp.lt.s32.totalorder %s238, 207
      %s240 = scalar_select %p239, %s238, 207
      %s241 = smul.addr %s240, 4
      %s242 = scalar_lea.vmem %s1, %s241
      %p243 = pneg %p65
      %p244 = pneg %p62
      %p245 = pneg %p86
      %p246 = pneg %p83
      %p247 = pneg %p107
      %p248 = pneg %p104
      %p249 = pneg %p128
      %p250 = pneg %p125
      %p251 = pneg %p149
      %p252 = pneg %p146
      %p253 = pneg %p175
      %p254 = pneg %p172
      %s255 = smul.u32 13, %s18
      %p256 = scmp.lt.s32.totalorder %s255, 25
      %s257 = scalar_select %p256, %s255, 25
      %s258 = smul.addr %s257, 8
      %s259 = scalar_lea.vmem %s6, %s258
      %s260 = smul.u32 13, %s18
      %p261 = scmp.lt.s32.totalorder %s260, 25
      %s262 = scalar_select %p261, %s260, 25
      %s263 = smul.addr %s262, 8
      %s264 = scalar_lea.vmem %s0, %s263
      %s265 = smul.u32 13, %s18
      %s266 = smul.u32 104, %s18
      %p267 = scmp.lt.s32.totalorder %s266, 207
      %s268 = scalar_select %p267, %s266, 207
      %s269 = smul.addr %s268, 4
      %s270 = scalar_lea.vmem %s1, %s269
      %s271 = smul.u32 104, %s18
      %s272 = smul.u32 13, %s18
      %p273 = scmp.lt.s32.totalorder %s272, 25
      %s274 = scalar_select %p273, %s272, 25
      %s275 = smul.addr %s274, 8
      %s276 = scalar_lea.vmem %s6, %s275
      %s277 = smul.u32 13, %s18
      %v278 = vld [vmem:[%s264] sm:$0xff]
      %v279 = vld [vmem:[%s264 + $0x8] sm:$0xff]
      %v280 = vld [vmem:[%s264 + $0x10] sm:$0xff]
      %v281 = vld [vmem:[%s264 + $0x18] sm:$0xff]
      %v282 = vld [vmem:[%s264 + $0x20] sm:$0xff]
      %v283 = vld [vmem:[%s264 + $0x28] sm:$0xff]
      %v284 = vld [vmem:[%s264 + $0x30] sm:$0xff]
      %v285 = vld [vmem:[%s264 + $0x38] sm:$0xff]
      %v286 = vld [vmem:[%s264 + $0x40] sm:$0xff]
      %v287 = vld [vmem:[%s264 + $0x48] sm:$0xff]
      %v288 = vld [vmem:[%s264 + $0x50] sm:$0xff]
      %v289 = vld [vmem:[%s264 + $0x58] sm:$0xff]
      %v290 = vld [vmem:[%s264 + $0x60] sm:$0xff]
      %v291 = vand.u32 2147483647, %v278
      %v292 = vand.u32 2147483647, %v279
      %v293 = vand.u32 2147483647, %v280
      %v294 = vand.u32 2147483647, %v281
      %v295 = vand.u32 2147483647, %v282
      %v296 = vand.u32 2147483647, %v283
      %v297 = vand.u32 2147483647, %v284
      %v298 = vand.u32 2147483647, %v285
      %v299 = vand.u32 2147483647, %v286
      %v300 = vand.u32 2147483647, %v287
      %v301 = vand.u32 2147483647, %v288
      %v302 = vand.u32 2147483647, %v289
      %v303 = vand.u32 2147483647, %v290
      %vm304 = vcmask 261120
      %v305 = vsel %vm304, %v291, 0.0
      %306 = vadd.xlane.f32.xlu0 %v305
      %v307 = vpop.xlane.xlu0 %306
      %v308 = vsel %vm304, %v292, 0.0
      %309 = vadd.xlane.f32.xlu0 %v308
      %v310 = vpop.xlane.xlu0 %309
      %v311 = vsel %vm304, %v293, 0.0
      %312 = vadd.xlane.f32.xlu0 %v311
      %v313 = vpop.xlane.xlu0 %312
      %v314 = vsel %vm304, %v294, 0.0
      %315 = vadd.xlane.f32.xlu0 %v314
      %v316 = vpop.xlane.xlu0 %315
      %v317 = vsel %vm304, %v295, 0.0
      %318 = vadd.xlane.f32.xlu0 %v317
      %v319 = vpop.xlane.xlu0 %318
      %v320 = vsel %vm304, %v296, 0.0
      %321 = vadd.xlane.f32.xlu0 %v320
      %v322 = vpop.xlane.xlu0 %321
      %v323 = vsel %vm304, %v297, 0.0
      %324 = vadd.xlane.f32.xlu0 %v323
      %v325 = vpop.xlane.xlu0 %324
      %v326 = vsel %vm304, %v298, 0.0
      %327 = vadd.xlane.f32.xlu0 %v326
      %v328 = vpop.xlane.xlu0 %327
      %v329 = vsel %vm304, %v299, 0.0
      %330 = vadd.xlane.f32.xlu0 %v329
      %v331 = vpop.xlane.xlu0 %330
      %v332 = vsel %vm304, %v300, 0.0
      %333 = vadd.xlane.f32.xlu0 %v332
      %v334 = vpop.xlane.xlu0 %333
      %v335 = vsel %vm304, %v301, 0.0
      %336 = vadd.xlane.f32.xlu0 %v335
      %v337 = vpop.xlane.xlu0 %336
      %v338 = vsel %vm304, %v302, 0.0
      %339 = vadd.xlane.f32.xlu0 %v338
      %v340 = vpop.xlane.xlu0 %339
      %v341 = vsel %vm304, %v303, 0.0
      %342 = vadd.xlane.f32.xlu0 %v341
      %v343 = vpop.xlane.xlu0 %342
      %v344 = vsub.f32 24.0, %v307
      %v345 = vsub.f32 24.0, %v310
      %v346 = vsub.f32 24.0, %v313
      %v347 = vsub.f32 24.0, %v316
      %v348 = vsub.f32 24.0, %v319
      %v349 = vsub.f32 24.0, %v322
      %v350 = vsub.f32 24.0, %v325
      %v351 = vsub.f32 24.0, %v328
      %v352 = vsub.f32 24.0, %v331
      %v353 = vsub.f32 24.0, %v334
      %v354 = vsub.f32 24.0, %v337
      %v355 = vsub.f32 24.0, %v340
      %v356 = vsub.f32 24.0, %v343
      %v357 = vmin.f32 %v344, 0.0
      %v358 = vmin.f32 %v345, 0.0
      %v359 = vmin.f32 %v346, 0.0
      %v360 = vmin.f32 %v347, 0.0
      %v361 = vmin.f32 %v348, 0.0
      %v362 = vmin.f32 %v349, 0.0
      %v363 = vmin.f32 %v350, 0.0
      %v364 = vmin.f32 %v351, 0.0
      %v365 = vmin.f32 %v352, 0.0
      %v366 = vmin.f32 %v353, 0.0
      %v367 = vmin.f32 %v354, 0.0
      %v368 = vmin.f32 %v355, 0.0
      %v369 = vmin.f32 %v356, 0.0
      %v370 = vand.u32 2147483647, %v344
      %v371 = vand.u32 2147483647, %v345
      %v372 = vand.u32 2147483647, %v346
      %v373 = vand.u32 2147483647, %v347
      %v374 = vand.u32 2147483647, %v348
      %v375 = vand.u32 2147483647, %v349
      %v376 = vand.u32 2147483647, %v350
      %v377 = vand.u32 2147483647, %v351
      %v378 = vand.u32 2147483647, %v352
      %v379 = vand.u32 2147483647, %v353
      %v380 = vand.u32 2147483647, %v354
      %v381 = vand.u32 2147483647, %v355
      %v382 = vand.u32 2147483647, %v356
      %v383 = vsub.f32 0.0, %v370
      %v384 = vsub.f32 0.0, %v371
      %v385 = vsub.f32 0.0, %v372
      %v386 = vsub.f32 0.0, %v373
      %v387 = vsub.f32 0.0, %v374
      %v388 = vsub.f32 0.0, %v375
      %v389 = vsub.f32 0.0, %v376
      %v390 = vsub.f32 0.0, %v377
      %v391 = vsub.f32 0.0, %v378
      %v392 = vsub.f32 0.0, %v379
      %v393 = vsub.f32 0.0, %v380
      %v394 = vsub.f32 0.0, %v381
      %v395 = vsub.f32 0.0, %v382
      %v396 = vmul.f32 %v383, 1.442695
      %v397 = vpow.pop %v396
      %v398 = vmul.f32 %v384, 1.442695
      %v399 = vpow.pop %v398
      %v400 = vmul.f32 %v385, 1.442695
      %v401 = vpow.pop %v400
      %v402 = vmul.f32 %v386, 1.442695
      %v403 = vpow.pop %v402
      %v404 = vmul.f32 %v387, 1.442695
      %v405 = vpow.pop %v404
      %v406 = vmul.f32 %v388, 1.442695
      %v407 = vpow.pop %v406
      %v408 = vmul.f32 %v389, 1.442695
      %v409 = vpow.pop %v408
      %v410 = vmul.f32 %v390, 1.442695
      %v411 = vpow.pop %v410
      %v412 = vmul.f32 %v391, 1.442695
      %v413 = vpow.pop %v412
      %v414 = vmul.f32 %v392, 1.442695
      %v415 = vpow.pop %v414
      %v416 = vmul.f32 %v393, 1.442695
      %v417 = vpow.pop %v416
      %v418 = vmul.f32 %v394, 1.442695
      %v419 = vpow.pop %v418
      %v420 = vmul.f32 %v395, 1.442695
      %v421 = vpow.pop %v420
      %v422 = vadd.f32 %v397, 1.0
      %v423 = vadd.f32 %v399, 1.0
      %v424 = vadd.f32 %v401, 1.0
      %v425 = vadd.f32 %v403, 1.0
      %v426 = vadd.f32 %v405, 1.0
      %v427 = vadd.f32 %v407, 1.0
      %v428 = vadd.f32 %v409, 1.0
      %v429 = vadd.f32 %v411, 1.0
      %v430 = vadd.f32 %v413, 1.0
      %v431 = vadd.f32 %v415, 1.0
      %v432 = vadd.f32 %v417, 1.0
      %v433 = vadd.f32 %v419, 1.0
      %v434 = vadd.f32 %v421, 1.0
      %v435 = vlog2.pop %v422
      %v436 = vmul.f32 %v435, 0.6931472
      %v437 = vlog2.pop %v423
      %v438 = vmul.f32 %v437, 0.6931472
      %v439 = vlog2.pop %v424
      %v440 = vmul.f32 %v439, 0.6931472
      %v441 = vlog2.pop %v425
      %v442 = vmul.f32 %v441, 0.6931472
      %v443 = vlog2.pop %v426
      %v444 = vmul.f32 %v443, 0.6931472
      %v445 = vlog2.pop %v427
      %v446 = vmul.f32 %v445, 0.6931472
      %v447 = vlog2.pop %v428
      %v448 = vmul.f32 %v447, 0.6931472
      %v449 = vlog2.pop %v429
      %v450 = vmul.f32 %v449, 0.6931472
      %v451 = vlog2.pop %v430
      %v452 = vmul.f32 %v451, 0.6931472
      %v453 = vlog2.pop %v431
      %v454 = vmul.f32 %v453, 0.6931472
      %v455 = vlog2.pop %v432
      %v456 = vmul.f32 %v455, 0.6931472
      %v457 = vlog2.pop %v433
      %v458 = vmul.f32 %v457, 0.6931472
      %v459 = vlog2.pop %v434
      %v460 = vmul.f32 %v459, 0.6931472
      %v461 = vsub.f32 %v357, %v436
      %v462 = vsub.f32 %v358, %v438
      %v463 = vsub.f32 %v359, %v440
      %v464 = vsub.f32 %v360, %v442
      %v465 = vsub.f32 %v361, %v444
      %v466 = vsub.f32 %v362, %v446
      %v467 = vsub.f32 %v363, %v448
      %v468 = vsub.f32 %v364, %v450
      %v469 = vsub.f32 %v365, %v452
      %v470 = vsub.f32 %v366, %v454
      %v471 = vsub.f32 %v367, %v456
      %v472 = vsub.f32 %v368, %v458
      %v473 = vsub.f32 %v369, %v460
      %v474 = vsub.f32 0.0, %v461
      %v475 = vsub.f32 0.0, %v462
      %v476 = vsub.f32 0.0, %v463
      %v477 = vsub.f32 0.0, %v464
      %v478 = vsub.f32 0.0, %v465
      %v479 = vsub.f32 0.0, %v466
      %v480 = vsub.f32 0.0, %v467
      %v481 = vsub.f32 0.0, %v468
      %v482 = vsub.f32 0.0, %v469
      %v483 = vsub.f32 0.0, %v470
      %v484 = vsub.f32 0.0, %v471
      %v485 = vsub.f32 0.0, %v472
      %v486 = vsub.f32 0.0, %v473
      %v487 = vld [vmem:[%s2] sm:$0xff]
      %v488 = vld [vmem:[%s2 + $0x8] sm:$0xff]
      %v489 = vld [vmem:[%s2 + $0x10] sm:$0xff]
      %v490 = vld [vmem:[%s2 + $0x18] sm:$0xff]
      %v491 = vld [vmem:[%s3] sm:$0x1]
      %v493 = vlaneseq
      %v494 = vshrl.u32 %v493, 7
      %v495 = vsub.s32 0, %v494
      %v496 = vrot.slane %v491, %v495
      %v499 = vsel %vm304, %v278, 0
      %v502 = vsel %vm304, %v279, 0
      %v505 = vsel %vm304, %v280, 0
      %v508 = vsel %vm304, %v281, 0
      %v511 = vsel %vm304, %v282, 0
      %v514 = vsel %vm304, %v283, 0
      %v517 = vsel %vm304, %v284, 0
      %v520 = vsel %vm304, %v285, 0
      %v523 = vsel %vm304, %v286, 0
      %v526 = vsel %vm304, %v287, 0
      %v529 = vsel %vm304, %v288, 0
      %v532 = vsel %vm304, %v289, 0
      %v535 = vsel %vm304, %v290, 0
      %537 = vmatprep.subr.mxu0 0.0
      %v538 = vand.u32 %v487, 4294901760
      %539 = vmatpush1.msra.mxu0 %v538
      %540 = vmatprep.subr.mxu0 0.0
      %v541 = vand.u32 %v488, 4294901760
      %542 = vmatpush1.msra.mxu0 %v541
      %543 = vmatprep.subr.mxu0 0.0
      %v544 = vand.u32 %v489, 4294901760
      %545 = vmatpush1.msra.mxu0 %v544
      %546 = vmatprep.subr.mxu0 0.0
      %v547 = vand.u32 %v490, 4294901760
      %548 = vmatpush1.msra.mxu0 %v547
      %549 = vmatprep.subr.mxu0 0.0
      %550 = vmatpush1.msra.mxu0 0.0
      %551 = vmatprep.subr.mxu0 0.0
      %552 = vmatpush1.msra.mxu0 0.0
      %553 = vmatprep.subr.mxu0 0.0
      %554 = vmatpush1.msra.mxu0 0.0
      %555 = vmatprep.subr.mxu0 0.0
      %556 = vmatpush1.msra.mxu0 0.0
      %557 = vmatprep.subr.mxu0 0.0
      %558 = vmatpush1.msra.mxu0 0.0
      %559 = vmatprep.subr.mxu0 0.0
      %560 = vmatpush1.msra.mxu0 0.0
      %561 = vmatprep.subr.mxu0 0.0
      %562 = vmatpush1.msra.mxu0 0.0
      %563 = vmatprep.subr.mxu0 0.0
      %564 = vmatpush1.msra.mxu0 0.0
      %565 = vmatprep.subr.mxu0 0.0
      %566 = vmatpush1.msra.mxu0 0.0
      %567 = vmatprep.subr.mxu0 0.0
      %568 = vmatpush1.msra.mxu0 0.0
      %569 = vmatprep.subr.mxu0 0.0
      %570 = vmatpush1.msra.mxu0 0.0
      %571 = vmatprep.subr.mxu0 0.0
      %572 = vmatpush1.msra.mxu0 0.0
      %573 = vmatprep.subr.mxu0 0.0
      %574 = vmatpush1.msra.mxu0 0.0
      %575 = vmatprep.subr.mxu0 0.0
      %576 = vmatpush1.msra.mxu0 0.0
      %577 = vmatprep.subr.mxu0 0.0
      %578 = vmatpush1.msra.mxu0 0.0
      %579 = vmatprep.subr.mxu0 0.0
      %580 = vmatpush1.msra.mxu0 0.0
      %581 = vmatprep.subr.mxu0 0.0
      %582 = vmatpush1.msra.mxu0 0.0
      %583 = vmatprep.subr.mxu0 0.0
      %584 = vmatpush1.msra.mxu0 0.0
      %585 = vmatprep.subr.mxu0 0.0
      %586 = vmatpush1.msra.mxu0 0.0
      %587 = vmatprep.subr.mxu0 0.0
      %588 = vmatpush1.msra.mxu0 0.0
      %589 = vmatprep.subr.mxu0 0.0
      %590 = vmatpush1.msra.mxu0 0.0
      %591 = vmatprep.subr.mxu0 0.0
      %592 = vmatpush1.msra.mxu0 0.0
      %593 = vmatprep.subr.mxu0 0.0
      %594 = vmatpush1.msra.mxu0 0.0
      %595 = vmatprep.subr.mxu0 0.0
      %596 = vmatpush1.msra.mxu0 0.0
      %597 = vmatprep.subr.mxu0 0.0
      %598 = vmatpush1.msra.mxu0 0.0
      %599 = vmatprep.subr.mxu0 0.0
      %600 = vmatpush1.msra.mxu0 0.0
      %601 = vmatprep.subr.mxu0 0.0
      %602 = vmatpush1.msra.mxu0 0.0
      %603 = vmatprep.subr.mxu0 0.0
      %604 = vmatpush1.msra.mxu0 0.0
      %605 = vmatprep.mubr.f32.mxu0 0.0
      %v606 = vand.u32 %v499, 4294901760
      %v607 = vsub.f32 %v499, %v606
      %v608 = vand.u32 %v607, 4294901760
      %v609 = vsub.f32 %v607, %v608
      %v610 = vand.u32 %v609, 4294901760
      %611 = vmatmul.mubr.f32.gmra.mrb[0].mxu0 %v610
      %v612 = vpop.f32.mrb[0].mxu0
      %v613 = vadd.f32 %v496, %v612
      %v614 = vpop.f32.mrb[0].mxu0
      %615 = vmatprep.mubr.f32.mxu0 0.0
      %v616 = vand.u32 %v502, 4294901760
      %v617 = vsub.f32 %v502, %v616
      %v618 = vand.u32 %v617, 4294901760
      %v619 = vsub.f32 %v617, %v618
      %v620 = vand.u32 %v619, 4294901760
      %621 = vmatmul.mubr.f32.gmra.mrb[0].mxu0 %v620
      %v622 = vpop.f32.mrb[0].mxu0
      %v623 = vadd.f32 %v496, %v622
      %v624 = vpop.f32.mrb[0].mxu0
      %625 = vmatprep.mubr.f32.mxu0 0.0
      %v626 = vand.u32 %v505, 4294901760
      %v627 = vsub.f32 %v505, %v626
      %v628 = vand.u32 %v627, 4294901760
      %v629 = vsub.f32 %v627, %v628
      %v630 = vand.u32 %v629, 4294901760
      %631 = vmatmul.mubr.f32.gmra.mrb[0].mxu0 %v630
      %v632 = vpop.f32.mrb[0].mxu0
      %v633 = vadd.f32 %v496, %v632
      %v634 = vpop.f32.mrb[0].mxu0
      %635 = vmatprep.mubr.f32.mxu0 0.0
      %v636 = vand.u32 %v508, 4294901760
      %v637 = vsub.f32 %v508, %v636
      %v638 = vand.u32 %v637, 4294901760
      %v639 = vsub.f32 %v637, %v638
      %v640 = vand.u32 %v639, 4294901760
      %641 = vmatmul.mubr.f32.gmra.mrb[0].mxu0 %v640
      %v642 = vpop.f32.mrb[0].mxu0
      %v643 = vadd.f32 %v496, %v642
      %v644 = vpop.f32.mrb[0].mxu0
      %645 = vmatprep.mubr.f32.mxu0 0.0
      %v646 = vand.u32 %v511, 4294901760
      %v647 = vsub.f32 %v511, %v646
      %v648 = vand.u32 %v647, 4294901760
      %v649 = vsub.f32 %v647, %v648
      %v650 = vand.u32 %v649, 4294901760
      %651 = vmatmul.mubr.f32.gmra.mrb[0].mxu0 %v650
      %v652 = vpop.f32.mrb[0].mxu0
      %v653 = vadd.f32 %v496, %v652
      %v654 = vpop.f32.mrb[0].mxu0
      %655 = vmatprep.mubr.f32.mxu0 0.0
      %v656 = vand.u32 %v514, 4294901760
      %v657 = vsub.f32 %v514, %v656
      %v658 = vand.u32 %v657, 4294901760
      %v659 = vsub.f32 %v657, %v658
      %v660 = vand.u32 %v659, 4294901760
      %661 = vmatmul.mubr.f32.gmra.mrb[0].mxu0 %v660
      %v662 = vpop.f32.mrb[0].mxu0
      %v663 = vadd.f32 %v496, %v662
      %v664 = vpop.f32.mrb[0].mxu0
      %665 = vmatprep.mubr.f32.mxu0 0.0
      %v666 = vand.u32 %v517, 4294901760
      %v667 = vsub.f32 %v517, %v666
      %v668 = vand.u32 %v667, 4294901760
      %v669 = vsub.f32 %v667, %v668
      %v670 = vand.u32 %v669, 4294901760
      %671 = vmatmul.mubr.f32.gmra.mrb[0].mxu0 %v670
      %v672 = vpop.f32.mrb[0].mxu0
      %v673 = vadd.f32 %v496, %v672
      %v674 = vpop.f32.mrb[0].mxu0
      %675 = vmatprep.mubr.f32.mxu0 0.0
      %v676 = vand.u32 %v520, 4294901760
      %v677 = vsub.f32 %v520, %v676
      %v678 = vand.u32 %v677, 4294901760
      %v679 = vsub.f32 %v677, %v678
      %v680 = vand.u32 %v679, 4294901760
      %681 = vmatmul.mubr.f32.gmra.mrb[0].mxu0 %v680
      %v682 = vpop.f32.mrb[0].mxu0
      %v683 = vadd.f32 %v496, %v682
      %v684 = vpop.f32.mrb[0].mxu0
      %685 = vmatprep.mubr.f32.mxu0 0.0
      %v686 = vand.u32 %v523, 4294901760
      %v687 = vsub.f32 %v523, %v686
      %v688 = vand.u32 %v687, 4294901760
      %v689 = vsub.f32 %v687, %v688
      %v690 = vand.u32 %v689, 4294901760
      %691 = vmatmul.mubr.f32.gmra.mrb[0].mxu0 %v690
      %v692 = vpop.f32.mrb[0].mxu0
      %v693 = vadd.f32 %v496, %v692
      %v694 = vpop.f32.mrb[0].mxu0
      %695 = vmatprep.mubr.f32.mxu0 0.0
      %v696 = vand.u32 %v526, 4294901760
      %v697 = vsub.f32 %v526, %v696
      %v698 = vand.u32 %v697, 4294901760
      %v699 = vsub.f32 %v697, %v698
      %v700 = vand.u32 %v699, 4294901760
      %701 = vmatmul.mubr.f32.gmra.mrb[0].mxu0 %v700
      %v702 = vpop.f32.mrb[0].mxu0
      %v703 = vadd.f32 %v496, %v702
      %v704 = vpop.f32.mrb[0].mxu0
      %705 = vmatprep.mubr.f32.mxu0 0.0
      %v706 = vand.u32 %v529, 4294901760
      %v707 = vsub.f32 %v529, %v706
      %v708 = vand.u32 %v707, 4294901760
      %v709 = vsub.f32 %v707, %v708
      %v710 = vand.u32 %v709, 4294901760
      %711 = vmatmul.mubr.f32.gmra.mrb[0].mxu0 %v710
      %v712 = vpop.f32.mrb[0].mxu0
      %v713 = vadd.f32 %v496, %v712
      %v714 = vpop.f32.mrb[0].mxu0
      %715 = vmatprep.mubr.f32.mxu0 0.0
      %v716 = vand.u32 %v532, 4294901760
      %v717 = vsub.f32 %v532, %v716
      %v718 = vand.u32 %v717, 4294901760
      %v719 = vsub.f32 %v717, %v718
      %v720 = vand.u32 %v719, 4294901760
      %721 = vmatmul.mubr.f32.gmra.mrb[0].mxu0 %v720
      %v722 = vpop.f32.mrb[0].mxu0
      %v723 = vadd.f32 %v496, %v722
      %v724 = vpop.f32.mrb[0].mxu0
      %725 = vmatprep.mubr.f32.mxu0 0.0
      %v726 = vand.u32 %v535, 4294901760
      %v727 = vsub.f32 %v535, %v726
      %v728 = vand.u32 %v727, 4294901760
      %v729 = vsub.f32 %v727, %v728
      %v730 = vand.u32 %v729, 4294901760
      %731 = vmatmul.mubr.f32.gmra.mrb[0].mxu0 %v730
      %v732 = vpop.f32.mrb[0].mxu0
      %v733 = vadd.f32 %v496, %v732
      %v734 = vpop.f32.mrb[0].mxu0
      %735 = vdwg.mxu0
      %736 = vmatprep.subr.mxu0 0.0
      %v737 = vand.u32 %v487, 4294901760
      %v738 = vsub.f32 %v487, %v737
      %v739 = vand.u32 %v738, 4294901760
      %v740 = vsub.f32 %v738, %v739
      %v741 = vand.u32 %v740, 4294901760
      %742 = vmatpush1.msra.mxu0 %v741
      %743 = vmatprep.subr.mxu0 0.0
      %v744 = vand.u32 %v488, 4294901760
      %v745 = vsub.f32 %v488, %v744
      %v746 = vand.u32 %v745, 4294901760
      %v747 = vsub.f32 %v745, %v746
      %v748 = vand.u32 %v747, 4294901760
      %749 = vmatpush1.msra.mxu0 %v748
      %750 = vmatprep.subr.mxu0 0.0
      %v751 = vand.u32 %v489, 4294901760
      %v752 = vsub.f32 %v489, %v751
      %v753 = vand.u32 %v752, 4294901760
      %v754 = vsub.f32 %v752, %v753
      %v755 = vand.u32 %v754, 4294901760
      %756 = vmatpush1.msra.mxu0 %v755
      %757 = vmatprep.subr.mxu0 0.0
      %v758 = vand.u32 %v490, 4294901760
      %v759 = vsub.f32 %v490, %v758
      %v760 = vand.u32 %v759, 4294901760
      %v761 = vsub.f32 %v759, %v760
      %v762 = vand.u32 %v761, 4294901760
      %763 = vmatpush1.msra.mxu0 %v762
      %764 = vmatprep.subr.mxu0 0.0
      %765 = vmatpush1.msra.mxu0 0.0
      %766 = vmatprep.subr.mxu0 0.0
      %767 = vmatpush1.msra.mxu0 0.0
      %768 = vmatprep.subr.mxu0 0.0
      %769 = vmatpush1.msra.mxu0 0.0
      %770 = vmatprep.subr.mxu0 0.0
      %771 = vmatpush1.msra.mxu0 0.0
      %772 = vmatprep.subr.mxu0 0.0
      %773 = vmatpush1.msra.mxu0 0.0
      %774 = vmatprep.subr.mxu0 0.0
      %775 = vmatpush1.msra.mxu0 0.0
      %776 = vmatprep.subr.mxu0 0.0
      %777 = vmatpush1.msra.mxu0 0.0
      %778 = vmatprep.subr.mxu0 0.0
      %779 = vmatpush1.msra.mxu0 0.0
      %780 = vmatprep.subr.mxu0 0.0
      %781 = vmatpush1.msra.mxu0 0.0
      %782 = vmatprep.subr.mxu0 0.0
      %783 = vmatpush1.msra.mxu0 0.0
      %784 = vmatprep.subr.mxu0 0.0
      %785 = vmatpush1.msra.mxu0 0.0
      %786 = vmatprep.subr.mxu0 0.0
      %787 = vmatpush1.msra.mxu0 0.0
      %788 = vmatprep.subr.mxu0 0.0
      %789 = vmatpush1.msra.mxu0 0.0
      %790 = vmatprep.subr.mxu0 0.0
      %791 = vmatpush1.msra.mxu0 0.0
      %792 = vmatprep.subr.mxu0 0.0
      %793 = vmatpush1.msra.mxu0 0.0
      %794 = vmatprep.subr.mxu0 0.0
      %795 = vmatpush1.msra.mxu0 0.0
      %796 = vmatprep.subr.mxu0 0.0
      %797 = vmatpush1.msra.mxu0 0.0
      %798 = vmatprep.subr.mxu0 0.0
      %799 = vmatpush1.msra.mxu0 0.0
      %800 = vmatprep.subr.mxu0 0.0
      %801 = vmatpush1.msra.mxu0 0.0
      %802 = vmatprep.subr.mxu0 0.0
      %803 = vmatpush1.msra.mxu0 0.0
      %804 = vmatprep.subr.mxu0 0.0
      %805 = vmatpush1.msra.mxu0 0.0
      %806 = vmatprep.subr.mxu0 0.0
      %807 = vmatpush1.msra.mxu0 0.0
      %808 = vmatprep.subr.mxu0 0.0
      %809 = vmatpush1.msra.mxu0 0.0
      %810 = vmatprep.subr.mxu0 0.0
      %811 = vmatpush1.msra.mxu0 0.0
      %812 = vmatprep.subr.mxu0 0.0
      %813 = vmatpush1.msra.mxu0 0.0
      %814 = vmatprep.subr.mxu0 0.0
      %815 = vmatpush1.msra.mxu0 0.0
      %816 = vmatprep.subr.mxu0 0.0
      %817 = vmatpush1.msra.mxu0 0.0
      %818 = vmatprep.subr.mxu0 0.0
      %819 = vmatpush1.msra.mxu0 0.0
      %820 = vmatprep.mubr.f32.mxu0 0.0
      %v821 = vand.u32 %v499, 4294901760
      %822 = vmatmul.mubr.f32.gmra.mrb[0].mxu0 %v821
      %v823 = vpop.f32.mrb[0].mxu0
      %v824 = vadd.f32 %v613, %v823
      %v825 = vpop.f32.mrb[0].mxu0
      %826 = vmatprep.mubr.f32.mxu0 0.0
      %v827 = vand.u32 %v502, 4294901760
      %828 = vmatmul.mubr.f32.gmra.mrb[0].mxu0 %v827
      %v829 = vpop.f32.mrb[0].mxu0
      %v830 = vadd.f32 %v623, %v829
      %v831 = vpop.f32.mrb[0].mxu0
      %832 = vmatprep.mubr.f32.mxu0 0.0
      %v833 = vand.u32 %v505, 4294901760
      %834 = vmatmul.mubr.f32.gmra.mrb[0].mxu0 %v833
      %v835 = vpop.f32.mrb[0].mxu0
      %v836 = vadd.f32 %v633, %v835
      %v837 = vpop.f32.mrb[0].mxu0
      %838 = vmatprep.mubr.f32.mxu0 0.0
      %v839 = vand.u32 %v508, 4294901760
      %840 = vmatmul.mubr.f32.gmra.mrb[0].mxu0 %v839
      %v841 = vpop.f32.mrb[0].mxu0
      %v842 = vadd.f32 %v643, %v841
      %v843 = vpop.f32.mrb[0].mxu0
      %844 = vmatprep.mubr.f32.mxu0 0.0
      %v845 = vand.u32 %v511, 4294901760
      %846 = vmatmul.mubr.f32.gmra.mrb[0].mxu0 %v845
      %v847 = vpop.f32.mrb[0].mxu0
      %v848 = vadd.f32 %v653, %v847
      %v849 = vpop.f32.mrb[0].mxu0
      %850 = vmatprep.mubr.f32.mxu0 0.0
      %v851 = vand.u32 %v514, 4294901760
      %852 = vmatmul.mubr.f32.gmra.mrb[0].mxu0 %v851
      %v853 = vpop.f32.mrb[0].mxu0
      %v854 = vadd.f32 %v663, %v853
      %v855 = vpop.f32.mrb[0].mxu0
      %856 = vmatprep.mubr.f32.mxu0 0.0
      %v857 = vand.u32 %v517, 4294901760
      %858 = vmatmul.mubr.f32.gmra.mrb[0].mxu0 %v857
      %v859 = vpop.f32.mrb[0].mxu0
      %v860 = vadd.f32 %v673, %v859
      %v861 = vpop.f32.mrb[0].mxu0
      %862 = vmatprep.mubr.f32.mxu0 0.0
      %v863 = vand.u32 %v520, 4294901760
      %864 = vmatmul.mubr.f32.gmra.mrb[0].mxu0 %v863
      %v865 = vpop.f32.mrb[0].mxu0
      %v866 = vadd.f32 %v683, %v865
      %v867 = vpop.f32.mrb[0].mxu0
      %868 = vmatprep.mubr.f32.mxu0 0.0
      %v869 = vand.u32 %v523, 4294901760
      %870 = vmatmul.mubr.f32.gmra.mrb[0].mxu0 %v869
      %v871 = vpop.f32.mrb[0].mxu0
      %v872 = vadd.f32 %v693, %v871
      %v873 = vpop.f32.mrb[0].mxu0
      %874 = vmatprep.mubr.f32.mxu0 0.0
      %v875 = vand.u32 %v526, 4294901760
      %876 = vmatmul.mubr.f32.gmra.mrb[0].mxu0 %v875
      %v877 = vpop.f32.mrb[0].mxu0
      %v878 = vadd.f32 %v703, %v877
      %v879 = vpop.f32.mrb[0].mxu0
      %880 = vmatprep.mubr.f32.mxu0 0.0
      %v881 = vand.u32 %v529, 4294901760
      %882 = vmatmul.mubr.f32.gmra.mrb[0].mxu0 %v881
      %v883 = vpop.f32.mrb[0].mxu0
      %v884 = vadd.f32 %v713, %v883
      %v885 = vpop.f32.mrb[0].mxu0
      %886 = vmatprep.mubr.f32.mxu0 0.0
      %v887 = vand.u32 %v532, 4294901760
      %888 = vmatmul.mubr.f32.gmra.mrb[0].mxu0 %v887
      %v889 = vpop.f32.mrb[0].mxu0
      %v890 = vadd.f32 %v723, %v889
      %v891 = vpop.f32.mrb[0].mxu0
      %892 = vmatprep.mubr.f32.mxu0 0.0
      %v893 = vand.u32 %v535, 4294901760
      %894 = vmatmul.mubr.f32.gmra.mrb[0].mxu0 %v893
      %v895 = vpop.f32.mrb[0].mxu0
      %v896 = vadd.f32 %v733, %v895
      %v897 = vpop.f32.mrb[0].mxu0
      %898 = vdwg.mxu0
      %899 = vmatprep.subr.mxu0 0.0
      %v900 = vand.u32 %v487, 4294901760
      %v901 = vsub.f32 %v487, %v900
      %902 = vmatpush1.msra.mxu0 %v901
      %903 = vmatprep.subr.mxu0 0.0
      %v904 = vand.u32 %v488, 4294901760
      %v905 = vsub.f32 %v488, %v904
      %906 = vmatpush1.msra.mxu0 %v905
      %907 = vmatprep.subr.mxu0 0.0
      %v908 = vand.u32 %v489, 4294901760
      %v909 = vsub.f32 %v489, %v908
      %910 = vmatpush1.msra.mxu0 %v909
      %911 = vmatprep.subr.mxu0 0.0
      %v912 = vand.u32 %v490, 4294901760
      %v913 = vsub.f32 %v490, %v912
      %914 = vmatpush1.msra.mxu0 %v913
      %915 = vmatprep.subr.mxu0 0.0
      %916 = vmatpush1.msra.mxu0 0.0
      %917 = vmatprep.subr.mxu0 0.0
      %918 = vmatpush1.msra.mxu0 0.0
      %919 = vmatprep.subr.mxu0 0.0
      %920 = vmatpush1.msra.mxu0 0.0
      %921 = vmatprep.subr.mxu0 0.0
      %922 = vmatpush1.msra.mxu0 0.0
      %923 = vmatprep.subr.mxu0 0.0
      %924 = vmatpush1.msra.mxu0 0.0
      %925 = vmatprep.subr.mxu0 0.0
      %926 = vmatpush1.msra.mxu0 0.0
      %927 = vmatprep.subr.mxu0 0.0
      %928 = vmatpush1.msra.mxu0 0.0
      %929 = vmatprep.subr.mxu0 0.0
      %930 = vmatpush1.msra.mxu0 0.0
      %931 = vmatprep.subr.mxu0 0.0
      %932 = vmatpush1.msra.mxu0 0.0
      %933 = vmatprep.subr.mxu0 0.0
      %934 = vmatpush1.msra.mxu0 0.0
      %935 = vmatprep.subr.mxu0 0.0
      %936 = vmatpush1.msra.mxu0 0.0
      %937 = vmatprep.subr.mxu0 0.0
      %938 = vmatpush1.msra.mxu0 0.0
      %939 = vmatprep.subr.mxu0 0.0
      %940 = vmatpush1.msra.mxu0 0.0
      %941 = vmatprep.subr.mxu0 0.0
      %942 = vmatpush1.msra.mxu0 0.0
      %943 = vmatprep.subr.mxu0 0.0
      %944 = vmatpush1.msra.mxu0 0.0
      %945 = vmatprep.subr.mxu0 0.0
      %946 = vmatpush1.msra.mxu0 0.0
      %947 = vmatprep.subr.mxu0 0.0
      %948 = vmatpush1.msra.mxu0 0.0
      %949 = vmatprep.subr.mxu0 0.0
      %950 = vmatpush1.msra.mxu0 0.0
      %951 = vmatprep.subr.mxu0 0.0
      %952 = vmatpush1.msra.mxu0 0.0
      %953 = vmatprep.subr.mxu0 0.0
      %954 = vmatpush1.msra.mxu0 0.0
      %955 = vmatprep.subr.mxu0 0.0
      %956 = vmatpush1.msra.mxu0 0.0
      %957 = vmatprep.subr.mxu0 0.0
      %958 = vmatpush1.msra.mxu0 0.0
      %959 = vmatprep.subr.mxu0 0.0
      %960 = vmatpush1.msra.mxu0 0.0
      %961 = vmatprep.subr.mxu0 0.0
      %962 = vmatpush1.msra.mxu0 0.0
      %963 = vmatprep.subr.mxu0 0.0
      %964 = vmatpush1.msra.mxu0 0.0
      %965 = vmatprep.subr.mxu0 0.0
      %966 = vmatpush1.msra.mxu0 0.0
      %967 = vmatprep.subr.mxu0 0.0
      %968 = vmatpush1.msra.mxu0 0.0
      %969 = vmatprep.subr.mxu0 0.0
      %970 = vmatpush1.msra.mxu0 0.0
      %971 = vmatprep.mubr.f32.mxu0 0.0
      %v972 = vand.u32 %v499, 4294901760
      %v973 = vsub.f32 %v499, %v972
      %974 = vmatmul.mubr.f32.gmra.mrb[0].mxu0 %v973
      %v975 = vpop.f32.mrb[0].mxu0
      %v976 = vadd.f32 %v824, %v975
      %v977 = vpop.f32.mrb[0].mxu0
      %978 = vmatprep.mubr.f32.mxu0 0.0
      %v979 = vand.u32 %v502, 4294901760
      %v980 = vsub.f32 %v502, %v979
      %981 = vmatmul.mubr.f32.gmra.mrb[0].mxu0 %v980
      %v982 = vpop.f32.mrb[0].mxu0
      %v983 = vadd.f32 %v830, %v982
      %v984 = vpop.f32.mrb[0].mxu0
      %985 = vmatprep.mubr.f32.mxu0 0.0
      %v986 = vand.u32 %v505, 4294901760
      %v987 = vsub.f32 %v505, %v986
      %988 = vmatmul.mubr.f32.gmra.mrb[0].mxu0 %v987
      %v989 = vpop.f32.mrb[0].mxu0
      %v990 = vadd.f32 %v836, %v989
      %v991 = vpop.f32.mrb[0].mxu0
      %992 = vmatprep.mubr.f32.mxu0 0.0
      %v993 = vand.u32 %v508, 4294901760
      %v994 = vsub.f32 %v508, %v993
      %995 = vmatmul.mubr.f32.gmra.mrb[0].mxu0 %v994
      %v996 = vpop.f32.mrb[0].mxu0
      %v997 = vadd.f32 %v842, %v996
      %v998 = vpop.f32.mrb[0].mxu0
      %999 = vmatprep.mubr.f32.mxu0 0.0
      %v1000 = vand.u32 %v511, 4294901760
      %v1001 = vsub.f32 %v511, %v1000
      %1002 = vmatmul.mubr.f32.gmra.mrb[0].mxu0 %v1001
      %v1003 = vpop.f32.mrb[0].mxu0
      %v1004 = vadd.f32 %v848, %v1003
      %v1005 = vpop.f32.mrb[0].mxu0
      %1006 = vmatprep.mubr.f32.mxu0 0.0
      %v1007 = vand.u32 %v514, 4294901760
      %v1008 = vsub.f32 %v514, %v1007
      %1009 = vmatmul.mubr.f32.gmra.mrb[0].mxu0 %v1008
      %v1010 = vpop.f32.mrb[0].mxu0
      %v1011 = vadd.f32 %v854, %v1010
      %v1012 = vpop.f32.mrb[0].mxu0
      %1013 = vmatprep.mubr.f32.mxu0 0.0
      %v1014 = vand.u32 %v517, 4294901760
      %v1015 = vsub.f32 %v517, %v1014
      %1016 = vmatmul.mubr.f32.gmra.mrb[0].mxu0 %v1015
      %v1017 = vpop.f32.mrb[0].mxu0
      %v1018 = vadd.f32 %v860, %v1017
      %v1019 = vpop.f32.mrb[0].mxu0
      %1020 = vmatprep.mubr.f32.mxu0 0.0
      %v1021 = vand.u32 %v520, 4294901760
      %v1022 = vsub.f32 %v520, %v1021
      %1023 = vmatmul.mubr.f32.gmra.mrb[0].mxu0 %v1022
      %v1024 = vpop.f32.mrb[0].mxu0
      %v1025 = vadd.f32 %v866, %v1024
      %v1026 = vpop.f32.mrb[0].mxu0
      %1027 = vmatprep.mubr.f32.mxu0 0.0
      %v1028 = vand.u32 %v523, 4294901760
      %v1029 = vsub.f32 %v523, %v1028
      %1030 = vmatmul.mubr.f32.gmra.mrb[0].mxu0 %v1029
      %v1031 = vpop.f32.mrb[0].mxu0
      %v1032 = vadd.f32 %v872, %v1031
      %v1033 = vpop.f32.mrb[0].mxu0
      %1034 = vmatprep.mubr.f32.mxu0 0.0
      %v1035 = vand.u32 %v526, 4294901760
      %v1036 = vsub.f32 %v526, %v1035
      %1037 = vmatmul.mubr.f32.gmra.mrb[0].mxu0 %v1036
      %v1038 = vpop.f32.mrb[0].mxu0
      %v1039 = vadd.f32 %v878, %v1038
      %v1040 = vpop.f32.mrb[0].mxu0
      %1041 = vmatprep.mubr.f32.mxu0 0.0
      %v1042 = vand.u32 %v529, 4294901760
      %v1043 = vsub.f32 %v529, %v1042
      %1044 = vmatmul.mubr.f32.gmra.mrb[0].mxu0 %v1043
      %v1045 = vpop.f32.mrb[0].mxu0
      %v1046 = vadd.f32 %v884, %v1045
      %v1047 = vpop.f32.mrb[0].mxu0
      %1048 = vmatprep.mubr.f32.mxu0 0.0
      %v1049 = vand.u32 %v532, 4294901760
      %v1050 = vsub.f32 %v532, %v1049
      %1051 = vmatmul.mubr.f32.gmra.mrb[0].mxu0 %v1050
      %v1052 = vpop.f32.mrb[0].mxu0
      %v1053 = vadd.f32 %v890, %v1052
      %v1054 = vpop.f32.mrb[0].mxu0
      %1055 = vmatprep.mubr.f32.mxu0 0.0
      %v1056 = vand.u32 %v535, 4294901760
      %v1057 = vsub.f32 %v535, %v1056
      %1058 = vmatmul.mubr.f32.gmra.mrb[0].mxu0 %v1057
      %v1059 = vpop.f32.mrb[0].mxu0
      %v1060 = vadd.f32 %v896, %v1059
      %v1061 = vpop.f32.mrb[0].mxu0
      %1062 = vdwg.mxu0
      %1063 = vmatprep.subr.mxu0 0.0
      %v1064 = vand.u32 %v487, 4294901760
      %1065 = vmatpush1.msra.mxu0 %v1064
      %1066 = vmatprep.subr.mxu0 0.0
      %v1067 = vand.u32 %v488, 4294901760
      %1068 = vmatpush1.msra.mxu0 %v1067
      %1069 = vmatprep.subr.mxu0 0.0
      %v1070 = vand.u32 %v489, 4294901760
      %1071 = vmatpush1.msra.mxu0 %v1070
      %1072 = vmatprep.subr.mxu0 0.0
      %v1073 = vand.u32 %v490, 4294901760
      %1074 = vmatpush1.msra.mxu0 %v1073
      %1075 = vmatprep.subr.mxu0 0.0
      %1076 = vmatpush1.msra.mxu0 0.0
      %1077 = vmatprep.subr.mxu0 0.0
      %1078 = vmatpush1.msra.mxu0 0.0
      %1079 = vmatprep.subr.mxu0 0.0
      %1080 = vmatpush1.msra.mxu0 0.0
      %1081 = vmatprep.subr.mxu0 0.0
      %1082 = vmatpush1.msra.mxu0 0.0
      %1083 = vmatprep.subr.mxu0 0.0
      %1084 = vmatpush1.msra.mxu0 0.0
      %1085 = vmatprep.subr.mxu0 0.0
      %1086 = vmatpush1.msra.mxu0 0.0
      %1087 = vmatprep.subr.mxu0 0.0
      %1088 = vmatpush1.msra.mxu0 0.0
      %1089 = vmatprep.subr.mxu0 0.0
      %1090 = vmatpush1.msra.mxu0 0.0
      %1091 = vmatprep.subr.mxu0 0.0
      %1092 = vmatpush1.msra.mxu0 0.0
      %1093 = vmatprep.subr.mxu0 0.0
      %1094 = vmatpush1.msra.mxu0 0.0
      %1095 = vmatprep.subr.mxu0 0.0
      %1096 = vmatpush1.msra.mxu0 0.0
      %1097 = vmatprep.subr.mxu0 0.0
      %1098 = vmatpush1.msra.mxu0 0.0
      %1099 = vmatprep.subr.mxu0 0.0
      %1100 = vmatpush1.msra.mxu0 0.0
      %1101 = vmatprep.subr.mxu0 0.0
      %1102 = vmatpush1.msra.mxu0 0.0
      %1103 = vmatprep.subr.mxu0 0.0
      %1104 = vmatpush1.msra.mxu0 0.0
      %1105 = vmatprep.subr.mxu0 0.0
      %1106 = vmatpush1.msra.mxu0 0.0
      %1107 = vmatprep.subr.mxu0 0.0
      %1108 = vmatpush1.msra.mxu0 0.0
      %1109 = vmatprep.subr.mxu0 0.0
      %1110 = vmatpush1.msra.mxu0 0.0
      %1111 = vmatprep.subr.mxu0 0.0
      %1112 = vmatpush1.msra.mxu0 0.0
      %1113 = vmatprep.subr.mxu0 0.0
      %1114 = vmatpush1.msra.mxu0 0.0
      %1115 = vmatprep.subr.mxu0 0.0
      %1116 = vmatpush1.msra.mxu0 0.0
      %1117 = vmatprep.subr.mxu0 0.0
      %1118 = vmatpush1.msra.mxu0 0.0
      %1119 = vmatprep.subr.mxu0 0.0
      %1120 = vmatpush1.msra.mxu0 0.0
      %1121 = vmatprep.subr.mxu0 0.0
      %1122 = vmatpush1.msra.mxu0 0.0
      %1123 = vmatprep.subr.mxu0 0.0
      %1124 = vmatpush1.msra.mxu0 0.0
      %1125 = vmatprep.subr.mxu0 0.0
      %1126 = vmatpush1.msra.mxu0 0.0
      %1127 = vmatprep.subr.mxu0 0.0
      %1128 = vmatpush1.msra.mxu0 0.0
      %1129 = vmatprep.subr.mxu0 0.0
      %1130 = vmatpush1.msra.mxu0 0.0
      %1131 = vmatprep.mubr.f32.mxu0 0.0
      %v1132 = vand.u32 %v499, 4294901760
      %v1133 = vsub.f32 %v499, %v1132
      %v1134 = vand.u32 %v1133, 4294901760
      %1135 = vmatmul.mubr.f32.gmra.mrb[0].mxu0 %v1134
      %v1136 = vpop.f32.mrb[0].mxu0
      %v1137 = vadd.f32 %v976, %v1136
      %v1138 = vpop.f32.mrb[0].mxu0
      %1139 = vmatprep.mubr.f32.mxu0 0.0
      %v1140 = vand.u32 %v502, 4294901760
      %v1141 = vsub.f32 %v502, %v1140
      %v1142 = vand.u32 %v1141, 4294901760
      %1143 = vmatmul.mubr.f32.gmra.mrb[0].mxu0 %v1142
      %v1144 = vpop.f32.mrb[0].mxu0
      %v1145 = vadd.f32 %v983, %v1144
      %v1146 = vpop.f32.mrb[0].mxu0
      %1147 = vmatprep.mubr.f32.mxu0 0.0
      %v1148 = vand.u32 %v505, 4294901760
      %v1149 = vsub.f32 %v505, %v1148
      %v1150 = vand.u32 %v1149, 4294901760
      %1151 = vmatmul.mubr.f32.gmra.mrb[0].mxu0 %v1150
      %v1152 = vpop.f32.mrb[0].mxu0
      %v1153 = vadd.f32 %v990, %v1152
      %v1154 = vpop.f32.mrb[0].mxu0
      %1155 = vmatprep.mubr.f32.mxu0 0.0
      %v1156 = vand.u32 %v508, 4294901760
      %v1157 = vsub.f32 %v508, %v1156
      %v1158 = vand.u32 %v1157, 4294901760
      %1159 = vmatmul.mubr.f32.gmra.mrb[0].mxu0 %v1158
      %v1160 = vpop.f32.mrb[0].mxu0
      %v1161 = vadd.f32 %v997, %v1160
      %v1162 = vpop.f32.mrb[0].mxu0
      %1163 = vmatprep.mubr.f32.mxu0 0.0
      %v1164 = vand.u32 %v511, 4294901760
      %v1165 = vsub.f32 %v511, %v1164
      %v1166 = vand.u32 %v1165, 4294901760
      %1167 = vmatmul.mubr.f32.gmra.mrb[0].mxu0 %v1166
      %v1168 = vpop.f32.mrb[0].mxu0
      %v1169 = vadd.f32 %v1004, %v1168
      %v1170 = vpop.f32.mrb[0].mxu0
      %1171 = vmatprep.mubr.f32.mxu0 0.0
      %v1172 = vand.u32 %v514, 4294901760
      %v1173 = vsub.f32 %v514, %v1172
      %v1174 = vand.u32 %v1173, 4294901760
      %1175 = vmatmul.mubr.f32.gmra.mrb[0].mxu0 %v1174
      %v1176 = vpop.f32.mrb[0].mxu0
      %v1177 = vadd.f32 %v1011, %v1176
      %v1178 = vpop.f32.mrb[0].mxu0
      %1179 = vmatprep.mubr.f32.mxu0 0.0
      %v1180 = vand.u32 %v517, 4294901760
      %v1181 = vsub.f32 %v517, %v1180
      %v1182 = vand.u32 %v1181, 4294901760
      %1183 = vmatmul.mubr.f32.gmra.mrb[0].mxu0 %v1182
      %v1184 = vpop.f32.mrb[0].mxu0
      %v1185 = vadd.f32 %v1018, %v1184
      %v1186 = vpop.f32.mrb[0].mxu0
      %1187 = vmatprep.mubr.f32.mxu0 0.0
      %v1188 = vand.u32 %v520, 4294901760
      %v1189 = vsub.f32 %v520, %v1188
      %v1190 = vand.u32 %v1189, 4294901760
      %1191 = vmatmul.mubr.f32.gmra.mrb[0].mxu0 %v1190
      %v1192 = vpop.f32.mrb[0].mxu0
      %v1193 = vadd.f32 %v1025, %v1192
      %v1194 = vpop.f32.mrb[0].mxu0
      %1195 = vmatprep.mubr.f32.mxu0 0.0
      %v1196 = vand.u32 %v523, 4294901760
      %v1197 = vsub.f32 %v523, %v1196
      %v1198 = vand.u32 %v1197, 4294901760
      %1199 = vmatmul.mubr.f32.gmra.mrb[0].mxu0 %v1198
      %v1200 = vpop.f32.mrb[0].mxu0
      %v1201 = vadd.f32 %v1032, %v1200
      %v1202 = vpop.f32.mrb[0].mxu0
      %1203 = vmatprep.mubr.f32.mxu0 0.0
      %v1204 = vand.u32 %v526, 4294901760
      %v1205 = vsub.f32 %v526, %v1204
      %v1206 = vand.u32 %v1205, 4294901760
      %1207 = vmatmul.mubr.f32.gmra.mrb[0].mxu0 %v1206
      %v1208 = vpop.f32.mrb[0].mxu0
      %v1209 = vadd.f32 %v1039, %v1208
      %v1210 = vpop.f32.mrb[0].mxu0
      %1211 = vmatprep.mubr.f32.mxu0 0.0
      %v1212 = vand.u32 %v529, 4294901760
      %v1213 = vsub.f32 %v529, %v1212
      %v1214 = vand.u32 %v1213, 4294901760
      %1215 = vmatmul.mubr.f32.gmra.mrb[0].mxu0 %v1214
      %v1216 = vpop.f32.mrb[0].mxu0
      %v1217 = vadd.f32 %v1046, %v1216
      %v1218 = vpop.f32.mrb[0].mxu0
      %1219 = vmatprep.mubr.f32.mxu0 0.0
      %v1220 = vand.u32 %v532, 4294901760
      %v1221 = vsub.f32 %v532, %v1220
      %v1222 = vand.u32 %v1221, 4294901760
      %1223 = vmatmul.mubr.f32.gmra.mrb[0].mxu0 %v1222
      %v1224 = vpop.f32.mrb[0].mxu0
      %v1225 = vadd.f32 %v1053, %v1224
      %v1226 = vpop.f32.mrb[0].mxu0
      %1227 = vmatprep.mubr.f32.mxu0 0.0
      %v1228 = vand.u32 %v535, 4294901760
      %v1229 = vsub.f32 %v535, %v1228
      %v1230 = vand.u32 %v1229, 4294901760
      %1231 = vmatmul.mubr.f32.gmra.mrb[0].mxu0 %v1230
      %v1232 = vpop.f32.mrb[0].mxu0
      %v1233 = vadd.f32 %v1060, %v1232
      %v1234 = vpop.f32.mrb[0].mxu0
      %1235 = vdwg.mxu0
      %1236 = vmatprep.subr.mxu0 0.0
      %v1237 = vand.u32 %v487, 4294901760
      %v1238 = vsub.f32 %v487, %v1237
      %v1239 = vand.u32 %v1238, 4294901760
      %1240 = vmatpush1.msra.mxu0 %v1239
      %1241 = vmatprep.subr.mxu0 0.0
      %v1242 = vand.u32 %v488, 4294901760
      %v1243 = vsub.f32 %v488, %v1242
      %v1244 = vand.u32 %v1243, 4294901760
      %1245 = vmatpush1.msra.mxu0 %v1244
      %1246 = vmatprep.subr.mxu0 0.0
      %v1247 = vand.u32 %v489, 4294901760
      %v1248 = vsub.f32 %v489, %v1247
      %v1249 = vand.u32 %v1248, 4294901760
      %1250 = vmatpush1.msra.mxu0 %v1249
      %1251 = vmatprep.subr.mxu0 0.0
      %v1252 = vand.u32 %v490, 4294901760
      %v1253 = vsub.f32 %v490, %v1252
      %v1254 = vand.u32 %v1253, 4294901760
      %1255 = vmatpush1.msra.mxu0 %v1254
      %1256 = vmatprep.subr.mxu0 0.0
      %1257 = vmatpush1.msra.mxu0 0.0
      %1258 = vmatprep.subr.mxu0 0.0
      %1259 = vmatpush1.msra.mxu0 0.0
      %1260 = vmatprep.subr.mxu0 0.0
      %1261 = vmatpush1.msra.mxu0 0.0
      %1262 = vmatprep.subr.mxu0 0.0
      %1263 = vmatpush1.msra.mxu0 0.0
      %1264 = vmatprep.subr.mxu0 0.0
      %1265 = vmatpush1.msra.mxu0 0.0
      %1266 = vmatprep.subr.mxu0 0.0
      %1267 = vmatpush1.msra.mxu0 0.0
      %1268 = vmatprep.subr.mxu0 0.0
      %1269 = vmatpush1.msra.mxu0 0.0
      %1270 = vmatprep.subr.mxu0 0.0
      %1271 = vmatpush1.msra.mxu0 0.0
      %1272 = vmatprep.subr.mxu0 0.0
      %1273 = vmatpush1.msra.mxu0 0.0
      %1274 = vmatprep.subr.mxu0 0.0
      %1275 = vmatpush1.msra.mxu0 0.0
      %1276 = vmatprep.subr.mxu0 0.0
      %1277 = vmatpush1.msra.mxu0 0.0
      %1278 = vmatprep.subr.mxu0 0.0
      %1279 = vmatpush1.msra.mxu0 0.0
      %1280 = vmatprep.subr.mxu0 0.0
      %1281 = vmatpush1.msra.mxu0 0.0
      %1282 = vmatprep.subr.mxu0 0.0
      %1283 = vmatpush1.msra.mxu0 0.0
      %1284 = vmatprep.subr.mxu0 0.0
      %1285 = vmatpush1.msra.mxu0 0.0
      %1286 = vmatprep.subr.mxu0 0.0
      %1287 = vmatpush1.msra.mxu0 0.0
      %1288 = vmatprep.subr.mxu0 0.0
      %1289 = vmatpush1.msra.mxu0 0.0
      %1290 = vmatprep.subr.mxu0 0.0
      %1291 = vmatpush1.msra.mxu0 0.0
      %1292 = vmatprep.subr.mxu0 0.0
      %1293 = vmatpush1.msra.mxu0 0.0
      %1294 = vmatprep.subr.mxu0 0.0
      %1295 = vmatpush1.msra.mxu0 0.0
      %1296 = vmatprep.subr.mxu0 0.0
      %1297 = vmatpush1.msra.mxu0 0.0
      %1298 = vmatprep.subr.mxu0 0.0
      %1299 = vmatpush1.msra.mxu0 0.0
      %1300 = vmatprep.subr.mxu0 0.0
      %1301 = vmatpush1.msra.mxu0 0.0
      %1302 = vmatprep.subr.mxu0 0.0
      %1303 = vmatpush1.msra.mxu0 0.0
      %1304 = vmatprep.subr.mxu0 0.0
      %1305 = vmatpush1.msra.mxu0 0.0
      %1306 = vmatprep.subr.mxu0 0.0
      %1307 = vmatpush1.msra.mxu0 0.0
      %1308 = vmatprep.subr.mxu0 0.0
      %1309 = vmatpush1.msra.mxu0 0.0
      %1310 = vmatprep.subr.mxu0 0.0
      %1311 = vmatpush1.msra.mxu0 0.0
      %1312 = vmatprep.mubr.f32.mxu0 0.0
      %v1313 = vand.u32 %v499, 4294901760
      %1314 = vmatmul.mubr.f32.gmra.mrb[0].mxu0 %v1313
      %v1315 = vpop.f32.mrb[0].mxu0
      %v1316 = vadd.f32 %v1137, %v1315
      %v1317 = vpop.f32.mrb[0].mxu0
      %1318 = vmatprep.mubr.f32.mxu0 0.0
      %v1319 = vand.u32 %v502, 4294901760
      %1320 = vmatmul.mubr.f32.gmra.mrb[0].mxu0 %v1319
      %v1321 = vpop.f32.mrb[0].mxu0
      %v1322 = vadd.f32 %v1145, %v1321
      %v1323 = vpop.f32.mrb[0].mxu0
      %1324 = vmatprep.mubr.f32.mxu0 0.0
      %v1325 = vand.u32 %v505, 4294901760
      %1326 = vmatmul.mubr.f32.gmra.mrb[0].mxu0 %v1325
      %v1327 = vpop.f32.mrb[0].mxu0
      %v1328 = vadd.f32 %v1153, %v1327
      %v1329 = vpop.f32.mrb[0].mxu0
      %1330 = vmatprep.mubr.f32.mxu0 0.0
      %v1331 = vand.u32 %v508, 4294901760
      %1332 = vmatmul.mubr.f32.gmra.mrb[0].mxu0 %v1331
      %v1333 = vpop.f32.mrb[0].mxu0
      %v1334 = vadd.f32 %v1161, %v1333
      %v1335 = vpop.f32.mrb[0].mxu0
      %1336 = vmatprep.mubr.f32.mxu0 0.0
      %v1337 = vand.u32 %v511, 4294901760
      %1338 = vmatmul.mubr.f32.gmra.mrb[0].mxu0 %v1337
      %v1339 = vpop.f32.mrb[0].mxu0
      %v1340 = vadd.f32 %v1169, %v1339
      %v1341 = vpop.f32.mrb[0].mxu0
      %1342 = vmatprep.mubr.f32.mxu0 0.0
      %v1343 = vand.u32 %v514, 4294901760
      %1344 = vmatmul.mubr.f32.gmra.mrb[0].mxu0 %v1343
      %v1345 = vpop.f32.mrb[0].mxu0
      %v1346 = vadd.f32 %v1177, %v1345
      %v1347 = vpop.f32.mrb[0].mxu0
      %1348 = vmatprep.mubr.f32.mxu0 0.0
      %v1349 = vand.u32 %v517, 4294901760
      %1350 = vmatmul.mubr.f32.gmra.mrb[0].mxu0 %v1349
      %v1351 = vpop.f32.mrb[0].mxu0
      %v1352 = vadd.f32 %v1185, %v1351
      %v1353 = vpop.f32.mrb[0].mxu0
      %1354 = vmatprep.mubr.f32.mxu0 0.0
      %v1355 = vand.u32 %v520, 4294901760
      %1356 = vmatmul.mubr.f32.gmra.mrb[0].mxu0 %v1355
      %v1357 = vpop.f32.mrb[0].mxu0
      %v1358 = vadd.f32 %v1193, %v1357
      %v1359 = vpop.f32.mrb[0].mxu0
      %1360 = vmatprep.mubr.f32.mxu0 0.0
      %v1361 = vand.u32 %v523, 4294901760
      %1362 = vmatmul.mubr.f32.gmra.mrb[0].mxu0 %v1361
      %v1363 = vpop.f32.mrb[0].mxu0
      %v1364 = vadd.f32 %v1201, %v1363
      %v1365 = vpop.f32.mrb[0].mxu0
      %1366 = vmatprep.mubr.f32.mxu0 0.0
      %v1367 = vand.u32 %v526, 4294901760
      %1368 = vmatmul.mubr.f32.gmra.mrb[0].mxu0 %v1367
      %v1369 = vpop.f32.mrb[0].mxu0
      %v1370 = vadd.f32 %v1209, %v1369
      %v1371 = vpop.f32.mrb[0].mxu0
      %1372 = vmatprep.mubr.f32.mxu0 0.0
      %v1373 = vand.u32 %v529, 4294901760
      %1374 = vmatmul.mubr.f32.gmra.mrb[0].mxu0 %v1373
      %v1375 = vpop.f32.mrb[0].mxu0
      %v1376 = vadd.f32 %v1217, %v1375
      %v1377 = vpop.f32.mrb[0].mxu0
      %1378 = vmatprep.mubr.f32.mxu0 0.0
      %v1379 = vand.u32 %v532, 4294901760
      %1380 = vmatmul.mubr.f32.gmra.mrb[0].mxu0 %v1379
      %v1381 = vpop.f32.mrb[0].mxu0
      %v1382 = vadd.f32 %v1225, %v1381
      %v1383 = vpop.f32.mrb[0].mxu0
      %1384 = vmatprep.mubr.f32.mxu0 0.0
      %v1385 = vand.u32 %v535, 4294901760
      %1386 = vmatmul.mubr.f32.gmra.mrb[0].mxu0 %v1385
      %v1387 = vpop.f32.mrb[0].mxu0
      %v1388 = vadd.f32 %v1233, %v1387
      %v1389 = vpop.f32.mrb[0].mxu0
      %1390 = vdwg.mxu0
      %1391 = vmatprep.subr.mxu0 0.0
      %v1392 = vand.u32 %v487, 4294901760
      %1393 = vmatpush1.msra.mxu0 %v1392
      %1394 = vmatprep.subr.mxu0 0.0
      %v1395 = vand.u32 %v488, 4294901760
      %1396 = vmatpush1.msra.mxu0 %v1395
      %1397 = vmatprep.subr.mxu0 0.0
      %v1398 = vand.u32 %v489, 4294901760
      %1399 = vmatpush1.msra.mxu0 %v1398
      %1400 = vmatprep.subr.mxu0 0.0
      %v1401 = vand.u32 %v490, 4294901760
      %1402 = vmatpush1.msra.mxu0 %v1401
      %1403 = vmatprep.subr.mxu0 0.0
      %1404 = vmatpush1.msra.mxu0 0.0
      %1405 = vmatprep.subr.mxu0 0.0
      %1406 = vmatpush1.msra.mxu0 0.0
      %1407 = vmatprep.subr.mxu0 0.0
      %1408 = vmatpush1.msra.mxu0 0.0
      %1409 = vmatprep.subr.mxu0 0.0
      %1410 = vmatpush1.msra.mxu0 0.0
      %1411 = vmatprep.subr.mxu0 0.0
      %1412 = vmatpush1.msra.mxu0 0.0
      %1413 = vmatprep.subr.mxu0 0.0
      %1414 = vmatpush1.msra.mxu0 0.0
      %1415 = vmatprep.subr.mxu0 0.0
      %1416 = vmatpush1.msra.mxu0 0.0
      %1417 = vmatprep.subr.mxu0 0.0
      %1418 = vmatpush1.msra.mxu0 0.0
      %1419 = vmatprep.subr.mxu0 0.0
      %1420 = vmatpush1.msra.mxu0 0.0
      %1421 = vmatprep.subr.mxu0 0.0
      %1422 = vmatpush1.msra.mxu0 0.0
      %1423 = vmatprep.subr.mxu0 0.0
      %1424 = vmatpush1.msra.mxu0 0.0
      %1425 = vmatprep.subr.mxu0 0.0
      %1426 = vmatpush1.msra.mxu0 0.0
      %1427 = vmatprep.subr.mxu0 0.0
      %1428 = vmatpush1.msra.mxu0 0.0
      %1429 = vmatprep.subr.mxu0 0.0
      %1430 = vmatpush1.msra.mxu0 0.0
      %1431 = vmatprep.subr.mxu0 0.0
      %1432 = vmatpush1.msra.mxu0 0.0
      %1433 = vmatprep.subr.mxu0 0.0
      %1434 = vmatpush1.msra.mxu0 0.0
      %1435 = vmatprep.subr.mxu0 0.0
      %1436 = vmatpush1.msra.mxu0 0.0
      %1437 = vmatprep.subr.mxu0 0.0
      %1438 = vmatpush1.msra.mxu0 0.0
      %1439 = vmatprep.subr.mxu0 0.0
      %1440 = vmatpush1.msra.mxu0 0.0
      %1441 = vmatprep.subr.mxu0 0.0
      %1442 = vmatpush1.msra.mxu0 0.0
      %1443 = vmatprep.subr.mxu0 0.0
      %1444 = vmatpush1.msra.mxu0 0.0
      %1445 = vmatprep.subr.mxu0 0.0
      %1446 = vmatpush1.msra.mxu0 0.0
      %1447 = vmatprep.subr.mxu0 0.0
      %1448 = vmatpush1.msra.mxu0 0.0
      %1449 = vmatprep.subr.mxu0 0.0
      %1450 = vmatpush1.msra.mxu0 0.0
      %1451 = vmatprep.subr.mxu0 0.0
      %1452 = vmatpush1.msra.mxu0 0.0
      %1453 = vmatprep.subr.mxu0 0.0
      %1454 = vmatpush1.msra.mxu0 0.0
      %1455 = vmatprep.subr.mxu0 0.0
      %1456 = vmatpush1.msra.mxu0 0.0
      %1457 = vmatprep.subr.mxu0 0.0
      %1458 = vmatpush1.msra.mxu0 0.0
      %1459 = vmatprep.mubr.f32.mxu0 0.0
      %v1460 = vand.u32 %v499, 4294901760
      %1461 = vmatmul.mubr.f32.gmra.mrb[0].mxu0 %v1460
      %v1462 = vpop.f32.mrb[0].mxu0
      %v1463 = vadd.f32 %v1316, %v1462
      %v1464 = vpop.f32.mrb[0].mxu0
      %1465 = vmatprep.mubr.f32.mxu0 0.0
      %v1466 = vand.u32 %v502, 4294901760
      %1467 = vmatmul.mubr.f32.gmra.mrb[0].mxu0 %v1466
      %v1468 = vpop.f32.mrb[0].mxu0
      %v1469 = vadd.f32 %v1322, %v1468
      %v1470 = vpop.f32.mrb[0].mxu0
      %1471 = vmatprep.mubr.f32.mxu0 0.0
      %v1472 = vand.u32 %v505, 4294901760
      %1473 = vmatmul.mubr.f32.gmra.mrb[0].mxu0 %v1472
      %v1474 = vpop.f32.mrb[0].mxu0
      %v1475 = vadd.f32 %v1328, %v1474
      %v1476 = vpop.f32.mrb[0].mxu0
      %1477 = vmatprep.mubr.f32.mxu0 0.0
      %v1478 = vand.u32 %v508, 4294901760
      %1479 = vmatmul.mubr.f32.gmra.mrb[0].mxu0 %v1478
      %v1480 = vpop.f32.mrb[0].mxu0
      %v1481 = vadd.f32 %v1334, %v1480
      %v1482 = vpop.f32.mrb[0].mxu0
      %1483 = vmatprep.mubr.f32.mxu0 0.0
      %v1484 = vand.u32 %v511, 4294901760
      %1485 = vmatmul.mubr.f32.gmra.mrb[0].mxu0 %v1484
      %v1486 = vpop.f32.mrb[0].mxu0
      %v1487 = vadd.f32 %v1340, %v1486
      %v1488 = vpop.f32.mrb[0].mxu0
      %1489 = vmatprep.mubr.f32.mxu0 0.0
      %v1490 = vand.u32 %v514, 4294901760
      %1491 = vmatmul.mubr.f32.gmra.mrb[0].mxu0 %v1490
      %v1492 = vpop.f32.mrb[0].mxu0
      %v1493 = vadd.f32 %v1346, %v1492
      %v1494 = vpop.f32.mrb[0].mxu0
      %1495 = vmatprep.mubr.f32.mxu0 0.0
      %v1496 = vand.u32 %v517, 4294901760
      %1497 = vmatmul.mubr.f32.gmra.mrb[0].mxu0 %v1496
      %v1498 = vpop.f32.mrb[0].mxu0
      %v1499 = vadd.f32 %v1352, %v1498
      %v1500 = vpop.f32.mrb[0].mxu0
      %1501 = vmatprep.mubr.f32.mxu0 0.0
      %v1502 = vand.u32 %v520, 4294901760
      %1503 = vmatmul.mubr.f32.gmra.mrb[0].mxu0 %v1502
      %v1504 = vpop.f32.mrb[0].mxu0
      %v1505 = vadd.f32 %v1358, %v1504
      %v1506 = vpop.f32.mrb[0].mxu0
      %1507 = vmatprep.mubr.f32.mxu0 0.0
      %v1508 = vand.u32 %v523, 4294901760
      %1509 = vmatmul.mubr.f32.gmra.mrb[0].mxu0 %v1508
      %v1510 = vpop.f32.mrb[0].mxu0
      %v1511 = vadd.f32 %v1364, %v1510
      %v1512 = vpop.f32.mrb[0].mxu0
      %1513 = vmatprep.mubr.f32.mxu0 0.0
      %v1514 = vand.u32 %v526, 4294901760
      %1515 = vmatmul.mubr.f32.gmra.mrb[0].mxu0 %v1514
      %v1516 = vpop.f32.mrb[0].mxu0
      %v1517 = vadd.f32 %v1370, %v1516
      %v1518 = vpop.f32.mrb[0].mxu0
      %1519 = vmatprep.mubr.f32.mxu0 0.0
      %v1520 = vand.u32 %v529, 4294901760
      %1521 = vmatmul.mubr.f32.gmra.mrb[0].mxu0 %v1520
      %v1522 = vpop.f32.mrb[0].mxu0
      %v1523 = vadd.f32 %v1376, %v1522
      %v1524 = vpop.f32.mrb[0].mxu0
      %1525 = vmatprep.mubr.f32.mxu0 0.0
      %v1526 = vand.u32 %v532, 4294901760
      %1527 = vmatmul.mubr.f32.gmra.mrb[0].mxu0 %v1526
      %v1528 = vpop.f32.mrb[0].mxu0
      %v1529 = vadd.f32 %v1382, %v1528
      %v1530 = vpop.f32.mrb[0].mxu0
      %1531 = vmatprep.mubr.f32.mxu0 0.0
      %v1532 = vand.u32 %v535, 4294901760
      %1533 = vmatmul.mubr.f32.gmra.mrb[0].mxu0 %v1532
      %v1534 = vpop.f32.mrb[0].mxu0
      %v1535 = vadd.f32 %v1388, %v1534
      %v1536 = vpop.f32.mrb[0].mxu0
      %1537 = vdwg.mxu0
      %v1538 = vmax.f32 %v1463, 0.0
      %v1539 = vmax.f32 %v1469, 0.0
      %v1540 = vmax.f32 %v1475, 0.0
      %v1541 = vmax.f32 %v1481, 0.0
      %v1542 = vmax.f32 %v1487, 0.0
      %v1543 = vmax.f32 %v1493, 0.0
      %v1544 = vmax.f32 %v1499, 0.0
      %v1545 = vmax.f32 %v1505, 0.0
      %v1546 = vmax.f32 %v1511, 0.0
      %v1547 = vmax.f32 %v1517, 0.0
      %v1548 = vmax.f32 %v1523, 0.0
      %v1549 = vmax.f32 %v1529, 0.0
      %v1550 = vmax.f32 %v1535, 0.0
      %v1551 = vld [vmem:[%s4] sm:$0x1]
      %v1553 = vlaneseq
      %v1554 = vshrl.u32 %v1553, 7
      %v1555 = vsub.s32 0, %v1554
      %v1556 = vrot.slane %v1551, %v1555
      %v1558 = vmul.f32 %v1538, %v1556
      %v1559 = vmul.f32 %v1539, %v1556
      %v1560 = vmul.f32 %v1540, %v1556
      %v1561 = vmul.f32 %v1541, %v1556
      %v1562 = vmul.f32 %v1542, %v1556
      %v1563 = vmul.f32 %v1543, %v1556
      %v1564 = vmul.f32 %v1544, %v1556
      %v1565 = vmul.f32 %v1545, %v1556
      %v1566 = vmul.f32 %v1546, %v1556
      %v1567 = vmul.f32 %v1547, %v1556
      %v1568 = vmul.f32 %v1548, %v1556
      %v1569 = vmul.f32 %v1549, %v1556
      %v1570 = vmul.f32 %v1550, %v1556
      %vm1571 = vcmask 130048
      %v1572 = vsel %vm1571, %v1558, 0.0
      %1573 = vadd.xlane.f32.xlu0 %v1572
      %v1574 = vpop.xlane.xlu0 %1573
      %v1575 = vsel %vm1571, %v1559, 0.0
      %1576 = vadd.xlane.f32.xlu0 %v1575
      %v1577 = vpop.xlane.xlu0 %1576
      %v1578 = vsel %vm1571, %v1560, 0.0
      %1579 = vadd.xlane.f32.xlu0 %v1578
      %v1580 = vpop.xlane.xlu0 %1579
      %v1581 = vsel %vm1571, %v1561, 0.0
      %1582 = vadd.xlane.f32.xlu0 %v1581
      %v1583 = vpop.xlane.xlu0 %1582
      %v1584 = vsel %vm1571, %v1562, 0.0
      %1585 = vadd.xlane.f32.xlu0 %v1584
      %v1586 = vpop.xlane.xlu0 %1585
      %v1587 = vsel %vm1571, %v1563, 0.0
      %1588 = vadd.xlane.f32.xlu0 %v1587
      %v1589 = vpop.xlane.xlu0 %1588
      %v1590 = vsel %vm1571, %v1564, 0.0
      %1591 = vadd.xlane.f32.xlu0 %v1590
      %v1592 = vpop.xlane.xlu0 %1591
      %v1593 = vsel %vm1571, %v1565, 0.0
      %1594 = vadd.xlane.f32.xlu0 %v1593
      %v1595 = vpop.xlane.xlu0 %1594
      %v1596 = vsel %vm1571, %v1566, 0.0
      %1597 = vadd.xlane.f32.xlu0 %v1596
      %v1598 = vpop.xlane.xlu0 %1597
      %v1599 = vsel %vm1571, %v1567, 0.0
      %1600 = vadd.xlane.f32.xlu0 %v1599
      %v1601 = vpop.xlane.xlu0 %1600
      %v1602 = vsel %vm1571, %v1568, 0.0
      %1603 = vadd.xlane.f32.xlu0 %v1602
      %v1604 = vpop.xlane.xlu0 %1603
      %v1605 = vsel %vm1571, %v1569, 0.0
      %1606 = vadd.xlane.f32.xlu0 %v1605
      %v1607 = vpop.xlane.xlu0 %1606
      %v1608 = vsel %vm1571, %v1570, 0.0
      %1609 = vadd.xlane.f32.xlu0 %v1608
      %v1610 = vpop.xlane.xlu0 %1609
      %s1611 = sld [smem:[#allocation2]]
      %v1612 = vstv %s1611
      %v1613 = vadd.f32 %v1574, %v1612
      %v1614 = vadd.f32 %v1577, %v1612
      %v1615 = vadd.f32 %v1580, %v1612
      %v1616 = vadd.f32 %v1583, %v1612
      %v1617 = vadd.f32 %v1586, %v1612
      %v1618 = vadd.f32 %v1589, %v1612
      %v1619 = vadd.f32 %v1592, %v1612
      %v1620 = vadd.f32 %v1595, %v1612
      %v1621 = vadd.f32 %v1598, %v1612
      %v1622 = vadd.f32 %v1601, %v1612
      %v1623 = vadd.f32 %v1604, %v1612
      %v1624 = vadd.f32 %v1607, %v1612
      %v1625 = vadd.f32 %v1610, %v1612
      %v1626 = vxor.u32 %v1613, 2147483648
      %v1627 = vxor.u32 %v1614, 2147483648
      %v1628 = vxor.u32 %v1615, 2147483648
      %v1629 = vxor.u32 %v1616, 2147483648
      %v1630 = vxor.u32 %v1617, 2147483648
      %v1631 = vxor.u32 %v1618, 2147483648
      %v1632 = vxor.u32 %v1619, 2147483648
      %v1633 = vxor.u32 %v1620, 2147483648
      %v1634 = vxor.u32 %v1621, 2147483648
      %v1635 = vxor.u32 %v1622, 2147483648
      %v1636 = vxor.u32 %v1623, 2147483648
      %v1637 = vxor.u32 %v1624, 2147483648
      %v1638 = vxor.u32 %v1625, 2147483648
      %v1639 = vmul.f32 %v1626, 1.442695
      %v1640 = vpow.pop %v1639
      %v1641 = vmul.f32 %v1627, 1.442695
      %v1642 = vpow.pop %v1641
      %v1643 = vmul.f32 %v1628, 1.442695
      %v1644 = vpow.pop %v1643
      %v1645 = vmul.f32 %v1629, 1.442695
      %v1646 = vpow.pop %v1645
      %v1647 = vmul.f32 %v1630, 1.442695
      %v1648 = vpow.pop %v1647
      %v1649 = vmul.f32 %v1631, 1.442695
      %v1650 = vpow.pop %v1649
      %v1651 = vmul.f32 %v1632, 1.442695
      %v1652 = vpow.pop %v1651
      %v1653 = vmul.f32 %v1633, 1.442695
      %v1654 = vpow.pop %v1653
      %v1655 = vmul.f32 %v1634, 1.442695
      %v1656 = vpow.pop %v1655
      %v1657 = vmul.f32 %v1635, 1.442695
      %v1658 = vpow.pop %v1657
      %v1659 = vmul.f32 %v1636, 1.442695
      %v1660 = vpow.pop %v1659
      %v1661 = vmul.f32 %v1637, 1.442695
      %v1662 = vpow.pop %v1661
      %v1663 = vmul.f32 %v1638, 1.442695
      %v1664 = vpow.pop %v1663
      %v1665 = vadd.f32 %v1640, 1.0
      %v1666 = vadd.f32 %v1642, 1.0
      %v1667 = vadd.f32 %v1644, 1.0
      %v1668 = vadd.f32 %v1646, 1.0
      %v1669 = vadd.f32 %v1648, 1.0
      %v1670 = vadd.f32 %v1650, 1.0
      %v1671 = vadd.f32 %v1652, 1.0
      %v1672 = vadd.f32 %v1654, 1.0
      %v1673 = vadd.f32 %v1656, 1.0
      %v1674 = vadd.f32 %v1658, 1.0
      %v1675 = vadd.f32 %v1660, 1.0
      %v1676 = vadd.f32 %v1662, 1.0
      %v1677 = vadd.f32 %v1664, 1.0
      %v1678 = vrcp.pop %v1665
      %v1679 = vmul.f32 1.0, %v1678
      %v1680 = vrcp.pop %v1666
      %v1681 = vmul.f32 1.0, %v1680
      %v1682 = vrcp.pop %v1667
      %v1683 = vmul.f32 1.0, %v1682
      %v1684 = vrcp.pop %v1668
      %v1685 = vmul.f32 1.0, %v1684
      %v1686 = vrcp.pop %v1669
      %v1687 = vmul.f32 1.0, %v1686
      %v1688 = vrcp.pop %v1670
      %v1689 = vmul.f32 1.0, %v1688
      %v1690 = vrcp.pop %v1671
      %v1691 = vmul.f32 1.0, %v1690
      %v1692 = vrcp.pop %v1672
      %v1693 = vmul.f32 1.0, %v1692
      %v1694 = vrcp.pop %v1673
      %v1695 = vmul.f32 1.0, %v1694
      %v1696 = vrcp.pop %v1674
      %v1697 = vmul.f32 1.0, %v1696
      %v1698 = vrcp.pop %v1675
      %v1699 = vmul.f32 1.0, %v1698
      %v1700 = vrcp.pop %v1676
      %v1701 = vmul.f32 1.0, %v1700
      %v1702 = vrcp.pop %v1677
      %v1703 = vmul.f32 1.0, %v1702
      %v1704 = vld [vmem:[%s270] sm:$0xf]
      %v1705 = vld [vmem:[%s270 + $0x4] sm:$0xf]
      %v1706 = vld [vmem:[%s270 + $0x8] sm:$0xf]
      %v1707 = vld [vmem:[%s270 + $0xc] sm:$0xf]
      %v1708 = vld [vmem:[%s270 + $0x10] sm:$0xf]
      %v1709 = vld [vmem:[%s270 + $0x14] sm:$0xf]
      %v1710 = vld [vmem:[%s270 + $0x18] sm:$0xf]
      %v1711 = vld [vmem:[%s270 + $0x1c] sm:$0xf]
      %v1712 = vld [vmem:[%s270 + $0x20] sm:$0xf]
      %v1713 = vld [vmem:[%s270 + $0x24] sm:$0xf]
      %v1714 = vld [vmem:[%s270 + $0x28] sm:$0xf]
      %v1715 = vld [vmem:[%s270 + $0x2c] sm:$0xf]
      %v1716 = vld [vmem:[%s270 + $0x30] sm:$0xf]
      %v1717 = vld [vmem:[%s270 + $0x34] sm:$0xf]
      %v1718 = vld [vmem:[%s270 + $0x38] sm:$0xf]
      %v1719 = vld [vmem:[%s270 + $0x3c] sm:$0xf]
      %v1720 = vld [vmem:[%s270 + $0x40] sm:$0xf]
      %v1721 = vld [vmem:[%s270 + $0x44] sm:$0xf]
      %v1722 = vld [vmem:[%s270 + $0x48] sm:$0xf]
      %v1723 = vld [vmem:[%s270 + $0x4c] sm:$0xf]
      %v1724 = vld [vmem:[%s270 + $0x50] sm:$0xf]
      %v1725 = vld [vmem:[%s270 + $0x54] sm:$0xf]
      %v1726 = vld [vmem:[%s270 + $0x58] sm:$0xf]
      %v1727 = vld [vmem:[%s270 + $0x5c] sm:$0xf]
      %v1728 = vld [vmem:[%s270 + $0x60] sm:$0xf]
      %v1729 = vld [vmem:[%s270 + $0x64] sm:$0xf]
      %v1730 = vld [vmem:[%s270 + $0x68] sm:$0xf]
      %v1731 = vld [vmem:[%s270 + $0x6c] sm:$0xf]
      %v1732 = vld [vmem:[%s270 + $0x70] sm:$0xf]
      %v1733 = vld [vmem:[%s270 + $0x74] sm:$0xf]
      %v1734 = vld [vmem:[%s270 + $0x78] sm:$0xf]
      %v1735 = vld [vmem:[%s270 + $0x7c] sm:$0xf]
      %v1736 = vld [vmem:[%s270 + $0x80] sm:$0xf]
      %v1737 = vld [vmem:[%s270 + $0x84] sm:$0xf]
      %v1738 = vld [vmem:[%s270 + $0x88] sm:$0xf]
      %v1739 = vld [vmem:[%s270 + $0x8c] sm:$0xf]
      %v1740 = vld [vmem:[%s270 + $0x90] sm:$0xf]
      %v1741 = vld [vmem:[%s270 + $0x94] sm:$0xf]
      %v1742 = vld [vmem:[%s270 + $0x98] sm:$0xf]
      %v1743 = vld [vmem:[%s270 + $0x9c] sm:$0xf]
      %v1744 = vld [vmem:[%s270 + $0xa0] sm:$0xf]
      %v1745 = vld [vmem:[%s270 + $0xa4] sm:$0xf]
      %v1746 = vld [vmem:[%s270 + $0xa8] sm:$0xf]
      %v1747 = vld [vmem:[%s270 + $0xac] sm:$0xf]
      %v1748 = vld [vmem:[%s270 + $0xb0] sm:$0xf]
      %v1749 = vld [vmem:[%s270 + $0xb4] sm:$0xf]
      %v1750 = vld [vmem:[%s270 + $0xb8] sm:$0xf]
      %v1751 = vld [vmem:[%s270 + $0xbc] sm:$0xf]
      %v1752 = vld [vmem:[%s270 + $0xc0] sm:$0xf]
      %v1753 = vld [vmem:[%s270 + $0xc4] sm:$0xf]
      %v1754 = vld [vmem:[%s270 + $0xc8] sm:$0xf]
      %v1755 = vld [vmem:[%s270 + $0xcc] sm:$0xf]
      %v1756 = vld [vmem:[%s270 + $0xd0] sm:$0xf]
      %v1757 = vld [vmem:[%s270 + $0xd4] sm:$0xf]
      %v1758 = vld [vmem:[%s270 + $0xd8] sm:$0xf]
      %v1759 = vld [vmem:[%s270 + $0xdc] sm:$0xf]
      %v1760 = vld [vmem:[%s270 + $0xe0] sm:$0xf]
      %v1761 = vld [vmem:[%s270 + $0xe4] sm:$0xf]
      %v1762 = vld [vmem:[%s270 + $0xe8] sm:$0xf]
      %v1763 = vld [vmem:[%s270 + $0xec] sm:$0xf]
      %v1764 = vld [vmem:[%s270 + $0xf0] sm:$0xf]
      %v1765 = vld [vmem:[%s270 + $0xf4] sm:$0xf]
      %v1766 = vld [vmem:[%s270 + $0xf8] sm:$0xf]
      %v1767 = vld [vmem:[%s270 + $0xfc] sm:$0xf]
      %v1768 = vld [vmem:[%s270 + $0x100] sm:$0xf]
      %v1769 = vld [vmem:[%s270 + $0x104] sm:$0xf]
      %v1770 = vld [vmem:[%s270 + $0x108] sm:$0xf]
      %v1771 = vld [vmem:[%s270 + $0x10c] sm:$0xf]
      %v1772 = vld [vmem:[%s270 + $0x110] sm:$0xf]
      %v1773 = vld [vmem:[%s270 + $0x114] sm:$0xf]
      %v1774 = vld [vmem:[%s270 + $0x118] sm:$0xf]
      %v1775 = vld [vmem:[%s270 + $0x11c] sm:$0xf]
      %v1776 = vld [vmem:[%s270 + $0x120] sm:$0xf]
      %v1777 = vld [vmem:[%s270 + $0x124] sm:$0xf]
      %v1778 = vld [vmem:[%s270 + $0x128] sm:$0xf]
      %v1779 = vld [vmem:[%s270 + $0x12c] sm:$0xf]
      %v1780 = vld [vmem:[%s270 + $0x130] sm:$0xf]
      %v1781 = vld [vmem:[%s270 + $0x134] sm:$0xf]
      %v1782 = vld [vmem:[%s270 + $0x138] sm:$0xf]
      %v1783 = vld [vmem:[%s270 + $0x13c] sm:$0xf]
      %v1784 = vld [vmem:[%s270 + $0x140] sm:$0xf]
      %v1785 = vld [vmem:[%s270 + $0x144] sm:$0xf]
      %v1786 = vld [vmem:[%s270 + $0x148] sm:$0xf]
      %v1787 = vld [vmem:[%s270 + $0x14c] sm:$0xf]
      %v1788 = vld [vmem:[%s270 + $0x150] sm:$0xf]
      %v1789 = vld [vmem:[%s270 + $0x154] sm:$0xf]
      %v1790 = vld [vmem:[%s270 + $0x158] sm:$0xf]
      %v1791 = vld [vmem:[%s270 + $0x15c] sm:$0xf]
      %v1792 = vld [vmem:[%s270 + $0x160] sm:$0xf]
      %v1793 = vld [vmem:[%s270 + $0x164] sm:$0xf]
      %v1794 = vld [vmem:[%s270 + $0x168] sm:$0xf]
      %v1795 = vld [vmem:[%s270 + $0x16c] sm:$0xf]
      %v1796 = vld [vmem:[%s270 + $0x170] sm:$0xf]
      %v1797 = vld [vmem:[%s270 + $0x174] sm:$0xf]
      %v1798 = vld [vmem:[%s270 + $0x178] sm:$0xf]
      %v1799 = vld [vmem:[%s270 + $0x17c] sm:$0xf]
      %v1800 = vld [vmem:[%s270 + $0x180] sm:$0xf]
      %v1801 = vld [vmem:[%s270 + $0x184] sm:$0xf]
      %v1802 = vld [vmem:[%s270 + $0x188] sm:$0xf]
      %v1803 = vld [vmem:[%s270 + $0x18c] sm:$0xf]
      %v1804 = vld [vmem:[%s270 + $0x190] sm:$0xf]
      %v1805 = vld [vmem:[%s270 + $0x194] sm:$0xf]
      %v1806 = vld [vmem:[%s270 + $0x198] sm:$0xf]
      %v1807 = vld [vmem:[%s270 + $0x19c] sm:$0xf]
      %v1808 = vand.u32 2147483647, %v1704
      %v1809 = vand.u32 2147483647, %v1705
      %v1810 = vand.u32 2147483647, %v1706
      %v1811 = vand.u32 2147483647, %v1707
      %v1812 = vand.u32 2147483647, %v1708
      %v1813 = vand.u32 2147483647, %v1709
      %v1814 = vand.u32 2147483647, %v1710
      %v1815 = vand.u32 2147483647, %v1711
      %v1816 = vand.u32 2147483647, %v1712
      %v1817 = vand.u32 2147483647, %v1713
      %v1818 = vand.u32 2147483647, %v1714
      %v1819 = vand.u32 2147483647, %v1715
      %v1820 = vand.u32 2147483647, %v1716
      %v1821 = vand.u32 2147483647, %v1717
      %v1822 = vand.u32 2147483647, %v1718
      %v1823 = vand.u32 2147483647, %v1719
      %v1824 = vand.u32 2147483647, %v1720
      %v1825 = vand.u32 2147483647, %v1721
      %v1826 = vand.u32 2147483647, %v1722
      %v1827 = vand.u32 2147483647, %v1723
      %v1828 = vand.u32 2147483647, %v1724
      %v1829 = vand.u32 2147483647, %v1725
      %v1830 = vand.u32 2147483647, %v1726
      %v1831 = vand.u32 2147483647, %v1727
      %v1832 = vand.u32 2147483647, %v1728
      %v1833 = vand.u32 2147483647, %v1729
      %v1834 = vand.u32 2147483647, %v1730
      %v1835 = vand.u32 2147483647, %v1731
      %v1836 = vand.u32 2147483647, %v1732
      %v1837 = vand.u32 2147483647, %v1733
      %v1838 = vand.u32 2147483647, %v1734
      %v1839 = vand.u32 2147483647, %v1735
      %v1840 = vand.u32 2147483647, %v1736
      %v1841 = vand.u32 2147483647, %v1737
      %v1842 = vand.u32 2147483647, %v1738
      %v1843 = vand.u32 2147483647, %v1739
      %v1844 = vand.u32 2147483647, %v1740
      %v1845 = vand.u32 2147483647, %v1741
      %v1846 = vand.u32 2147483647, %v1742
      %v1847 = vand.u32 2147483647, %v1743
      %v1848 = vand.u32 2147483647, %v1744
      %v1849 = vand.u32 2147483647, %v1745
      %v1850 = vand.u32 2147483647, %v1746
      %v1851 = vand.u32 2147483647, %v1747
      %v1852 = vand.u32 2147483647, %v1748
      %v1853 = vand.u32 2147483647, %v1749
      %v1854 = vand.u32 2147483647, %v1750
      %v1855 = vand.u32 2147483647, %v1751
      %v1856 = vand.u32 2147483647, %v1752
      %v1857 = vand.u32 2147483647, %v1753
      %v1858 = vand.u32 2147483647, %v1754
      %v1859 = vand.u32 2147483647, %v1755
      %v1860 = vand.u32 2147483647, %v1756
      %v1861 = vand.u32 2147483647, %v1757
      %v1862 = vand.u32 2147483647, %v1758
      %v1863 = vand.u32 2147483647, %v1759
      %v1864 = vand.u32 2147483647, %v1760
      %v1865 = vand.u32 2147483647, %v1761
      %v1866 = vand.u32 2147483647, %v1762
      %v1867 = vand.u32 2147483647, %v1763
      %v1868 = vand.u32 2147483647, %v1764
      %v1869 = vand.u32 2147483647, %v1765
      %v1870 = vand.u32 2147483647, %v1766
      %v1871 = vand.u32 2147483647, %v1767
      %v1872 = vand.u32 2147483647, %v1768
      %v1873 = vand.u32 2147483647, %v1769
      %v1874 = vand.u32 2147483647, %v1770
      %v1875 = vand.u32 2147483647, %v1771
      %v1876 = vand.u32 2147483647, %v1772
      %v1877 = vand.u32 2147483647, %v1773
      %v1878 = vand.u32 2147483647, %v1774
      %v1879 = vand.u32 2147483647, %v1775
      %v1880 = vand.u32 2147483647, %v1776
      %v1881 = vand.u32 2147483647, %v1777
      %v1882 = vand.u32 2147483647, %v1778
      %v1883 = vand.u32 2147483647, %v1779
      %v1884 = vand.u32 2147483647, %v1780
      %v1885 = vand.u32 2147483647, %v1781
      %v1886 = vand.u32 2147483647, %v1782
      %v1887 = vand.u32 2147483647, %v1783
      %v1888 = vand.u32 2147483647, %v1784
      %v1889 = vand.u32 2147483647, %v1785
      %v1890 = vand.u32 2147483647, %v1786
      %v1891 = vand.u32 2147483647, %v1787
      %v1892 = vand.u32 2147483647, %v1788
      %v1893 = vand.u32 2147483647, %v1789
      %v1894 = vand.u32 2147483647, %v1790
      %v1895 = vand.u32 2147483647, %v1791
      %v1896 = vand.u32 2147483647, %v1792
      %v1897 = vand.u32 2147483647, %v1793
      %v1898 = vand.u32 2147483647, %v1794
      %v1899 = vand.u32 2147483647, %v1795
      %v1900 = vand.u32 2147483647, %v1796
      %v1901 = vand.u32 2147483647, %v1797
      %v1902 = vand.u32 2147483647, %v1798
      %v1903 = vand.u32 2147483647, %v1799
      %v1904 = vand.u32 2147483647, %v1800
      %v1905 = vand.u32 2147483647, %v1801
      %v1906 = vand.u32 2147483647, %v1802
      %v1907 = vand.u32 2147483647, %v1803
      %v1908 = vand.u32 2147483647, %v1804
      %v1909 = vand.u32 2147483647, %v1805
      %v1910 = vand.u32 2147483647, %v1806
      %v1911 = vand.u32 2147483647, %v1807
      %vm1912 = vcmask 257024
      %v1913 = vsel %vm1912, %v1808, 0.0
      %1914 = vadd.xlane.f32.xlu0 %v1913
      %v1915 = vpop.xlane.xlu0 %1914
      %v1916 = vsel %vm1912, %v1809, 0.0
      %1917 = vadd.xlane.f32.xlu0 %v1916
      %v1918 = vpop.xlane.xlu0 %1917
      %v1919 = vsel %vm1912, %v1810, 0.0
      %1920 = vadd.xlane.f32.xlu0 %v1919
      %v1921 = vpop.xlane.xlu0 %1920
      %v1922 = vsel %vm1912, %v1811, 0.0
      %1923 = vadd.xlane.f32.xlu0 %v1922
      %v1924 = vpop.xlane.xlu0 %1923
      %v1925 = vsel %vm1912, %v1812, 0.0
      %1926 = vadd.xlane.f32.xlu0 %v1925
      %v1927 = vpop.xlane.xlu0 %1926
      %v1928 = vsel %vm1912, %v1813, 0.0
      %1929 = vadd.xlane.f32.xlu0 %v1928
      %v1930 = vpop.xlane.xlu0 %1929
      %v1931 = vsel %vm1912, %v1814, 0.0
      %1932 = vadd.xlane.f32.xlu0 %v1931
      %v1933 = vpop.xlane.xlu0 %1932
      %v1934 = vsel %vm1912, %v1815, 0.0
      %1935 = vadd.xlane.f32.xlu0 %v1934
      %v1936 = vpop.xlane.xlu0 %1935
      %v1937 = vsel %vm1912, %v1816, 0.0
      %1938 = vadd.xlane.f32.xlu0 %v1937
      %v1939 = vpop.xlane.xlu0 %1938
      %v1940 = vsel %vm1912, %v1817, 0.0
      %1941 = vadd.xlane.f32.xlu0 %v1940
      %v1942 = vpop.xlane.xlu0 %1941
      %v1943 = vsel %vm1912, %v1818, 0.0
      %1944 = vadd.xlane.f32.xlu0 %v1943
      %v1945 = vpop.xlane.xlu0 %1944
      %v1946 = vsel %vm1912, %v1819, 0.0
      %1947 = vadd.xlane.f32.xlu0 %v1946
      %v1948 = vpop.xlane.xlu0 %1947
      %v1949 = vsel %vm1912, %v1820, 0.0
      %1950 = vadd.xlane.f32.xlu0 %v1949
      %v1951 = vpop.xlane.xlu0 %1950
      %v1952 = vsel %vm1912, %v1821, 0.0
      %1953 = vadd.xlane.f32.xlu0 %v1952
      %v1954 = vpop.xlane.xlu0 %1953
      %v1955 = vsel %vm1912, %v1822, 0.0
      %1956 = vadd.xlane.f32.xlu0 %v1955
      %v1957 = vpop.xlane.xlu0 %1956
      %v1958 = vsel %vm1912, %v1823, 0.0
      %1959 = vadd.xlane.f32.xlu0 %v1958
      %v1960 = vpop.xlane.xlu0 %1959
      %v1961 = vsel %vm1912, %v1824, 0.0
      %1962 = vadd.xlane.f32.xlu0 %v1961
      %v1963 = vpop.xlane.xlu0 %1962
      %v1964 = vsel %vm1912, %v1825, 0.0
      %1965 = vadd.xlane.f32.xlu0 %v1964
      %v1966 = vpop.xlane.xlu0 %1965
      %v1967 = vsel %vm1912, %v1826, 0.0
      %1968 = vadd.xlane.f32.xlu0 %v1967
      %v1969 = vpop.xlane.xlu0 %1968
      %v1970 = vsel %vm1912, %v1827, 0.0
      %1971 = vadd.xlane.f32.xlu0 %v1970
      %v1972 = vpop.xlane.xlu0 %1971
      %v1973 = vsel %vm1912, %v1828, 0.0
      %1974 = vadd.xlane.f32.xlu0 %v1973
      %v1975 = vpop.xlane.xlu0 %1974
      %v1976 = vsel %vm1912, %v1829, 0.0
      %1977 = vadd.xlane.f32.xlu0 %v1976
      %v1978 = vpop.xlane.xlu0 %1977
      %v1979 = vsel %vm1912, %v1830, 0.0
      %1980 = vadd.xlane.f32.xlu0 %v1979
      %v1981 = vpop.xlane.xlu0 %1980
      %v1982 = vsel %vm1912, %v1831, 0.0
      %1983 = vadd.xlane.f32.xlu0 %v1982
      %v1984 = vpop.xlane.xlu0 %1983
      %v1985 = vsel %vm1912, %v1832, 0.0
      %1986 = vadd.xlane.f32.xlu0 %v1985
      %v1987 = vpop.xlane.xlu0 %1986
      %v1988 = vsel %vm1912, %v1833, 0.0
      %1989 = vadd.xlane.f32.xlu0 %v1988
      %v1990 = vpop.xlane.xlu0 %1989
      %v1991 = vsel %vm1912, %v1834, 0.0
      %1992 = vadd.xlane.f32.xlu0 %v1991
      %v1993 = vpop.xlane.xlu0 %1992
      %v1994 = vsel %vm1912, %v1835, 0.0
      %1995 = vadd.xlane.f32.xlu0 %v1994
      %v1996 = vpop.xlane.xlu0 %1995
      %v1997 = vsel %vm1912, %v1836, 0.0
      %1998 = vadd.xlane.f32.xlu0 %v1997
      %v1999 = vpop.xlane.xlu0 %1998
      %v2000 = vsel %vm1912, %v1837, 0.0
      %2001 = vadd.xlane.f32.xlu0 %v2000
      %v2002 = vpop.xlane.xlu0 %2001
      %v2003 = vsel %vm1912, %v1838, 0.0
      %2004 = vadd.xlane.f32.xlu0 %v2003
      %v2005 = vpop.xlane.xlu0 %2004
      %v2006 = vsel %vm1912, %v1839, 0.0
      %2007 = vadd.xlane.f32.xlu0 %v2006
      %v2008 = vpop.xlane.xlu0 %2007
      %v2009 = vsel %vm1912, %v1840, 0.0
      %2010 = vadd.xlane.f32.xlu0 %v2009
      %v2011 = vpop.xlane.xlu0 %2010
      %v2012 = vsel %vm1912, %v1841, 0.0
      %2013 = vadd.xlane.f32.xlu0 %v2012
      %v2014 = vpop.xlane.xlu0 %2013
      %v2015 = vsel %vm1912, %v1842, 0.0
      %2016 = vadd.xlane.f32.xlu0 %v2015
      %v2017 = vpop.xlane.xlu0 %2016
      %v2018 = vsel %vm1912, %v1843, 0.0
      %2019 = vadd.xlane.f32.xlu0 %v2018
      %v2020 = vpop.xlane.xlu0 %2019
      %v2021 = vsel %vm1912, %v1844, 0.0
      %2022 = vadd.xlane.f32.xlu0 %v2021
      %v2023 = vpop.xlane.xlu0 %2022
      %v2024 = vsel %vm1912, %v1845, 0.0
      %2025 = vadd.xlane.f32.xlu0 %v2024
      %v2026 = vpop.xlane.xlu0 %2025
      %v2027 = vsel %vm1912, %v1846, 0.0
      %2028 = vadd.xlane.f32.xlu0 %v2027
      %v2029 = vpop.xlane.xlu0 %2028
      %v2030 = vsel %vm1912, %v1847, 0.0
      %2031 = vadd.xlane.f32.xlu0 %v2030
      %v2032 = vpop.xlane.xlu0 %2031
      %v2033 = vsel %vm1912, %v1848, 0.0
      %2034 = vadd.xlane.f32.xlu0 %v2033
      %v2035 = vpop.xlane.xlu0 %2034
      %v2036 = vsel %vm1912, %v1849, 0.0
      %2037 = vadd.xlane.f32.xlu0 %v2036
      %v2038 = vpop.xlane.xlu0 %2037
      %v2039 = vsel %vm1912, %v1850, 0.0
      %2040 = vadd.xlane.f32.xlu0 %v2039
      %v2041 = vpop.xlane.xlu0 %2040
      %v2042 = vsel %vm1912, %v1851, 0.0
      %2043 = vadd.xlane.f32.xlu0 %v2042
      %v2044 = vpop.xlane.xlu0 %2043
      %v2045 = vsel %vm1912, %v1852, 0.0
      %2046 = vadd.xlane.f32.xlu0 %v2045
      %v2047 = vpop.xlane.xlu0 %2046
      %v2048 = vsel %vm1912, %v1853, 0.0
      %2049 = vadd.xlane.f32.xlu0 %v2048
      %v2050 = vpop.xlane.xlu0 %2049
      %v2051 = vsel %vm1912, %v1854, 0.0
      %2052 = vadd.xlane.f32.xlu0 %v2051
      %v2053 = vpop.xlane.xlu0 %2052
      %v2054 = vsel %vm1912, %v1855, 0.0
      %2055 = vadd.xlane.f32.xlu0 %v2054
      %v2056 = vpop.xlane.xlu0 %2055
      %v2057 = vsel %vm1912, %v1856, 0.0
      %2058 = vadd.xlane.f32.xlu0 %v2057
      %v2059 = vpop.xlane.xlu0 %2058
      %v2060 = vsel %vm1912, %v1857, 0.0
      %2061 = vadd.xlane.f32.xlu0 %v2060
      %v2062 = vpop.xlane.xlu0 %2061
      %v2063 = vsel %vm1912, %v1858, 0.0
      %2064 = vadd.xlane.f32.xlu0 %v2063
      %v2065 = vpop.xlane.xlu0 %2064
      %v2066 = vsel %vm1912, %v1859, 0.0
      %2067 = vadd.xlane.f32.xlu0 %v2066
      %v2068 = vpop.xlane.xlu0 %2067
      %v2069 = vsel %vm1912, %v1860, 0.0
      %2070 = vadd.xlane.f32.xlu0 %v2069
      %v2071 = vpop.xlane.xlu0 %2070
      %v2072 = vsel %vm1912, %v1861, 0.0
      %2073 = vadd.xlane.f32.xlu0 %v2072
      %v2074 = vpop.xlane.xlu0 %2073
      %v2075 = vsel %vm1912, %v1862, 0.0
      %2076 = vadd.xlane.f32.xlu0 %v2075
      %v2077 = vpop.xlane.xlu0 %2076
      %v2078 = vsel %vm1912, %v1863, 0.0
      %2079 = vadd.xlane.f32.xlu0 %v2078
      %v2080 = vpop.xlane.xlu0 %2079
      %v2081 = vsel %vm1912, %v1864, 0.0
      %2082 = vadd.xlane.f32.xlu0 %v2081
      %v2083 = vpop.xlane.xlu0 %2082
      %v2084 = vsel %vm1912, %v1865, 0.0
      %2085 = vadd.xlane.f32.xlu0 %v2084
      %v2086 = vpop.xlane.xlu0 %2085
      %v2087 = vsel %vm1912, %v1866, 0.0
      %2088 = vadd.xlane.f32.xlu0 %v2087
      %v2089 = vpop.xlane.xlu0 %2088
      %v2090 = vsel %vm1912, %v1867, 0.0
      %2091 = vadd.xlane.f32.xlu0 %v2090
      %v2092 = vpop.xlane.xlu0 %2091
      %v2093 = vsel %vm1912, %v1868, 0.0
      %2094 = vadd.xlane.f32.xlu0 %v2093
      %v2095 = vpop.xlane.xlu0 %2094
      %v2096 = vsel %vm1912, %v1869, 0.0
      %2097 = vadd.xlane.f32.xlu0 %v2096
      %v2098 = vpop.xlane.xlu0 %2097
      %v2099 = vsel %vm1912, %v1870, 0.0
      %2100 = vadd.xlane.f32.xlu0 %v2099
      %v2101 = vpop.xlane.xlu0 %2100
      %v2102 = vsel %vm1912, %v1871, 0.0
      %2103 = vadd.xlane.f32.xlu0 %v2102
      %v2104 = vpop.xlane.xlu0 %2103
      %v2105 = vsel %vm1912, %v1872, 0.0
      %2106 = vadd.xlane.f32.xlu0 %v2105
      %v2107 = vpop.xlane.xlu0 %2106
      %v2108 = vsel %vm1912, %v1873, 0.0
      %2109 = vadd.xlane.f32.xlu0 %v2108
      %v2110 = vpop.xlane.xlu0 %2109
      %v2111 = vsel %vm1912, %v1874, 0.0
      %2112 = vadd.xlane.f32.xlu0 %v2111
      %v2113 = vpop.xlane.xlu0 %2112
      %v2114 = vsel %vm1912, %v1875, 0.0
      %2115 = vadd.xlane.f32.xlu0 %v2114
      %v2116 = vpop.xlane.xlu0 %2115
      %v2117 = vsel %vm1912, %v1876, 0.0
      %2118 = vadd.xlane.f32.xlu0 %v2117
      %v2119 = vpop.xlane.xlu0 %2118
      %v2120 = vsel %vm1912, %v1877, 0.0
      %2121 = vadd.xlane.f32.xlu0 %v2120
      %v2122 = vpop.xlane.xlu0 %2121
      %v2123 = vsel %vm1912, %v1878, 0.0
      %2124 = vadd.xlane.f32.xlu0 %v2123
      %v2125 = vpop.xlane.xlu0 %2124
      %v2126 = vsel %vm1912, %v1879, 0.0
      %2127 = vadd.xlane.f32.xlu0 %v2126
      %v2128 = vpop.xlane.xlu0 %2127
      %v2129 = vsel %vm1912, %v1880, 0.0
      %2130 = vadd.xlane.f32.xlu0 %v2129
      %v2131 = vpop.xlane.xlu0 %2130
      %v2132 = vsel %vm1912, %v1881, 0.0
      %2133 = vadd.xlane.f32.xlu0 %v2132
      %v2134 = vpop.xlane.xlu0 %2133
      %v2135 = vsel %vm1912, %v1882, 0.0
      %2136 = vadd.xlane.f32.xlu0 %v2135
      %v2137 = vpop.xlane.xlu0 %2136
      %v2138 = vsel %vm1912, %v1883, 0.0
      %2139 = vadd.xlane.f32.xlu0 %v2138
      %v2140 = vpop.xlane.xlu0 %2139
      %v2141 = vsel %vm1912, %v1884, 0.0
      %2142 = vadd.xlane.f32.xlu0 %v2141
      %v2143 = vpop.xlane.xlu0 %2142
      %v2144 = vsel %vm1912, %v1885, 0.0
      %2145 = vadd.xlane.f32.xlu0 %v2144
      %v2146 = vpop.xlane.xlu0 %2145
      %v2147 = vsel %vm1912, %v1886, 0.0
      %2148 = vadd.xlane.f32.xlu0 %v2147
      %v2149 = vpop.xlane.xlu0 %2148
      %v2150 = vsel %vm1912, %v1887, 0.0
      %2151 = vadd.xlane.f32.xlu0 %v2150
      %v2152 = vpop.xlane.xlu0 %2151
      %v2153 = vsel %vm1912, %v1888, 0.0
      %2154 = vadd.xlane.f32.xlu0 %v2153
      %v2155 = vpop.xlane.xlu0 %2154
      %v2156 = vsel %vm1912, %v1889, 0.0
      %2157 = vadd.xlane.f32.xlu0 %v2156
      %v2158 = vpop.xlane.xlu0 %2157
      %v2159 = vsel %vm1912, %v1890, 0.0
      %2160 = vadd.xlane.f32.xlu0 %v2159
      %v2161 = vpop.xlane.xlu0 %2160
      %v2162 = vsel %vm1912, %v1891, 0.0
      %2163 = vadd.xlane.f32.xlu0 %v2162
      %v2164 = vpop.xlane.xlu0 %2163
      %v2165 = vsel %vm1912, %v1892, 0.0
      %2166 = vadd.xlane.f32.xlu0 %v2165
      %v2167 = vpop.xlane.xlu0 %2166
      %v2168 = vsel %vm1912, %v1893, 0.0
      %2169 = vadd.xlane.f32.xlu0 %v2168
      %v2170 = vpop.xlane.xlu0 %2169
      %v2171 = vsel %vm1912, %v1894, 0.0
      %2172 = vadd.xlane.f32.xlu0 %v2171
      %v2173 = vpop.xlane.xlu0 %2172
      %v2174 = vsel %vm1912, %v1895, 0.0
      %2175 = vadd.xlane.f32.xlu0 %v2174
      %v2176 = vpop.xlane.xlu0 %2175
      %v2177 = vsel %vm1912, %v1896, 0.0
      %2178 = vadd.xlane.f32.xlu0 %v2177
      %v2179 = vpop.xlane.xlu0 %2178
      %v2180 = vsel %vm1912, %v1897, 0.0
      %2181 = vadd.xlane.f32.xlu0 %v2180
      %v2182 = vpop.xlane.xlu0 %2181
      %v2183 = vsel %vm1912, %v1898, 0.0
      %2184 = vadd.xlane.f32.xlu0 %v2183
      %v2185 = vpop.xlane.xlu0 %2184
      %v2186 = vsel %vm1912, %v1899, 0.0
      %2187 = vadd.xlane.f32.xlu0 %v2186
      %v2188 = vpop.xlane.xlu0 %2187
      %v2189 = vsel %vm1912, %v1900, 0.0
      %2190 = vadd.xlane.f32.xlu0 %v2189
      %v2191 = vpop.xlane.xlu0 %2190
      %v2192 = vsel %vm1912, %v1901, 0.0
      %2193 = vadd.xlane.f32.xlu0 %v2192
      %v2194 = vpop.xlane.xlu0 %2193
      %v2195 = vsel %vm1912, %v1902, 0.0
      %2196 = vadd.xlane.f32.xlu0 %v2195
      %v2197 = vpop.xlane.xlu0 %2196
      %v2198 = vsel %vm1912, %v1903, 0.0
      %2199 = vadd.xlane.f32.xlu0 %v2198
      %v2200 = vpop.xlane.xlu0 %2199
      %v2201 = vsel %vm1912, %v1904, 0.0
      %2202 = vadd.xlane.f32.xlu0 %v2201
      %v2203 = vpop.xlane.xlu0 %2202
      %v2204 = vsel %vm1912, %v1905, 0.0
      %2205 = vadd.xlane.f32.xlu0 %v2204
      %v2206 = vpop.xlane.xlu0 %2205
      %v2207 = vsel %vm1912, %v1906, 0.0
      %2208 = vadd.xlane.f32.xlu0 %v2207
      %v2209 = vpop.xlane.xlu0 %2208
      %v2210 = vsel %vm1912, %v1907, 0.0
      %2211 = vadd.xlane.f32.xlu0 %v2210
      %v2212 = vpop.xlane.xlu0 %2211
      %v2213 = vsel %vm1912, %v1908, 0.0
      %2214 = vadd.xlane.f32.xlu0 %v2213
      %v2215 = vpop.xlane.xlu0 %2214
      %v2216 = vsel %vm1912, %v1909, 0.0
      %2217 = vadd.xlane.f32.xlu0 %v2216
      %v2218 = vpop.xlane.xlu0 %2217
      %v2219 = vsel %vm1912, %v1910, 0.0
      %2220 = vadd.xlane.f32.xlu0 %v2219
      %v2221 = vpop.xlane.xlu0 %2220
      %v2222 = vsel %vm1912, %v1911, 0.0
      %2223 = vadd.xlane.f32.xlu0 %v2222
      %v2224 = vpop.xlane.xlu0 %2223
      %v2225 = vsub.f32 24.0, %v1915
      %v2226 = vsub.f32 24.0, %v1918
      %v2227 = vsub.f32 24.0, %v1921
      %v2228 = vsub.f32 24.0, %v1924
      %v2229 = vsub.f32 24.0, %v1927
      %v2230 = vsub.f32 24.0, %v1930
      %v2231 = vsub.f32 24.0, %v1933
      %v2232 = vsub.f32 24.0, %v1936
      %v2233 = vsub.f32 24.0, %v1939
      %v2234 = vsub.f32 24.0, %v1942
      %v2235 = vsub.f32 24.0, %v1945
      %v2236 = vsub.f32 24.0, %v1948
      %v2237 = vsub.f32 24.0, %v1951
      %v2238 = vsub.f32 24.0, %v1954
      %v2239 = vsub.f32 24.0, %v1957
      %v2240 = vsub.f32 24.0, %v1960
      %v2241 = vsub.f32 24.0, %v1963
      %v2242 = vsub.f32 24.0, %v1966
      %v2243 = vsub.f32 24.0, %v1969
      %v2244 = vsub.f32 24.0, %v1972
      %v2245 = vsub.f32 24.0, %v1975
      %v2246 = vsub.f32 24.0, %v1978
      %v2247 = vsub.f32 24.0, %v1981
      %v2248 = vsub.f32 24.0, %v1984
      %v2249 = vsub.f32 24.0, %v1987
      %v2250 = vsub.f32 24.0, %v1990
      %v2251 = vsub.f32 24.0, %v1993
      %v2252 = vsub.f32 24.0, %v1996
      %v2253 = vsub.f32 24.0, %v1999
      %v2254 = vsub.f32 24.0, %v2002
      %v2255 = vsub.f32 24.0, %v2005
      %v2256 = vsub.f32 24.0, %v2008
      %v2257 = vsub.f32 24.0, %v2011
      %v2258 = vsub.f32 24.0, %v2014
      %v2259 = vsub.f32 24.0, %v2017
      %v2260 = vsub.f32 24.0, %v2020
      %v2261 = vsub.f32 24.0, %v2023
      %v2262 = vsub.f32 24.0, %v2026
      %v2263 = vsub.f32 24.0, %v2029
      %v2264 = vsub.f32 24.0, %v2032
      %v2265 = vsub.f32 24.0, %v2035
      %v2266 = vsub.f32 24.0, %v2038
      %v2267 = vsub.f32 24.0, %v2041
      %v2268 = vsub.f32 24.0, %v2044
      %v2269 = vsub.f32 24.0, %v2047
      %v2270 = vsub.f32 24.0, %v2050
      %v2271 = vsub.f32 24.0, %v2053
      %v2272 = vsub.f32 24.0, %v2056
      %v2273 = vsub.f32 24.0, %v2059
      %v2274 = vsub.f32 24.0, %v2062
      %v2275 = vsub.f32 24.0, %v2065
      %v2276 = vsub.f32 24.0, %v2068
      %v2277 = vsub.f32 24.0, %v2071
      %v2278 = vsub.f32 24.0, %v2074
      %v2279 = vsub.f32 24.0, %v2077
      %v2280 = vsub.f32 24.0, %v2080
      %v2281 = vsub.f32 24.0, %v2083
      %v2282 = vsub.f32 24.0, %v2086
      %v2283 = vsub.f32 24.0, %v2089
      %v2284 = vsub.f32 24.0, %v2092
      %v2285 = vsub.f32 24.0, %v2095
      %v2286 = vsub.f32 24.0, %v2098
      %v2287 = vsub.f32 24.0, %v2101
      %v2288 = vsub.f32 24.0, %v2104
      %v2289 = vsub.f32 24.0, %v2107
      %v2290 = vsub.f32 24.0, %v2110
      %v2291 = vsub.f32 24.0, %v2113
      %v2292 = vsub.f32 24.0, %v2116
      %v2293 = vsub.f32 24.0, %v2119
      %v2294 = vsub.f32 24.0, %v2122
      %v2295 = vsub.f32 24.0, %v2125
      %v2296 = vsub.f32 24.0, %v2128
      %v2297 = vsub.f32 24.0, %v2131
      %v2298 = vsub.f32 24.0, %v2134
      %v2299 = vsub.f32 24.0, %v2137
      %v2300 = vsub.f32 24.0, %v2140
      %v2301 = vsub.f32 24.0, %v2143
      %v2302 = vsub.f32 24.0, %v2146
      %v2303 = vsub.f32 24.0, %v2149
      %v2304 = vsub.f32 24.0, %v2152
      %v2305 = vsub.f32 24.0, %v2155
      %v2306 = vsub.f32 24.0, %v2158
      %v2307 = vsub.f32 24.0, %v2161
      %v2308 = vsub.f32 24.0, %v2164
      %v2309 = vsub.f32 24.0, %v2167
      %v2310 = vsub.f32 24.0, %v2170
      %v2311 = vsub.f32 24.0, %v2173
      %v2312 = vsub.f32 24.0, %v2176
      %v2313 = vsub.f32 24.0, %v2179
      %v2314 = vsub.f32 24.0, %v2182
      %v2315 = vsub.f32 24.0, %v2185
      %v2316 = vsub.f32 24.0, %v2188
      %v2317 = vsub.f32 24.0, %v2191
      %v2318 = vsub.f32 24.0, %v2194
      %v2319 = vsub.f32 24.0, %v2197
      %v2320 = vsub.f32 24.0, %v2200
      %v2321 = vsub.f32 24.0, %v2203
      %v2322 = vsub.f32 24.0, %v2206
      %v2323 = vsub.f32 24.0, %v2209
      %v2324 = vsub.f32 24.0, %v2212
      %v2325 = vsub.f32 24.0, %v2215
      %v2326 = vsub.f32 24.0, %v2218
      %v2327 = vsub.f32 24.0, %v2221
      %v2328 = vsub.f32 24.0, %v2224
      %v2329 = vmin.f32 %v2225, 0.0
      %v2330 = vmin.f32 %v2226, 0.0
      %v2331 = vmin.f32 %v2227, 0.0
      %v2332 = vmin.f32 %v2228, 0.0
      %v2333 = vmin.f32 %v2229, 0.0
      %v2334 = vmin.f32 %v2230, 0.0
      %v2335 = vmin.f32 %v2231, 0.0
      %v2336 = vmin.f32 %v2232, 0.0
      %v2337 = vmin.f32 %v2233, 0.0
      %v2338 = vmin.f32 %v2234, 0.0
      %v2339 = vmin.f32 %v2235, 0.0
      %v2340 = vmin.f32 %v2236, 0.0
      %v2341 = vmin.f32 %v2237, 0.0
      %v2342 = vmin.f32 %v2238, 0.0
      %v2343 = vmin.f32 %v2239, 0.0
      %v2344 = vmin.f32 %v2240, 0.0
      %v2345 = vmin.f32 %v2241, 0.0
      %v2346 = vmin.f32 %v2242, 0.0
      %v2347 = vmin.f32 %v2243, 0.0
      %v2348 = vmin.f32 %v2244, 0.0
      %v2349 = vmin.f32 %v2245, 0.0
      %v2350 = vmin.f32 %v2246, 0.0
      %v2351 = vmin.f32 %v2247, 0.0
      %v2352 = vmin.f32 %v2248, 0.0
      %v2353 = vmin.f32 %v2249, 0.0
      %v2354 = vmin.f32 %v2250, 0.0
      %v2355 = vmin.f32 %v2251, 0.0
      %v2356 = vmin.f32 %v2252, 0.0
      %v2357 = vmin.f32 %v2253, 0.0
      %v2358 = vmin.f32 %v2254, 0.0
      %v2359 = vmin.f32 %v2255, 0.0
      %v2360 = vmin.f32 %v2256, 0.0
      %v2361 = vmin.f32 %v2257, 0.0
      %v2362 = vmin.f32 %v2258, 0.0
      %v2363 = vmin.f32 %v2259, 0.0
      %v2364 = vmin.f32 %v2260, 0.0
      %v2365 = vmin.f32 %v2261, 0.0
      %v2366 = vmin.f32 %v2262, 0.0
      %v2367 = vmin.f32 %v2263, 0.0
      %v2368 = vmin.f32 %v2264, 0.0
      %v2369 = vmin.f32 %v2265, 0.0
      %v2370 = vmin.f32 %v2266, 0.0
      %v2371 = vmin.f32 %v2267, 0.0
      %v2372 = vmin.f32 %v2268, 0.0
      %v2373 = vmin.f32 %v2269, 0.0
      %v2374 = vmin.f32 %v2270, 0.0
      %v2375 = vmin.f32 %v2271, 0.0
      %v2376 = vmin.f32 %v2272, 0.0
      %v2377 = vmin.f32 %v2273, 0.0
      %v2378 = vmin.f32 %v2274, 0.0
      %v2379 = vmin.f32 %v2275, 0.0
      %v2380 = vmin.f32 %v2276, 0.0
      %v2381 = vmin.f32 %v2277, 0.0
      %v2382 = vmin.f32 %v2278, 0.0
      %v2383 = vmin.f32 %v2279, 0.0
      %v2384 = vmin.f32 %v2280, 0.0
      %v2385 = vmin.f32 %v2281, 0.0
      %v2386 = vmin.f32 %v2282, 0.0
      %v2387 = vmin.f32 %v2283, 0.0
      %v2388 = vmin.f32 %v2284, 0.0
      %v2389 = vmin.f32 %v2285, 0.0
      %v2390 = vmin.f32 %v2286, 0.0
      %v2391 = vmin.f32 %v2287, 0.0
      %v2392 = vmin.f32 %v2288, 0.0
      %v2393 = vmin.f32 %v2289, 0.0
      %v2394 = vmin.f32 %v2290, 0.0
      %v2395 = vmin.f32 %v2291, 0.0
      %v2396 = vmin.f32 %v2292, 0.0
      %v2397 = vmin.f32 %v2293, 0.0
      %v2398 = vmin.f32 %v2294, 0.0
      %v2399 = vmin.f32 %v2295, 0.0
      %v2400 = vmin.f32 %v2296, 0.0
      %v2401 = vmin.f32 %v2297, 0.0
      %v2402 = vmin.f32 %v2298, 0.0
      %v2403 = vmin.f32 %v2299, 0.0
      %v2404 = vmin.f32 %v2300, 0.0
      %v2405 = vmin.f32 %v2301, 0.0
      %v2406 = vmin.f32 %v2302, 0.0
      %v2407 = vmin.f32 %v2303, 0.0
      %v2408 = vmin.f32 %v2304, 0.0
      %v2409 = vmin.f32 %v2305, 0.0
      %v2410 = vmin.f32 %v2306, 0.0
      %v2411 = vmin.f32 %v2307, 0.0
      %v2412 = vmin.f32 %v2308, 0.0
      %v2413 = vmin.f32 %v2309, 0.0
      %v2414 = vmin.f32 %v2310, 0.0
      %v2415 = vmin.f32 %v2311, 0.0
      %v2416 = vmin.f32 %v2312, 0.0
      %v2417 = vmin.f32 %v2313, 0.0
      %v2418 = vmin.f32 %v2314, 0.0
      %v2419 = vmin.f32 %v2315, 0.0
      %v2420 = vmin.f32 %v2316, 0.0
      %v2421 = vmin.f32 %v2317, 0.0
      %v2422 = vmin.f32 %v2318, 0.0
      %v2423 = vmin.f32 %v2319, 0.0
      %v2424 = vmin.f32 %v2320, 0.0
      %v2425 = vmin.f32 %v2321, 0.0
      %v2426 = vmin.f32 %v2322, 0.0
      %v2427 = vmin.f32 %v2323, 0.0
      %v2428 = vmin.f32 %v2324, 0.0
      %v2429 = vmin.f32 %v2325, 0.0
      %v2430 = vmin.f32 %v2326, 0.0
      %v2431 = vmin.f32 %v2327, 0.0
      %v2432 = vmin.f32 %v2328, 0.0
      %v2433 = vand.u32 2147483647, %v2225
      %v2434 = vand.u32 2147483647, %v2226
      %v2435 = vand.u32 2147483647, %v2227
      %v2436 = vand.u32 2147483647, %v2228
      %v2437 = vand.u32 2147483647, %v2229
      %v2438 = vand.u32 2147483647, %v2230
      %v2439 = vand.u32 2147483647, %v2231
      %v2440 = vand.u32 2147483647, %v2232
      %v2441 = vand.u32 2147483647, %v2233
      %v2442 = vand.u32 2147483647, %v2234
      %v2443 = vand.u32 2147483647, %v2235
      %v2444 = vand.u32 2147483647, %v2236
      %v2445 = vand.u32 2147483647, %v2237
      %v2446 = vand.u32 2147483647, %v2238
      %v2447 = vand.u32 2147483647, %v2239
      %v2448 = vand.u32 2147483647, %v2240
      %v2449 = vand.u32 2147483647, %v2241
      %v2450 = vand.u32 2147483647, %v2242
      %v2451 = vand.u32 2147483647, %v2243
      %v2452 = vand.u32 2147483647, %v2244
      %v2453 = vand.u32 2147483647, %v2245
      %v2454 = vand.u32 2147483647, %v2246
      %v2455 = vand.u32 2147483647, %v2247
      %v2456 = vand.u32 2147483647, %v2248
      %v2457 = vand.u32 2147483647, %v2249
      %v2458 = vand.u32 2147483647, %v2250
      %v2459 = vand.u32 2147483647, %v2251
      %v2460 = vand.u32 2147483647, %v2252
      %v2461 = vand.u32 2147483647, %v2253
      %v2462 = vand.u32 2147483647, %v2254
      %v2463 = vand.u32 2147483647, %v2255
      %v2464 = vand.u32 2147483647, %v2256
      %v2465 = vand.u32 2147483647, %v2257
      %v2466 = vand.u32 2147483647, %v2258
      %v2467 = vand.u32 2147483647, %v2259
      %v2468 = vand.u32 2147483647, %v2260
      %v2469 = vand.u32 2147483647, %v2261
      %v2470 = vand.u32 2147483647, %v2262
      %v2471 = vand.u32 2147483647, %v2263
      %v2472 = vand.u32 2147483647, %v2264
      %v2473 = vand.u32 2147483647, %v2265
      %v2474 = vand.u32 2147483647, %v2266
      %v2475 = vand.u32 2147483647, %v2267
      %v2476 = vand.u32 2147483647, %v2268
      %v2477 = vand.u32 2147483647, %v2269
      %v2478 = vand.u32 2147483647, %v2270
      %v2479 = vand.u32 2147483647, %v2271
      %v2480 = vand.u32 2147483647, %v2272
      %v2481 = vand.u32 2147483647, %v2273
      %v2482 = vand.u32 2147483647, %v2274
      %v2483 = vand.u32 2147483647, %v2275
      %v2484 = vand.u32 2147483647, %v2276
      %v2485 = vand.u32 2147483647, %v2277
      %v2486 = vand.u32 2147483647, %v2278
      %v2487 = vand.u32 2147483647, %v2279
      %v2488 = vand.u32 2147483647, %v2280
      %v2489 = vand.u32 2147483647, %v2281
      %v2490 = vand.u32 2147483647, %v2282
      %v2491 = vand.u32 2147483647, %v2283
      %v2492 = vand.u32 2147483647, %v2284
      %v2493 = vand.u32 2147483647, %v2285
      %v2494 = vand.u32 2147483647, %v2286
      %v2495 = vand.u32 2147483647, %v2287
      %v2496 = vand.u32 2147483647, %v2288
      %v2497 = vand.u32 2147483647, %v2289
      %v2498 = vand.u32 2147483647, %v2290
      %v2499 = vand.u32 2147483647, %v2291
      %v2500 = vand.u32 2147483647, %v2292
      %v2501 = vand.u32 2147483647, %v2293
      %v2502 = vand.u32 2147483647, %v2294
      %v2503 = vand.u32 2147483647, %v2295
      %v2504 = vand.u32 2147483647, %v2296
      %v2505 = vand.u32 2147483647, %v2297
      %v2506 = vand.u32 2147483647, %v2298
      %v2507 = vand.u32 2147483647, %v2299
      %v2508 = vand.u32 2147483647, %v2300
      %v2509 = vand.u32 2147483647, %v2301
      %v2510 = vand.u32 2147483647, %v2302
      %v2511 = vand.u32 2147483647, %v2303
      %v2512 = vand.u32 2147483647, %v2304
      %v2513 = vand.u32 2147483647, %v2305
      %v2514 = vand.u32 2147483647, %v2306
      %v2515 = vand.u32 2147483647, %v2307
      %v2516 = vand.u32 2147483647, %v2308
      %v2517 = vand.u32 2147483647, %v2309
      %v2518 = vand.u32 2147483647, %v2310
      %v2519 = vand.u32 2147483647, %v2311
      %v2520 = vand.u32 2147483647, %v2312
      %v2521 = vand.u32 2147483647, %v2313
      %v2522 = vand.u32 2147483647, %v2314
      %v2523 = vand.u32 2147483647, %v2315
      %v2524 = vand.u32 2147483647, %v2316
      %v2525 = vand.u32 2147483647, %v2317
      %v2526 = vand.u32 2147483647, %v2318
      %v2527 = vand.u32 2147483647, %v2319
      %v2528 = vand.u32 2147483647, %v2320
      %v2529 = vand.u32 2147483647, %v2321
      %v2530 = vand.u32 2147483647, %v2322
      %v2531 = vand.u32 2147483647, %v2323
      %v2532 = vand.u32 2147483647, %v2324
      %v2533 = vand.u32 2147483647, %v2325
      %v2534 = vand.u32 2147483647, %v2326
      %v2535 = vand.u32 2147483647, %v2327
      %v2536 = vand.u32 2147483647, %v2328
      %v2537 = vsub.f32 0.0, %v2433
      %v2538 = vsub.f32 0.0, %v2434
      %v2539 = vsub.f32 0.0, %v2435
      %v2540 = vsub.f32 0.0, %v2436
      %v2541 = vsub.f32 0.0, %v2437
      %v2542 = vsub.f32 0.0, %v2438
      %v2543 = vsub.f32 0.0, %v2439
      %v2544 = vsub.f32 0.0, %v2440
      %v2545 = vsub.f32 0.0, %v2441
      %v2546 = vsub.f32 0.0, %v2442
      %v2547 = vsub.f32 0.0, %v2443
      %v2548 = vsub.f32 0.0, %v2444
      %v2549 = vsub.f32 0.0, %v2445
      %v2550 = vsub.f32 0.0, %v2446
      %v2551 = vsub.f32 0.0, %v2447
      %v2552 = vsub.f32 0.0, %v2448
      %v2553 = vsub.f32 0.0, %v2449
      %v2554 = vsub.f32 0.0, %v2450
      %v2555 = vsub.f32 0.0, %v2451
      %v2556 = vsub.f32 0.0, %v2452
      %v2557 = vsub.f32 0.0, %v2453
      %v2558 = vsub.f32 0.0, %v2454
      %v2559 = vsub.f32 0.0, %v2455
      %v2560 = vsub.f32 0.0, %v2456
      %v2561 = vsub.f32 0.0, %v2457
      %v2562 = vsub.f32 0.0, %v2458
      %v2563 = vsub.f32 0.0, %v2459
      %v2564 = vsub.f32 0.0, %v2460
      %v2565 = vsub.f32 0.0, %v2461
      %v2566 = vsub.f32 0.0, %v2462
      %v2567 = vsub.f32 0.0, %v2463
      %v2568 = vsub.f32 0.0, %v2464
      %v2569 = vsub.f32 0.0, %v2465
      %v2570 = vsub.f32 0.0, %v2466
      %v2571 = vsub.f32 0.0, %v2467
      %v2572 = vsub.f32 0.0, %v2468
      %v2573 = vsub.f32 0.0, %v2469
      %v2574 = vsub.f32 0.0, %v2470
      %v2575 = vsub.f32 0.0, %v2471
      %v2576 = vsub.f32 0.0, %v2472
      %v2577 = vsub.f32 0.0, %v2473
      %v2578 = vsub.f32 0.0, %v2474
      %v2579 = vsub.f32 0.0, %v2475
      %v2580 = vsub.f32 0.0, %v2476
      %v2581 = vsub.f32 0.0, %v2477
      %v2582 = vsub.f32 0.0, %v2478
      %v2583 = vsub.f32 0.0, %v2479
      %v2584 = vsub.f32 0.0, %v2480
      %v2585 = vsub.f32 0.0, %v2481
      %v2586 = vsub.f32 0.0, %v2482
      %v2587 = vsub.f32 0.0, %v2483
      %v2588 = vsub.f32 0.0, %v2484
      %v2589 = vsub.f32 0.0, %v2485
      %v2590 = vsub.f32 0.0, %v2486
      %v2591 = vsub.f32 0.0, %v2487
      %v2592 = vsub.f32 0.0, %v2488
      %v2593 = vsub.f32 0.0, %v2489
      %v2594 = vsub.f32 0.0, %v2490
      %v2595 = vsub.f32 0.0, %v2491
      %v2596 = vsub.f32 0.0, %v2492
      %v2597 = vsub.f32 0.0, %v2493
      %v2598 = vsub.f32 0.0, %v2494
      %v2599 = vsub.f32 0.0, %v2495
      %v2600 = vsub.f32 0.0, %v2496
      %v2601 = vsub.f32 0.0, %v2497
      %v2602 = vsub.f32 0.0, %v2498
      %v2603 = vsub.f32 0.0, %v2499
      %v2604 = vsub.f32 0.0, %v2500
      %v2605 = vsub.f32 0.0, %v2501
      %v2606 = vsub.f32 0.0, %v2502
      %v2607 = vsub.f32 0.0, %v2503
      %v2608 = vsub.f32 0.0, %v2504
      %v2609 = vsub.f32 0.0, %v2505
      %v2610 = vsub.f32 0.0, %v2506
      %v2611 = vsub.f32 0.0, %v2507
      %v2612 = vsub.f32 0.0, %v2508
      %v2613 = vsub.f32 0.0, %v2509
      %v2614 = vsub.f32 0.0, %v2510
      %v2615 = vsub.f32 0.0, %v2511
      %v2616 = vsub.f32 0.0, %v2512
      %v2617 = vsub.f32 0.0, %v2513
      %v2618 = vsub.f32 0.0, %v2514
      %v2619 = vsub.f32 0.0, %v2515
      %v2620 = vsub.f32 0.0, %v2516
      %v2621 = vsub.f32 0.0, %v2517
      %v2622 = vsub.f32 0.0, %v2518
      %v2623 = vsub.f32 0.0, %v2519
      %v2624 = vsub.f32 0.0, %v2520
      %v2625 = vsub.f32 0.0, %v2521
      %v2626 = vsub.f32 0.0, %v2522
      %v2627 = vsub.f32 0.0, %v2523
      %v2628 = vsub.f32 0.0, %v2524
      %v2629 = vsub.f32 0.0, %v2525
      %v2630 = vsub.f32 0.0, %v2526
      %v2631 = vsub.f32 0.0, %v2527
      %v2632 = vsub.f32 0.0, %v2528
      %v2633 = vsub.f32 0.0, %v2529
      %v2634 = vsub.f32 0.0, %v2530
      %v2635 = vsub.f32 0.0, %v2531
      %v2636 = vsub.f32 0.0, %v2532
      %v2637 = vsub.f32 0.0, %v2533
      %v2638 = vsub.f32 0.0, %v2534
      %v2639 = vsub.f32 0.0, %v2535
      %v2640 = vsub.f32 0.0, %v2536
      %v2641 = vmul.f32 %v2537, 1.442695
      %v2642 = vpow.pop %v2641
      %v2643 = vmul.f32 %v2538, 1.442695
      %v2644 = vpow.pop %v2643
      %v2645 = vmul.f32 %v2539, 1.442695
      %v2646 = vpow.pop %v2645
      %v2647 = vmul.f32 %v2540, 1.442695
      %v2648 = vpow.pop %v2647
      %v2649 = vmul.f32 %v2541, 1.442695
      %v2650 = vpow.pop %v2649
      %v2651 = vmul.f32 %v2542, 1.442695
      %v2652 = vpow.pop %v2651
      %v2653 = vmul.f32 %v2543, 1.442695
      %v2654 = vpow.pop %v2653
      %v2655 = vmul.f32 %v2544, 1.442695
      %v2656 = vpow.pop %v2655
      %v2657 = vmul.f32 %v2545, 1.442695
      %v2658 = vpow.pop %v2657
      %v2659 = vmul.f32 %v2546, 1.442695
      %v2660 = vpow.pop %v2659
      %v2661 = vmul.f32 %v2547, 1.442695
      %v2662 = vpow.pop %v2661
      %v2663 = vmul.f32 %v2548, 1.442695
      %v2664 = vpow.pop %v2663
      %v2665 = vmul.f32 %v2549, 1.442695
      %v2666 = vpow.pop %v2665
      %v2667 = vmul.f32 %v2550, 1.442695
      %v2668 = vpow.pop %v2667
      %v2669 = vmul.f32 %v2551, 1.442695
      %v2670 = vpow.pop %v2669
      %v2671 = vmul.f32 %v2552, 1.442695
      %v2672 = vpow.pop %v2671
      %v2673 = vmul.f32 %v2553, 1.442695
      %v2674 = vpow.pop %v2673
      %v2675 = vmul.f32 %v2554, 1.442695
      %v2676 = vpow.pop %v2675
      %v2677 = vmul.f32 %v2555, 1.442695
      %v2678 = vpow.pop %v2677
      %v2679 = vmul.f32 %v2556, 1.442695
      %v2680 = vpow.pop %v2679
      %v2681 = vmul.f32 %v2557, 1.442695
      %v2682 = vpow.pop %v2681
      %v2683 = vmul.f32 %v2558, 1.442695
      %v2684 = vpow.pop %v2683
      %v2685 = vmul.f32 %v2559, 1.442695
      %v2686 = vpow.pop %v2685
      %v2687 = vmul.f32 %v2560, 1.442695
      %v2688 = vpow.pop %v2687
      %v2689 = vmul.f32 %v2561, 1.442695
      %v2690 = vpow.pop %v2689
      %v2691 = vmul.f32 %v2562, 1.442695
      %v2692 = vpow.pop %v2691
      %v2693 = vmul.f32 %v2563, 1.442695
      %v2694 = vpow.pop %v2693
      %v2695 = vmul.f32 %v2564, 1.442695
      %v2696 = vpow.pop %v2695
      %v2697 = vmul.f32 %v2565, 1.442695
      %v2698 = vpow.pop %v2697
      %v2699 = vmul.f32 %v2566, 1.442695
      %v2700 = vpow.pop %v2699
      %v2701 = vmul.f32 %v2567, 1.442695
      %v2702 = vpow.pop %v2701
      %v2703 = vmul.f32 %v2568, 1.442695
      %v2704 = vpow.pop %v2703
      %v2705 = vmul.f32 %v2569, 1.442695
      %v2706 = vpow.pop %v2705
      %v2707 = vmul.f32 %v2570, 1.442695
      %v2708 = vpow.pop %v2707
      %v2709 = vmul.f32 %v2571, 1.442695
      %v2710 = vpow.pop %v2709
      %v2711 = vmul.f32 %v2572, 1.442695
      %v2712 = vpow.pop %v2711
      %v2713 = vmul.f32 %v2573, 1.442695
      %v2714 = vpow.pop %v2713
      %v2715 = vmul.f32 %v2574, 1.442695
      %v2716 = vpow.pop %v2715
      %v2717 = vmul.f32 %v2575, 1.442695
      %v2718 = vpow.pop %v2717
      %v2719 = vmul.f32 %v2576, 1.442695
      %v2720 = vpow.pop %v2719
      %v2721 = vmul.f32 %v2577, 1.442695
      %v2722 = vpow.pop %v2721
      %v2723 = vmul.f32 %v2578, 1.442695
      %v2724 = vpow.pop %v2723
      %v2725 = vmul.f32 %v2579, 1.442695
      %v2726 = vpow.pop %v2725
      %v2727 = vmul.f32 %v2580, 1.442695
      %v2728 = vpow.pop %v2727
      %v2729 = vmul.f32 %v2581, 1.442695
      %v2730 = vpow.pop %v2729
      %v2731 = vmul.f32 %v2582, 1.442695
      %v2732 = vpow.pop %v2731
      %v2733 = vmul.f32 %v2583, 1.442695
      %v2734 = vpow.pop %v2733
      %v2735 = vmul.f32 %v2584, 1.442695
      %v2736 = vpow.pop %v2735
      %v2737 = vmul.f32 %v2585, 1.442695
      %v2738 = vpow.pop %v2737
      %v2739 = vmul.f32 %v2586, 1.442695
      %v2740 = vpow.pop %v2739
      %v2741 = vmul.f32 %v2587, 1.442695
      %v2742 = vpow.pop %v2741
      %v2743 = vmul.f32 %v2588, 1.442695
      %v2744 = vpow.pop %v2743
      %v2745 = vmul.f32 %v2589, 1.442695
      %v2746 = vpow.pop %v2745
      %v2747 = vmul.f32 %v2590, 1.442695
      %v2748 = vpow.pop %v2747
      %v2749 = vmul.f32 %v2591, 1.442695
      %v2750 = vpow.pop %v2749
      %v2751 = vmul.f32 %v2592, 1.442695
      %v2752 = vpow.pop %v2751
      %v2753 = vmul.f32 %v2593, 1.442695
      %v2754 = vpow.pop %v2753
      %v2755 = vmul.f32 %v2594, 1.442695
      %v2756 = vpow.pop %v2755
      %v2757 = vmul.f32 %v2595, 1.442695
      %v2758 = vpow.pop %v2757
      %v2759 = vmul.f32 %v2596, 1.442695
      %v2760 = vpow.pop %v2759
      %v2761 = vmul.f32 %v2597, 1.442695
      %v2762 = vpow.pop %v2761
      %v2763 = vmul.f32 %v2598, 1.442695
      %v2764 = vpow.pop %v2763
      %v2765 = vmul.f32 %v2599, 1.442695
      %v2766 = vpow.pop %v2765
      %v2767 = vmul.f32 %v2600, 1.442695
      %v2768 = vpow.pop %v2767
      %v2769 = vmul.f32 %v2601, 1.442695
      %v2770 = vpow.pop %v2769
      %v2771 = vmul.f32 %v2602, 1.442695
      %v2772 = vpow.pop %v2771
      %v2773 = vmul.f32 %v2603, 1.442695
      %v2774 = vpow.pop %v2773
      %v2775 = vmul.f32 %v2604, 1.442695
      %v2776 = vpow.pop %v2775
      %v2777 = vmul.f32 %v2605, 1.442695
      %v2778 = vpow.pop %v2777
      %v2779 = vmul.f32 %v2606, 1.442695
      %v2780 = vpow.pop %v2779
      %v2781 = vmul.f32 %v2607, 1.442695
      %v2782 = vpow.pop %v2781
      %v2783 = vmul.f32 %v2608, 1.442695
      %v2784 = vpow.pop %v2783
      %v2785 = vmul.f32 %v2609, 1.442695
      %v2786 = vpow.pop %v2785
      %v2787 = vmul.f32 %v2610, 1.442695
      %v2788 = vpow.pop %v2787
      %v2789 = vmul.f32 %v2611, 1.442695
      %v2790 = vpow.pop %v2789
      %v2791 = vmul.f32 %v2612, 1.442695
      %v2792 = vpow.pop %v2791
      %v2793 = vmul.f32 %v2613, 1.442695
      %v2794 = vpow.pop %v2793
      %v2795 = vmul.f32 %v2614, 1.442695
      %v2796 = vpow.pop %v2795
      %v2797 = vmul.f32 %v2615, 1.442695
      %v2798 = vpow.pop %v2797
      %v2799 = vmul.f32 %v2616, 1.442695
      %v2800 = vpow.pop %v2799
      %v2801 = vmul.f32 %v2617, 1.442695
      %v2802 = vpow.pop %v2801
      %v2803 = vmul.f32 %v2618, 1.442695
      %v2804 = vpow.pop %v2803
      %v2805 = vmul.f32 %v2619, 1.442695
      %v2806 = vpow.pop %v2805
      %v2807 = vmul.f32 %v2620, 1.442695
      %v2808 = vpow.pop %v2807
      %v2809 = vmul.f32 %v2621, 1.442695
      %v2810 = vpow.pop %v2809
      %v2811 = vmul.f32 %v2622, 1.442695
      %v2812 = vpow.pop %v2811
      %v2813 = vmul.f32 %v2623, 1.442695
      %v2814 = vpow.pop %v2813
      %v2815 = vmul.f32 %v2624, 1.442695
      %v2816 = vpow.pop %v2815
      %v2817 = vmul.f32 %v2625, 1.442695
      %v2818 = vpow.pop %v2817
      %v2819 = vmul.f32 %v2626, 1.442695
      %v2820 = vpow.pop %v2819
      %v2821 = vmul.f32 %v2627, 1.442695
      %v2822 = vpow.pop %v2821
      %v2823 = vmul.f32 %v2628, 1.442695
      %v2824 = vpow.pop %v2823
      %v2825 = vmul.f32 %v2629, 1.442695
      %v2826 = vpow.pop %v2825
      %v2827 = vmul.f32 %v2630, 1.442695
      %v2828 = vpow.pop %v2827
      %v2829 = vmul.f32 %v2631, 1.442695
      %v2830 = vpow.pop %v2829
      %v2831 = vmul.f32 %v2632, 1.442695
      %v2832 = vpow.pop %v2831
      %v2833 = vmul.f32 %v2633, 1.442695
      %v2834 = vpow.pop %v2833
      %v2835 = vmul.f32 %v2634, 1.442695
      %v2836 = vpow.pop %v2835
      %v2837 = vmul.f32 %v2635, 1.442695
      %v2838 = vpow.pop %v2837
      %v2839 = vmul.f32 %v2636, 1.442695
      %v2840 = vpow.pop %v2839
      %v2841 = vmul.f32 %v2637, 1.442695
      %v2842 = vpow.pop %v2841
      %v2843 = vmul.f32 %v2638, 1.442695
      %v2844 = vpow.pop %v2843
      %v2845 = vmul.f32 %v2639, 1.442695
      %v2846 = vpow.pop %v2845
      %v2847 = vmul.f32 %v2640, 1.442695
      %v2848 = vpow.pop %v2847
      %v2849 = vadd.f32 %v2642, 1.0
      %v2850 = vadd.f32 %v2644, 1.0
      %v2851 = vadd.f32 %v2646, 1.0
      %v2852 = vadd.f32 %v2648, 1.0
      %v2853 = vadd.f32 %v2650, 1.0
      %v2854 = vadd.f32 %v2652, 1.0
      %v2855 = vadd.f32 %v2654, 1.0
      %v2856 = vadd.f32 %v2656, 1.0
      %v2857 = vadd.f32 %v2658, 1.0
      %v2858 = vadd.f32 %v2660, 1.0
      %v2859 = vadd.f32 %v2662, 1.0
      %v2860 = vadd.f32 %v2664, 1.0
      %v2861 = vadd.f32 %v2666, 1.0
      %v2862 = vadd.f32 %v2668, 1.0
      %v2863 = vadd.f32 %v2670, 1.0
      %v2864 = vadd.f32 %v2672, 1.0
      %v2865 = vadd.f32 %v2674, 1.0
      %v2866 = vadd.f32 %v2676, 1.0
      %v2867 = vadd.f32 %v2678, 1.0
      %v2868 = vadd.f32 %v2680, 1.0
      %v2869 = vadd.f32 %v2682, 1.0
      %v2870 = vadd.f32 %v2684, 1.0
      %v2871 = vadd.f32 %v2686, 1.0
      %v2872 = vadd.f32 %v2688, 1.0
      %v2873 = vadd.f32 %v2690, 1.0
      %v2874 = vadd.f32 %v2692, 1.0
      %v2875 = vadd.f32 %v2694, 1.0
      %v2876 = vadd.f32 %v2696, 1.0
      %v2877 = vadd.f32 %v2698, 1.0
      %v2878 = vadd.f32 %v2700, 1.0
      %v2879 = vadd.f32 %v2702, 1.0
      %v2880 = vadd.f32 %v2704, 1.0
      %v2881 = vadd.f32 %v2706, 1.0
      %v2882 = vadd.f32 %v2708, 1.0
      %v2883 = vadd.f32 %v2710, 1.0
      %v2884 = vadd.f32 %v2712, 1.0
      %v2885 = vadd.f32 %v2714, 1.0
      %v2886 = vadd.f32 %v2716, 1.0
      %v2887 = vadd.f32 %v2718, 1.0
      %v2888 = vadd.f32 %v2720, 1.0
      %v2889 = vadd.f32 %v2722, 1.0
      %v2890 = vadd.f32 %v2724, 1.0
      %v2891 = vadd.f32 %v2726, 1.0
      %v2892 = vadd.f32 %v2728, 1.0
      %v2893 = vadd.f32 %v2730, 1.0
      %v2894 = vadd.f32 %v2732, 1.0
      %v2895 = vadd.f32 %v2734, 1.0
      %v2896 = vadd.f32 %v2736, 1.0
      %v2897 = vadd.f32 %v2738, 1.0
      %v2898 = vadd.f32 %v2740, 1.0
      %v2899 = vadd.f32 %v2742, 1.0
      %v2900 = vadd.f32 %v2744, 1.0
      %v2901 = vadd.f32 %v2746, 1.0
      %v2902 = vadd.f32 %v2748, 1.0
      %v2903 = vadd.f32 %v2750, 1.0
      %v2904 = vadd.f32 %v2752, 1.0
      %v2905 = vadd.f32 %v2754, 1.0
      %v2906 = vadd.f32 %v2756, 1.0
      %v2907 = vadd.f32 %v2758, 1.0
      %v2908 = vadd.f32 %v2760, 1.0
      %v2909 = vadd.f32 %v2762, 1.0
      %v2910 = vadd.f32 %v2764, 1.0
      %v2911 = vadd.f32 %v2766, 1.0
      %v2912 = vadd.f32 %v2768, 1.0
      %v2913 = vadd.f32 %v2770, 1.0
      %v2914 = vadd.f32 %v2772, 1.0
      %v2915 = vadd.f32 %v2774, 1.0
      %v2916 = vadd.f32 %v2776, 1.0
      %v2917 = vadd.f32 %v2778, 1.0
      %v2918 = vadd.f32 %v2780, 1.0
      %v2919 = vadd.f32 %v2782, 1.0
      %v2920 = vadd.f32 %v2784, 1.0
      %v2921 = vadd.f32 %v2786, 1.0
      %v2922 = vadd.f32 %v2788, 1.0
      %v2923 = vadd.f32 %v2790, 1.0
      %v2924 = vadd.f32 %v2792, 1.0
      %v2925 = vadd.f32 %v2794, 1.0
      %v2926 = vadd.f32 %v2796, 1.0
      %v2927 = vadd.f32 %v2798, 1.0
      %v2928 = vadd.f32 %v2800, 1.0
      %v2929 = vadd.f32 %v2802, 1.0
      %v2930 = vadd.f32 %v2804, 1.0
      %v2931 = vadd.f32 %v2806, 1.0
      %v2932 = vadd.f32 %v2808, 1.0
      %v2933 = vadd.f32 %v2810, 1.0
      %v2934 = vadd.f32 %v2812, 1.0
      %v2935 = vadd.f32 %v2814, 1.0
      %v2936 = vadd.f32 %v2816, 1.0
      %v2937 = vadd.f32 %v2818, 1.0
      %v2938 = vadd.f32 %v2820, 1.0
      %v2939 = vadd.f32 %v2822, 1.0
      %v2940 = vadd.f32 %v2824, 1.0
      %v2941 = vadd.f32 %v2826, 1.0
      %v2942 = vadd.f32 %v2828, 1.0
      %v2943 = vadd.f32 %v2830, 1.0
      %v2944 = vadd.f32 %v2832, 1.0
      %v2945 = vadd.f32 %v2834, 1.0
      %v2946 = vadd.f32 %v2836, 1.0
      %v2947 = vadd.f32 %v2838, 1.0
      %v2948 = vadd.f32 %v2840, 1.0
      %v2949 = vadd.f32 %v2842, 1.0
      %v2950 = vadd.f32 %v2844, 1.0
      %v2951 = vadd.f32 %v2846, 1.0
      %v2952 = vadd.f32 %v2848, 1.0
      %v2953 = vlog2.pop %v2849
      %v2954 = vmul.f32 %v2953, 0.6931472
      %v2955 = vlog2.pop %v2850
      %v2956 = vmul.f32 %v2955, 0.6931472
      %v2957 = vlog2.pop %v2851
      %v2958 = vmul.f32 %v2957, 0.6931472
      %v2959 = vlog2.pop %v2852
      %v2960 = vmul.f32 %v2959, 0.6931472
      %v2961 = vlog2.pop %v2853
      %v2962 = vmul.f32 %v2961, 0.6931472
      %v2963 = vlog2.pop %v2854
      %v2964 = vmul.f32 %v2963, 0.6931472
      %v2965 = vlog2.pop %v2855
      %v2966 = vmul.f32 %v2965, 0.6931472
      %v2967 = vlog2.pop %v2856
      %v2968 = vmul.f32 %v2967, 0.6931472
      %v2969 = vlog2.pop %v2857
      %v2970 = vmul.f32 %v2969, 0.6931472
      %v2971 = vlog2.pop %v2858
      %v2972 = vmul.f32 %v2971, 0.6931472
      %v2973 = vlog2.pop %v2859
      %v2974 = vmul.f32 %v2973, 0.6931472
      %v2975 = vlog2.pop %v2860
      %v2976 = vmul.f32 %v2975, 0.6931472
      %v2977 = vlog2.pop %v2861
      %v2978 = vmul.f32 %v2977, 0.6931472
      %v2979 = vlog2.pop %v2862
      %v2980 = vmul.f32 %v2979, 0.6931472
      %v2981 = vlog2.pop %v2863
      %v2982 = vmul.f32 %v2981, 0.6931472
      %v2983 = vlog2.pop %v2864
      %v2984 = vmul.f32 %v2983, 0.6931472
      %v2985 = vlog2.pop %v2865
      %v2986 = vmul.f32 %v2985, 0.6931472
      %v2987 = vlog2.pop %v2866
      %v2988 = vmul.f32 %v2987, 0.6931472
      %v2989 = vlog2.pop %v2867
      %v2990 = vmul.f32 %v2989, 0.6931472
      %v2991 = vlog2.pop %v2868
      %v2992 = vmul.f32 %v2991, 0.6931472
      %v2993 = vlog2.pop %v2869
      %v2994 = vmul.f32 %v2993, 0.6931472
      %v2995 = vlog2.pop %v2870
      %v2996 = vmul.f32 %v2995, 0.6931472
      %v2997 = vlog2.pop %v2871
      %v2998 = vmul.f32 %v2997, 0.6931472
      %v2999 = vlog2.pop %v2872
      %v3000 = vmul.f32 %v2999, 0.6931472
      %v3001 = vlog2.pop %v2873
      %v3002 = vmul.f32 %v3001, 0.6931472
      %v3003 = vlog2.pop %v2874
      %v3004 = vmul.f32 %v3003, 0.6931472
      %v3005 = vlog2.pop %v2875
      %v3006 = vmul.f32 %v3005, 0.6931472
      %v3007 = vlog2.pop %v2876
      %v3008 = vmul.f32 %v3007, 0.6931472
      %v3009 = vlog2.pop %v2877
      %v3010 = vmul.f32 %v3009, 0.6931472
      %v3011 = vlog2.pop %v2878
      %v3012 = vmul.f32 %v3011, 0.6931472
      %v3013 = vlog2.pop %v2879
      %v3014 = vmul.f32 %v3013, 0.6931472
      %v3015 = vlog2.pop %v2880
      %v3016 = vmul.f32 %v3015, 0.6931472
      %v3017 = vlog2.pop %v2881
      %v3018 = vmul.f32 %v3017, 0.6931472
      %v3019 = vlog2.pop %v2882
      %v3020 = vmul.f32 %v3019, 0.6931472
      %v3021 = vlog2.pop %v2883
      %v3022 = vmul.f32 %v3021, 0.6931472
      %v3023 = vlog2.pop %v2884
      %v3024 = vmul.f32 %v3023, 0.6931472
      %v3025 = vlog2.pop %v2885
      %v3026 = vmul.f32 %v3025, 0.6931472
      %v3027 = vlog2.pop %v2886
      %v3028 = vmul.f32 %v3027, 0.6931472
      %v3029 = vlog2.pop %v2887
      %v3030 = vmul.f32 %v3029, 0.6931472
      %v3031 = vlog2.pop %v2888
      %v3032 = vmul.f32 %v3031, 0.6931472
      %v3033 = vlog2.pop %v2889
      %v3034 = vmul.f32 %v3033, 0.6931472
      %v3035 = vlog2.pop %v2890
      %v3036 = vmul.f32 %v3035, 0.6931472
      %v3037 = vlog2.pop %v2891
      %v3038 = vmul.f32 %v3037, 0.6931472
      %v3039 = vlog2.pop %v2892
      %v3040 = vmul.f32 %v3039, 0.6931472
      %v3041 = vlog2.pop %v2893
      %v3042 = vmul.f32 %v3041, 0.6931472
      %v3043 = vlog2.pop %v2894
      %v3044 = vmul.f32 %v3043, 0.6931472
      %v3045 = vlog2.pop %v2895
      %v3046 = vmul.f32 %v3045, 0.6931472
      %v3047 = vlog2.pop %v2896
      %v3048 = vmul.f32 %v3047, 0.6931472
      %v3049 = vlog2.pop %v2897
      %v3050 = vmul.f32 %v3049, 0.6931472
      %v3051 = vlog2.pop %v2898
      %v3052 = vmul.f32 %v3051, 0.6931472
      %v3053 = vlog2.pop %v2899
      %v3054 = vmul.f32 %v3053, 0.6931472
      %v3055 = vlog2.pop %v2900
      %v3056 = vmul.f32 %v3055, 0.6931472
      %v3057 = vlog2.pop %v2901
      %v3058 = vmul.f32 %v3057, 0.6931472
      %v3059 = vlog2.pop %v2902
      %v3060 = vmul.f32 %v3059, 0.6931472
      %v3061 = vlog2.pop %v2903
      %v3062 = vmul.f32 %v3061, 0.6931472
      %v3063 = vlog2.pop %v2904
      %v3064 = vmul.f32 %v3063, 0.6931472
      %v3065 = vlog2.pop %v2905
      %v3066 = vmul.f32 %v3065, 0.6931472
      %v3067 = vlog2.pop %v2906
      %v3068 = vmul.f32 %v3067, 0.6931472
      %v3069 = vlog2.pop %v2907
      %v3070 = vmul.f32 %v3069, 0.6931472
      %v3071 = vlog2.pop %v2908
      %v3072 = vmul.f32 %v3071, 0.6931472
      %v3073 = vlog2.pop %v2909
      %v3074 = vmul.f32 %v3073, 0.6931472
      %v3075 = vlog2.pop %v2910
      %v3076 = vmul.f32 %v3075, 0.6931472
      %v3077 = vlog2.pop %v2911
      %v3078 = vmul.f32 %v3077, 0.6931472
      %v3079 = vlog2.pop %v2912
      %v3080 = vmul.f32 %v3079, 0.6931472
      %v3081 = vlog2.pop %v2913
      %v3082 = vmul.f32 %v3081, 0.6931472
      %v3083 = vlog2.pop %v2914
      %v3084 = vmul.f32 %v3083, 0.6931472
      %v3085 = vlog2.pop %v2915
      %v3086 = vmul.f32 %v3085, 0.6931472
      %v3087 = vlog2.pop %v2916
      %v3088 = vmul.f32 %v3087, 0.6931472
      %v3089 = vlog2.pop %v2917
      %v3090 = vmul.f32 %v3089, 0.6931472
      %v3091 = vlog2.pop %v2918
      %v3092 = vmul.f32 %v3091, 0.6931472
      %v3093 = vlog2.pop %v2919
      %v3094 = vmul.f32 %v3093, 0.6931472
      %v3095 = vlog2.pop %v2920
      %v3096 = vmul.f32 %v3095, 0.6931472
      %v3097 = vlog2.pop %v2921
      %v3098 = vmul.f32 %v3097, 0.6931472
      %v3099 = vlog2.pop %v2922
      %v3100 = vmul.f32 %v3099, 0.6931472
      %v3101 = vlog2.pop %v2923
      %v3102 = vmul.f32 %v3101, 0.6931472
      %v3103 = vlog2.pop %v2924
      %v3104 = vmul.f32 %v3103, 0.6931472
      %v3105 = vlog2.pop %v2925
      %v3106 = vmul.f32 %v3105, 0.6931472
      %v3107 = vlog2.pop %v2926
      %v3108 = vmul.f32 %v3107, 0.6931472
      %v3109 = vlog2.pop %v2927
      %v3110 = vmul.f32 %v3109, 0.6931472
      %v3111 = vlog2.pop %v2928
      %v3112 = vmul.f32 %v3111, 0.6931472
      %v3113 = vlog2.pop %v2929
      %v3114 = vmul.f32 %v3113, 0.6931472
      %v3115 = vlog2.pop %v2930
      %v3116 = vmul.f32 %v3115, 0.6931472
      %v3117 = vlog2.pop %v2931
      %v3118 = vmul.f32 %v3117, 0.6931472
      %v3119 = vlog2.pop %v2932
      %v3120 = vmul.f32 %v3119, 0.6931472
      %v3121 = vlog2.pop %v2933
      %v3122 = vmul.f32 %v3121, 0.6931472
      %v3123 = vlog2.pop %v2934
      %v3124 = vmul.f32 %v3123, 0.6931472
      %v3125 = vlog2.pop %v2935
      %v3126 = vmul.f32 %v3125, 0.6931472
      %v3127 = vlog2.pop %v2936
      %v3128 = vmul.f32 %v3127, 0.6931472
      %v3129 = vlog2.pop %v2937
      %v3130 = vmul.f32 %v3129, 0.6931472
      %v3131 = vlog2.pop %v2938
      %v3132 = vmul.f32 %v3131, 0.6931472
      %v3133 = vlog2.pop %v2939
      %v3134 = vmul.f32 %v3133, 0.6931472
      %v3135 = vlog2.pop %v2940
      %v3136 = vmul.f32 %v3135, 0.6931472
      %v3137 = vlog2.pop %v2941
      %v3138 = vmul.f32 %v3137, 0.6931472
      %v3139 = vlog2.pop %v2942
      %v3140 = vmul.f32 %v3139, 0.6931472
      %v3141 = vlog2.pop %v2943
      %v3142 = vmul.f32 %v3141, 0.6931472
      %v3143 = vlog2.pop %v2944
      %v3144 = vmul.f32 %v3143, 0.6931472
      %v3145 = vlog2.pop %v2945
      %v3146 = vmul.f32 %v3145, 0.6931472
      %v3147 = vlog2.pop %v2946
      %v3148 = vmul.f32 %v3147, 0.6931472
      %v3149 = vlog2.pop %v2947
      %v3150 = vmul.f32 %v3149, 0.6931472
      %v3151 = vlog2.pop %v2948
      %v3152 = vmul.f32 %v3151, 0.6931472
      %v3153 = vlog2.pop %v2949
      %v3154 = vmul.f32 %v3153, 0.6931472
      %v3155 = vlog2.pop %v2950
      %v3156 = vmul.f32 %v3155, 0.6931472
      %v3157 = vlog2.pop %v2951
      %v3158 = vmul.f32 %v3157, 0.6931472
      %v3159 = vlog2.pop %v2952
      %v3160 = vmul.f32 %v3159, 0.6931472
      %v3161 = vsub.f32 %v2329, %v2954
      %v3162 = vsub.f32 %v2330, %v2956
      %v3163 = vsub.f32 %v2331, %v2958
      %v3164 = vsub.f32 %v2332, %v2960
      %v3165 = vsub.f32 %v2333, %v2962
      %v3166 = vsub.f32 %v2334, %v2964
      %v3167 = vsub.f32 %v2335, %v2966
      %v3168 = vsub.f32 %v2336, %v2968
      %v3169 = vsub.f32 %v2337, %v2970
      %v3170 = vsub.f32 %v2338, %v2972
      %v3171 = vsub.f32 %v2339, %v2974
      %v3172 = vsub.f32 %v2340, %v2976
      %v3173 = vsub.f32 %v2341, %v2978
      %v3174 = vsub.f32 %v2342, %v2980
      %v3175 = vsub.f32 %v2343, %v2982
      %v3176 = vsub.f32 %v2344, %v2984
      %v3177 = vsub.f32 %v2345, %v2986
      %v3178 = vsub.f32 %v2346, %v2988
      %v3179 = vsub.f32 %v2347, %v2990
      %v3180 = vsub.f32 %v2348, %v2992
      %v3181 = vsub.f32 %v2349, %v2994
      %v3182 = vsub.f32 %v2350, %v2996
      %v3183 = vsub.f32 %v2351, %v2998
      %v3184 = vsub.f32 %v2352, %v3000
      %v3185 = vsub.f32 %v2353, %v3002
      %v3186 = vsub.f32 %v2354, %v3004
      %v3187 = vsub.f32 %v2355, %v3006
      %v3188 = vsub.f32 %v2356, %v3008
      %v3189 = vsub.f32 %v2357, %v3010
      %v3190 = vsub.f32 %v2358, %v3012
      %v3191 = vsub.f32 %v2359, %v3014
      %v3192 = vsub.f32 %v2360, %v3016
      %v3193 = vsub.f32 %v2361, %v3018
      %v3194 = vsub.f32 %v2362, %v3020
      %v3195 = vsub.f32 %v2363, %v3022
      %v3196 = vsub.f32 %v2364, %v3024
      %v3197 = vsub.f32 %v2365, %v3026
      %v3198 = vsub.f32 %v2366, %v3028
      %v3199 = vsub.f32 %v2367, %v3030
      %v3200 = vsub.f32 %v2368, %v3032
      %v3201 = vsub.f32 %v2369, %v3034
      %v3202 = vsub.f32 %v2370, %v3036
      %v3203 = vsub.f32 %v2371, %v3038
      %v3204 = vsub.f32 %v2372, %v3040
      %v3205 = vsub.f32 %v2373, %v3042
      %v3206 = vsub.f32 %v2374, %v3044
      %v3207 = vsub.f32 %v2375, %v3046
      %v3208 = vsub.f32 %v2376, %v3048
      %v3209 = vsub.f32 %v2377, %v3050
      %v3210 = vsub.f32 %v2378, %v3052
      %v3211 = vsub.f32 %v2379, %v3054
      %v3212 = vsub.f32 %v2380, %v3056
      %v3213 = vsub.f32 %v2381, %v3058
      %v3214 = vsub.f32 %v2382, %v3060
      %v3215 = vsub.f32 %v2383, %v3062
      %v3216 = vsub.f32 %v2384, %v3064
      %v3217 = vsub.f32 %v2385, %v3066
      %v3218 = vsub.f32 %v2386, %v3068
      %v3219 = vsub.f32 %v2387, %v3070
      %v3220 = vsub.f32 %v2388, %v3072
      %v3221 = vsub.f32 %v2389, %v3074
      %v3222 = vsub.f32 %v2390, %v3076
      %v3223 = vsub.f32 %v2391, %v3078
      %v3224 = vsub.f32 %v2392, %v3080
      %v3225 = vsub.f32 %v2393, %v3082
      %v3226 = vsub.f32 %v2394, %v3084
      %v3227 = vsub.f32 %v2395, %v3086
      %v3228 = vsub.f32 %v2396, %v3088
      %v3229 = vsub.f32 %v2397, %v3090
      %v3230 = vsub.f32 %v2398, %v3092
      %v3231 = vsub.f32 %v2399, %v3094
      %v3232 = vsub.f32 %v2400, %v3096
      %v3233 = vsub.f32 %v2401, %v3098
      %v3234 = vsub.f32 %v2402, %v3100
      %v3235 = vsub.f32 %v2403, %v3102
      %v3236 = vsub.f32 %v2404, %v3104
      %v3237 = vsub.f32 %v2405, %v3106
      %v3238 = vsub.f32 %v2406, %v3108
      %v3239 = vsub.f32 %v2407, %v3110
      %v3240 = vsub.f32 %v2408, %v3112
      %v3241 = vsub.f32 %v2409, %v3114
      %v3242 = vsub.f32 %v2410, %v3116
      %v3243 = vsub.f32 %v2411, %v3118
      %v3244 = vsub.f32 %v2412, %v3120
      %v3245 = vsub.f32 %v2413, %v3122
      %v3246 = vsub.f32 %v2414, %v3124
      %v3247 = vsub.f32 %v2415, %v3126
      %v3248 = vsub.f32 %v2416, %v3128
      %v3249 = vsub.f32 %v2417, %v3130
      %v3250 = vsub.f32 %v2418, %v3132
      %v3251 = vsub.f32 %v2419, %v3134
      %v3252 = vsub.f32 %v2420, %v3136
      %v3253 = vsub.f32 %v2421, %v3138
      %v3254 = vsub.f32 %v2422, %v3140
      %v3255 = vsub.f32 %v2423, %v3142
      %v3256 = vsub.f32 %v2424, %v3144
      %v3257 = vsub.f32 %v2425, %v3146
      %v3258 = vsub.f32 %v2426, %v3148
      %v3259 = vsub.f32 %v2427, %v3150
      %v3260 = vsub.f32 %v2428, %v3152
      %v3261 = vsub.f32 %v2429, %v3154
      %v3262 = vsub.f32 %v2430, %v3156
      %v3263 = vsub.f32 %v2431, %v3158
      %v3264 = vsub.f32 %v2432, %v3160
      %v3369 = vlaneseq
      %v3370 = vand.u32 %v3369, 127
      %v3371 = vlaneseq
      %v3372 = vshrl.u32 %v3371, 7
      %v3373 = vsub.s32 %v3370, %v3372
      %v3374 = vrot.slane %v3161, %v3373
      %v3375 = vlaneseq
      %v3376 = vshrl.u32 %v3375, 7
      %v3377 = vsub.s32 %v3370, %v3376
      %v3378 = vrot.slane %v3162, %v3377
      %v3379 = vlaneseq
      %v3380 = vshrl.u32 %v3379, 7
      %v3381 = vsub.s32 %v3370, %v3380
      %v3382 = vrot.slane %v3163, %v3381
      %v3383 = vlaneseq
      %v3384 = vshrl.u32 %v3383, 7
      %v3385 = vsub.s32 %v3370, %v3384
      %v3386 = vrot.slane %v3164, %v3385
      %v3387 = vlaneseq
      %v3388 = vshrl.u32 %v3387, 7
      %v3389 = vsub.s32 %v3370, %v3388
      %v3390 = vrot.slane %v3165, %v3389
      %v3391 = vlaneseq
      %v3392 = vshrl.u32 %v3391, 7
      %v3393 = vsub.s32 %v3370, %v3392
      %v3394 = vrot.slane %v3166, %v3393
      %v3395 = vlaneseq
      %v3396 = vshrl.u32 %v3395, 7
      %v3397 = vsub.s32 %v3370, %v3396
      %v3398 = vrot.slane %v3167, %v3397
      %v3399 = vlaneseq
      %v3400 = vshrl.u32 %v3399, 7
      %v3401 = vsub.s32 %v3370, %v3400
      %v3402 = vrot.slane %v3168, %v3401
      %v3403 = vlaneseq
      %v3404 = vshrl.u32 %v3403, 7
      %v3405 = vsub.s32 %v3370, %v3404
      %v3406 = vrot.slane %v3169, %v3405
      %v3407 = vlaneseq
      %v3408 = vshrl.u32 %v3407, 7
      %v3409 = vsub.s32 %v3370, %v3408
      %v3410 = vrot.slane %v3170, %v3409
      %v3411 = vlaneseq
      %v3412 = vshrl.u32 %v3411, 7
      %v3413 = vsub.s32 %v3370, %v3412
      %v3414 = vrot.slane %v3171, %v3413
      %v3415 = vlaneseq
      %v3416 = vshrl.u32 %v3415, 7
      %v3417 = vsub.s32 %v3370, %v3416
      %v3418 = vrot.slane %v3172, %v3417
      %v3419 = vlaneseq
      %v3420 = vshrl.u32 %v3419, 7
      %v3421 = vsub.s32 %v3370, %v3420
      %v3422 = vrot.slane %v3173, %v3421
      %v3423 = vlaneseq
      %v3424 = vshrl.u32 %v3423, 7
      %v3425 = vsub.s32 %v3370, %v3424
      %v3426 = vrot.slane %v3174, %v3425
      %v3427 = vlaneseq
      %v3428 = vshrl.u32 %v3427, 7
      %v3429 = vsub.s32 %v3370, %v3428
      %v3430 = vrot.slane %v3175, %v3429
      %v3431 = vlaneseq
      %v3432 = vshrl.u32 %v3431, 7
      %v3433 = vsub.s32 %v3370, %v3432
      %v3434 = vrot.slane %v3176, %v3433
      %v3435 = vlaneseq
      %v3436 = vshrl.u32 %v3435, 7
      %v3437 = vsub.s32 %v3370, %v3436
      %v3438 = vrot.slane %v3177, %v3437
      %v3439 = vlaneseq
      %v3440 = vshrl.u32 %v3439, 7
      %v3441 = vsub.s32 %v3370, %v3440
      %v3442 = vrot.slane %v3178, %v3441
      %v3443 = vlaneseq
      %v3444 = vshrl.u32 %v3443, 7
      %v3445 = vsub.s32 %v3370, %v3444
      %v3446 = vrot.slane %v3179, %v3445
      %v3447 = vlaneseq
      %v3448 = vshrl.u32 %v3447, 7
      %v3449 = vsub.s32 %v3370, %v3448
      %v3450 = vrot.slane %v3180, %v3449
      %v3451 = vlaneseq
      %v3452 = vshrl.u32 %v3451, 7
      %v3453 = vsub.s32 %v3370, %v3452
      %v3454 = vrot.slane %v3181, %v3453
      %v3455 = vlaneseq
      %v3456 = vshrl.u32 %v3455, 7
      %v3457 = vsub.s32 %v3370, %v3456
      %v3458 = vrot.slane %v3182, %v3457
      %v3459 = vlaneseq
      %v3460 = vshrl.u32 %v3459, 7
      %v3461 = vsub.s32 %v3370, %v3460
      %v3462 = vrot.slane %v3183, %v3461
      %v3463 = vlaneseq
      %v3464 = vshrl.u32 %v3463, 7
      %v3465 = vsub.s32 %v3370, %v3464
      %v3466 = vrot.slane %v3184, %v3465
      %v3467 = vlaneseq
      %v3468 = vshrl.u32 %v3467, 7
      %v3469 = vsub.s32 %v3370, %v3468
      %v3470 = vrot.slane %v3185, %v3469
      %v3471 = vlaneseq
      %v3472 = vshrl.u32 %v3471, 7
      %v3473 = vsub.s32 %v3370, %v3472
      %v3474 = vrot.slane %v3186, %v3473
      %v3475 = vlaneseq
      %v3476 = vshrl.u32 %v3475, 7
      %v3477 = vsub.s32 %v3370, %v3476
      %v3478 = vrot.slane %v3187, %v3477
      %v3479 = vlaneseq
      %v3480 = vshrl.u32 %v3479, 7
      %v3481 = vsub.s32 %v3370, %v3480
      %v3482 = vrot.slane %v3188, %v3481
      %v3483 = vlaneseq
      %v3484 = vshrl.u32 %v3483, 7
      %v3485 = vsub.s32 %v3370, %v3484
      %v3486 = vrot.slane %v3189, %v3485
      %v3487 = vlaneseq
      %v3488 = vshrl.u32 %v3487, 7
      %v3489 = vsub.s32 %v3370, %v3488
      %v3490 = vrot.slane %v3190, %v3489
      %v3491 = vlaneseq
      %v3492 = vshrl.u32 %v3491, 7
      %v3493 = vsub.s32 %v3370, %v3492
      %v3494 = vrot.slane %v3191, %v3493
      %v3495 = vlaneseq
      %v3496 = vshrl.u32 %v3495, 7
      %v3497 = vsub.s32 %v3370, %v3496
      %v3498 = vrot.slane %v3192, %v3497
      %v3499 = vlaneseq
      %v3500 = vshrl.u32 %v3499, 7
      %v3501 = vsub.s32 %v3370, %v3500
      %v3502 = vrot.slane %v3193, %v3501
      %v3503 = vlaneseq
      %v3504 = vshrl.u32 %v3503, 7
      %v3505 = vsub.s32 %v3370, %v3504
      %v3506 = vrot.slane %v3194, %v3505
      %v3507 = vlaneseq
      %v3508 = vshrl.u32 %v3507, 7
      %v3509 = vsub.s32 %v3370, %v3508
      %v3510 = vrot.slane %v3195, %v3509
      %v3511 = vlaneseq
      %v3512 = vshrl.u32 %v3511, 7
      %v3513 = vsub.s32 %v3370, %v3512
      %v3514 = vrot.slane %v3196, %v3513
      %v3515 = vlaneseq
      %v3516 = vshrl.u32 %v3515, 7
      %v3517 = vsub.s32 %v3370, %v3516
      %v3518 = vrot.slane %v3197, %v3517
      %v3519 = vlaneseq
      %v3520 = vshrl.u32 %v3519, 7
      %v3521 = vsub.s32 %v3370, %v3520
      %v3522 = vrot.slane %v3198, %v3521
      %v3523 = vlaneseq
      %v3524 = vshrl.u32 %v3523, 7
      %v3525 = vsub.s32 %v3370, %v3524
      %v3526 = vrot.slane %v3199, %v3525
      %v3527 = vlaneseq
      %v3528 = vshrl.u32 %v3527, 7
      %v3529 = vsub.s32 %v3370, %v3528
      %v3530 = vrot.slane %v3200, %v3529
      %v3531 = vlaneseq
      %v3532 = vshrl.u32 %v3531, 7
      %v3533 = vsub.s32 %v3370, %v3532
      %v3534 = vrot.slane %v3201, %v3533
      %v3535 = vlaneseq
      %v3536 = vshrl.u32 %v3535, 7
      %v3537 = vsub.s32 %v3370, %v3536
      %v3538 = vrot.slane %v3202, %v3537
      %v3539 = vlaneseq
      %v3540 = vshrl.u32 %v3539, 7
      %v3541 = vsub.s32 %v3370, %v3540
      %v3542 = vrot.slane %v3203, %v3541
      %v3543 = vlaneseq
      %v3544 = vshrl.u32 %v3543, 7
      %v3545 = vsub.s32 %v3370, %v3544
      %v3546 = vrot.slane %v3204, %v3545
      %v3547 = vlaneseq
      %v3548 = vshrl.u32 %v3547, 7
      %v3549 = vsub.s32 %v3370, %v3548
      %v3550 = vrot.slane %v3205, %v3549
      %v3551 = vlaneseq
      %v3552 = vshrl.u32 %v3551, 7
      %v3553 = vsub.s32 %v3370, %v3552
      %v3554 = vrot.slane %v3206, %v3553
      %v3555 = vlaneseq
      %v3556 = vshrl.u32 %v3555, 7
      %v3557 = vsub.s32 %v3370, %v3556
      %v3558 = vrot.slane %v3207, %v3557
      %v3559 = vlaneseq
      %v3560 = vshrl.u32 %v3559, 7
      %v3561 = vsub.s32 %v3370, %v3560
      %v3562 = vrot.slane %v3208, %v3561
      %v3563 = vlaneseq
      %v3564 = vshrl.u32 %v3563, 7
      %v3565 = vsub.s32 %v3370, %v3564
      %v3566 = vrot.slane %v3209, %v3565
      %v3567 = vlaneseq
      %v3568 = vshrl.u32 %v3567, 7
      %v3569 = vsub.s32 %v3370, %v3568
      %v3570 = vrot.slane %v3210, %v3569
      %v3571 = vlaneseq
      %v3572 = vshrl.u32 %v3571, 7
      %v3573 = vsub.s32 %v3370, %v3572
      %v3574 = vrot.slane %v3211, %v3573
      %v3575 = vlaneseq
      %v3576 = vshrl.u32 %v3575, 7
      %v3577 = vsub.s32 %v3370, %v3576
      %v3578 = vrot.slane %v3212, %v3577
      %v3579 = vlaneseq
      %v3580 = vshrl.u32 %v3579, 7
      %v3581 = vsub.s32 %v3370, %v3580
      %v3582 = vrot.slane %v3213, %v3581
      %v3583 = vlaneseq
      %v3584 = vshrl.u32 %v3583, 7
      %v3585 = vsub.s32 %v3370, %v3584
      %v3586 = vrot.slane %v3214, %v3585
      %v3587 = vlaneseq
      %v3588 = vshrl.u32 %v3587, 7
      %v3589 = vsub.s32 %v3370, %v3588
      %v3590 = vrot.slane %v3215, %v3589
      %v3591 = vlaneseq
      %v3592 = vshrl.u32 %v3591, 7
      %v3593 = vsub.s32 %v3370, %v3592
      %v3594 = vrot.slane %v3216, %v3593
      %v3595 = vlaneseq
      %v3596 = vshrl.u32 %v3595, 7
      %v3597 = vsub.s32 %v3370, %v3596
      %v3598 = vrot.slane %v3217, %v3597
      %v3599 = vlaneseq
      %v3600 = vshrl.u32 %v3599, 7
      %v3601 = vsub.s32 %v3370, %v3600
      %v3602 = vrot.slane %v3218, %v3601
      %v3603 = vlaneseq
      %v3604 = vshrl.u32 %v3603, 7
      %v3605 = vsub.s32 %v3370, %v3604
      %v3606 = vrot.slane %v3219, %v3605
      %v3607 = vlaneseq
      %v3608 = vshrl.u32 %v3607, 7
      %v3609 = vsub.s32 %v3370, %v3608
      %v3610 = vrot.slane %v3220, %v3609
      %v3611 = vlaneseq
      %v3612 = vshrl.u32 %v3611, 7
      %v3613 = vsub.s32 %v3370, %v3612
      %v3614 = vrot.slane %v3221, %v3613
      %v3615 = vlaneseq
      %v3616 = vshrl.u32 %v3615, 7
      %v3617 = vsub.s32 %v3370, %v3616
      %v3618 = vrot.slane %v3222, %v3617
      %v3619 = vlaneseq
      %v3620 = vshrl.u32 %v3619, 7
      %v3621 = vsub.s32 %v3370, %v3620
      %v3622 = vrot.slane %v3223, %v3621
      %v3623 = vlaneseq
      %v3624 = vshrl.u32 %v3623, 7
      %v3625 = vsub.s32 %v3370, %v3624
      %v3626 = vrot.slane %v3224, %v3625
      %v3627 = vlaneseq
      %v3628 = vshrl.u32 %v3627, 7
      %v3629 = vsub.s32 %v3370, %v3628
      %v3630 = vrot.slane %v3225, %v3629
      %v3631 = vlaneseq
      %v3632 = vshrl.u32 %v3631, 7
      %v3633 = vsub.s32 %v3370, %v3632
      %v3634 = vrot.slane %v3226, %v3633
      %v3635 = vlaneseq
      %v3636 = vshrl.u32 %v3635, 7
      %v3637 = vsub.s32 %v3370, %v3636
      %v3638 = vrot.slane %v3227, %v3637
      %v3639 = vlaneseq
      %v3640 = vshrl.u32 %v3639, 7
      %v3641 = vsub.s32 %v3370, %v3640
      %v3642 = vrot.slane %v3228, %v3641
      %v3643 = vlaneseq
      %v3644 = vshrl.u32 %v3643, 7
      %v3645 = vsub.s32 %v3370, %v3644
      %v3646 = vrot.slane %v3229, %v3645
      %v3647 = vlaneseq
      %v3648 = vshrl.u32 %v3647, 7
      %v3649 = vsub.s32 %v3370, %v3648
      %v3650 = vrot.slane %v3230, %v3649
      %v3651 = vlaneseq
      %v3652 = vshrl.u32 %v3651, 7
      %v3653 = vsub.s32 %v3370, %v3652
      %v3654 = vrot.slane %v3231, %v3653
      %v3655 = vlaneseq
      %v3656 = vshrl.u32 %v3655, 7
      %v3657 = vsub.s32 %v3370, %v3656
      %v3658 = vrot.slane %v3232, %v3657
      %v3659 = vlaneseq
      %v3660 = vshrl.u32 %v3659, 7
      %v3661 = vsub.s32 %v3370, %v3660
      %v3662 = vrot.slane %v3233, %v3661
      %v3663 = vlaneseq
      %v3664 = vshrl.u32 %v3663, 7
      %v3665 = vsub.s32 %v3370, %v3664
      %v3666 = vrot.slane %v3234, %v3665
      %v3667 = vlaneseq
      %v3668 = vshrl.u32 %v3667, 7
      %v3669 = vsub.s32 %v3370, %v3668
      %v3670 = vrot.slane %v3235, %v3669
      %v3671 = vlaneseq
      %v3672 = vshrl.u32 %v3671, 7
      %v3673 = vsub.s32 %v3370, %v3672
      %v3674 = vrot.slane %v3236, %v3673
      %v3675 = vlaneseq
      %v3676 = vshrl.u32 %v3675, 7
      %v3677 = vsub.s32 %v3370, %v3676
      %v3678 = vrot.slane %v3237, %v3677
      %v3679 = vlaneseq
      %v3680 = vshrl.u32 %v3679, 7
      %v3681 = vsub.s32 %v3370, %v3680
      %v3682 = vrot.slane %v3238, %v3681
      %v3683 = vlaneseq
      %v3684 = vshrl.u32 %v3683, 7
      %v3685 = vsub.s32 %v3370, %v3684
      %v3686 = vrot.slane %v3239, %v3685
      %v3687 = vlaneseq
      %v3688 = vshrl.u32 %v3687, 7
      %v3689 = vsub.s32 %v3370, %v3688
      %v3690 = vrot.slane %v3240, %v3689
      %v3691 = vlaneseq
      %v3692 = vshrl.u32 %v3691, 7
      %v3693 = vsub.s32 %v3370, %v3692
      %v3694 = vrot.slane %v3241, %v3693
      %v3695 = vlaneseq
      %v3696 = vshrl.u32 %v3695, 7
      %v3697 = vsub.s32 %v3370, %v3696
      %v3698 = vrot.slane %v3242, %v3697
      %v3699 = vlaneseq
      %v3700 = vshrl.u32 %v3699, 7
      %v3701 = vsub.s32 %v3370, %v3700
      %v3702 = vrot.slane %v3243, %v3701
      %v3703 = vlaneseq
      %v3704 = vshrl.u32 %v3703, 7
      %v3705 = vsub.s32 %v3370, %v3704
      %v3706 = vrot.slane %v3244, %v3705
      %v3707 = vlaneseq
      %v3708 = vshrl.u32 %v3707, 7
      %v3709 = vsub.s32 %v3370, %v3708
      %v3710 = vrot.slane %v3245, %v3709
      %v3711 = vlaneseq
      %v3712 = vshrl.u32 %v3711, 7
      %v3713 = vsub.s32 %v3370, %v3712
      %v3714 = vrot.slane %v3246, %v3713
      %v3715 = vlaneseq
      %v3716 = vshrl.u32 %v3715, 7
      %v3717 = vsub.s32 %v3370, %v3716
      %v3718 = vrot.slane %v3247, %v3717
      %v3719 = vlaneseq
      %v3720 = vshrl.u32 %v3719, 7
      %v3721 = vsub.s32 %v3370, %v3720
      %v3722 = vrot.slane %v3248, %v3721
      %v3723 = vlaneseq
      %v3724 = vshrl.u32 %v3723, 7
      %v3725 = vsub.s32 %v3370, %v3724
      %v3726 = vrot.slane %v3249, %v3725
      %v3727 = vlaneseq
      %v3728 = vshrl.u32 %v3727, 7
      %v3729 = vsub.s32 %v3370, %v3728
      %v3730 = vrot.slane %v3250, %v3729
      %v3731 = vlaneseq
      %v3732 = vshrl.u32 %v3731, 7
      %v3733 = vsub.s32 %v3370, %v3732
      %v3734 = vrot.slane %v3251, %v3733
      %v3735 = vlaneseq
      %v3736 = vshrl.u32 %v3735, 7
      %v3737 = vsub.s32 %v3370, %v3736
      %v3738 = vrot.slane %v3252, %v3737
      %v3739 = vlaneseq
      %v3740 = vshrl.u32 %v3739, 7
      %v3741 = vsub.s32 %v3370, %v3740
      %v3742 = vrot.slane %v3253, %v3741
      %v3743 = vlaneseq
      %v3744 = vshrl.u32 %v3743, 7
      %v3745 = vsub.s32 %v3370, %v3744
      %v3746 = vrot.slane %v3254, %v3745
      %v3747 = vlaneseq
      %v3748 = vshrl.u32 %v3747, 7
      %v3749 = vsub.s32 %v3370, %v3748
      %v3750 = vrot.slane %v3255, %v3749
      %v3751 = vlaneseq
      %v3752 = vshrl.u32 %v3751, 7
      %v3753 = vsub.s32 %v3370, %v3752
      %v3754 = vrot.slane %v3256, %v3753
      %v3755 = vlaneseq
      %v3756 = vshrl.u32 %v3755, 7
      %v3757 = vsub.s32 %v3370, %v3756
      %v3758 = vrot.slane %v3257, %v3757
      %v3759 = vlaneseq
      %v3760 = vshrl.u32 %v3759, 7
      %v3761 = vsub.s32 %v3370, %v3760
      %v3762 = vrot.slane %v3258, %v3761
      %v3763 = vlaneseq
      %v3764 = vshrl.u32 %v3763, 7
      %v3765 = vsub.s32 %v3370, %v3764
      %v3766 = vrot.slane %v3259, %v3765
      %v3767 = vlaneseq
      %v3768 = vshrl.u32 %v3767, 7
      %v3769 = vsub.s32 %v3370, %v3768
      %v3770 = vrot.slane %v3260, %v3769
      %v3771 = vlaneseq
      %v3772 = vshrl.u32 %v3771, 7
      %v3773 = vsub.s32 %v3370, %v3772
      %v3774 = vrot.slane %v3261, %v3773
      %v3775 = vlaneseq
      %v3776 = vshrl.u32 %v3775, 7
      %v3777 = vsub.s32 %v3370, %v3776
      %v3778 = vrot.slane %v3262, %v3777
      %v3779 = vlaneseq
      %v3780 = vshrl.u32 %v3779, 7
      %v3781 = vsub.s32 %v3370, %v3780
      %v3782 = vrot.slane %v3263, %v3781
      %v3783 = vlaneseq
      %v3784 = vshrl.u32 %v3783, 7
      %v3785 = vsub.s32 %v3370, %v3784
      %v3786 = vrot.slane %v3264, %v3785
      %vm3787 = vcmask 1041409
      %v3788 = vsel %vm3787, %v3378, %v3374
      %vm3789 = vcmask 1042434
      %v3790 = vsel %vm3789, %v3382, %v3788
      %vm3791 = vcmask 1043459
      %v3792 = vsel %vm3791, %v3386, %v3790
      %vm3793 = vcmask 1044484
      %v3794 = vsel %vm3793, %v3390, %v3792
      %vm3795 = vcmask 1045509
      %v3796 = vsel %vm3795, %v3394, %v3794
      %vm3797 = vcmask 1046534
      %v3798 = vsel %vm3797, %v3398, %v3796
      %vm3799 = vcmask 1047559
      %v3800 = vsel %vm3799, %v3402, %v3798
      %v3801 = vsel %vm3787, %v3410, %v3406
      %v3802 = vsel %vm3789, %v3414, %v3801
      %v3803 = vsel %vm3791, %v3418, %v3802
      %v3804 = vsel %vm3793, %v3422, %v3803
      %v3805 = vsel %vm3795, %v3426, %v3804
      %v3806 = vsel %vm3797, %v3430, %v3805
      %v3807 = vsel %vm3799, %v3434, %v3806
      %v3808 = vsel %vm3787, %v3442, %v3438
      %v3809 = vsel %vm3789, %v3446, %v3808
      %v3810 = vsel %vm3791, %v3450, %v3809
      %v3811 = vsel %vm3793, %v3454, %v3810
      %v3812 = vsel %vm3795, %v3458, %v3811
      %v3813 = vsel %vm3797, %v3462, %v3812
      %v3814 = vsel %vm3799, %v3466, %v3813
      %v3815 = vsel %vm3787, %v3474, %v3470
      %v3816 = vsel %vm3789, %v3478, %v3815
      %v3817 = vsel %vm3791, %v3482, %v3816
      %v3818 = vsel %vm3793, %v3486, %v3817
      %v3819 = vsel %vm3795, %v3490, %v3818
      %v3820 = vsel %vm3797, %v3494, %v3819
      %v3821 = vsel %vm3799, %v3498, %v3820
      %v3822 = vsel %vm3787, %v3506, %v3502
      %v3823 = vsel %vm3789, %v3510, %v3822
      %v3824 = vsel %vm3791, %v3514, %v3823
      %v3825 = vsel %vm3793, %v3518, %v3824
      %v3826 = vsel %vm3795, %v3522, %v3825
      %v3827 = vsel %vm3797, %v3526, %v3826
      %v3828 = vsel %vm3799, %v3530, %v3827
      %v3829 = vsel %vm3787, %v3538, %v3534
      %v3830 = vsel %vm3789, %v3542, %v3829
      %v3831 = vsel %vm3791, %v3546, %v3830
      %v3832 = vsel %vm3793, %v3550, %v3831
      %v3833 = vsel %vm3795, %v3554, %v3832
      %v3834 = vsel %vm3797, %v3558, %v3833
      %v3835 = vsel %vm3799, %v3562, %v3834
      %v3836 = vsel %vm3787, %v3570, %v3566
      %v3837 = vsel %vm3789, %v3574, %v3836
      %v3838 = vsel %vm3791, %v3578, %v3837
      %v3839 = vsel %vm3793, %v3582, %v3838
      %v3840 = vsel %vm3795, %v3586, %v3839
      %v3841 = vsel %vm3797, %v3590, %v3840
      %v3842 = vsel %vm3799, %v3594, %v3841
      %v3843 = vsel %vm3787, %v3602, %v3598
      %v3844 = vsel %vm3789, %v3606, %v3843
      %v3845 = vsel %vm3791, %v3610, %v3844
      %v3846 = vsel %vm3793, %v3614, %v3845
      %v3847 = vsel %vm3795, %v3618, %v3846
      %v3848 = vsel %vm3797, %v3622, %v3847
      %v3849 = vsel %vm3799, %v3626, %v3848
      %v3850 = vsel %vm3787, %v3634, %v3630
      %v3851 = vsel %vm3789, %v3638, %v3850
      %v3852 = vsel %vm3791, %v3642, %v3851
      %v3853 = vsel %vm3793, %v3646, %v3852
      %v3854 = vsel %vm3795, %v3650, %v3853
      %v3855 = vsel %vm3797, %v3654, %v3854
      %v3856 = vsel %vm3799, %v3658, %v3855
      %v3857 = vsel %vm3787, %v3666, %v3662
      %v3858 = vsel %vm3789, %v3670, %v3857
      %v3859 = vsel %vm3791, %v3674, %v3858
      %v3860 = vsel %vm3793, %v3678, %v3859
      %v3861 = vsel %vm3795, %v3682, %v3860
      %v3862 = vsel %vm3797, %v3686, %v3861
      %v3863 = vsel %vm3799, %v3690, %v3862
      %v3864 = vsel %vm3787, %v3698, %v3694
      %v3865 = vsel %vm3789, %v3702, %v3864
      %v3866 = vsel %vm3791, %v3706, %v3865
      %v3867 = vsel %vm3793, %v3710, %v3866
      %v3868 = vsel %vm3795, %v3714, %v3867
      %v3869 = vsel %vm3797, %v3718, %v3868
      %v3870 = vsel %vm3799, %v3722, %v3869
      %v3871 = vsel %vm3787, %v3730, %v3726
      %v3872 = vsel %vm3789, %v3734, %v3871
      %v3873 = vsel %vm3791, %v3738, %v3872
      %v3874 = vsel %vm3793, %v3742, %v3873
      %v3875 = vsel %vm3795, %v3746, %v3874
      %v3876 = vsel %vm3797, %v3750, %v3875
      %v3877 = vsel %vm3799, %v3754, %v3876
      %v3878 = vsel %vm3787, %v3762, %v3758
      %v3879 = vsel %vm3789, %v3766, %v3878
      %v3880 = vsel %vm3791, %v3770, %v3879
      %v3881 = vsel %vm3793, %v3774, %v3880
      %v3882 = vsel %vm3795, %v3778, %v3881
      %v3883 = vsel %vm3797, %v3782, %v3882
      %v3884 = vsel %vm3799, %v3786, %v3883
      %vm3898 = vcmask 31744
      %v3899 = vsel %vm3898, %v3800, 0.0
      %3900 = vadd.xlane.f32.xlu0 %v3899
      %v3901 = vpop.xlane.xlu0 %3900
      %v3902 = vsel %vm3898, %v3807, 0.0
      %3903 = vadd.xlane.f32.xlu0 %v3902
      %v3904 = vpop.xlane.xlu0 %3903
      %v3905 = vsel %vm3898, %v3814, 0.0
      %3906 = vadd.xlane.f32.xlu0 %v3905
      %v3907 = vpop.xlane.xlu0 %3906
      %v3908 = vsel %vm3898, %v3821, 0.0
      %3909 = vadd.xlane.f32.xlu0 %v3908
      %v3910 = vpop.xlane.xlu0 %3909
      %v3911 = vsel %vm3898, %v3828, 0.0
      %3912 = vadd.xlane.f32.xlu0 %v3911
      %v3913 = vpop.xlane.xlu0 %3912
      %v3914 = vsel %vm3898, %v3835, 0.0
      %3915 = vadd.xlane.f32.xlu0 %v3914
      %v3916 = vpop.xlane.xlu0 %3915
      %v3917 = vsel %vm3898, %v3842, 0.0
      %3918 = vadd.xlane.f32.xlu0 %v3917
      %v3919 = vpop.xlane.xlu0 %3918
      %v3920 = vsel %vm3898, %v3849, 0.0
      %3921 = vadd.xlane.f32.xlu0 %v3920
      %v3922 = vpop.xlane.xlu0 %3921
      %v3923 = vsel %vm3898, %v3856, 0.0
      %3924 = vadd.xlane.f32.xlu0 %v3923
      %v3925 = vpop.xlane.xlu0 %3924
      %v3926 = vsel %vm3898, %v3863, 0.0
      %3927 = vadd.xlane.f32.xlu0 %v3926
      %v3928 = vpop.xlane.xlu0 %3927
      %v3929 = vsel %vm3898, %v3870, 0.0
      %3930 = vadd.xlane.f32.xlu0 %v3929
      %v3931 = vpop.xlane.xlu0 %3930
      %v3932 = vsel %vm3898, %v3877, 0.0
      %3933 = vadd.xlane.f32.xlu0 %v3932
      %v3934 = vpop.xlane.xlu0 %3933
      %v3935 = vsel %vm3898, %v3884, 0.0
      %3936 = vadd.xlane.f32.xlu0 %v3935
      %v3937 = vpop.xlane.xlu0 %3936
      %v3938 = vmul.f32 %v3901, 0.005
      %v3939 = vmul.f32 %v3904, 0.005
      %v3940 = vmul.f32 %v3907, 0.005
      %v3941 = vmul.f32 %v3910, 0.005
      %v3942 = vmul.f32 %v3913, 0.005
      %v3943 = vmul.f32 %v3916, 0.005
      %v3944 = vmul.f32 %v3919, 0.005
      %v3945 = vmul.f32 %v3922, 0.005
      %v3946 = vmul.f32 %v3925, 0.005
      %v3947 = vmul.f32 %v3928, 0.005
      %v3948 = vmul.f32 %v3931, 0.005
      %v3949 = vmul.f32 %v3934, 0.005
      %v3950 = vmul.f32 %v3937, 0.005
      %v3951 = vadd.f32 %v474, %v3938
      %v3952 = vadd.f32 %v475, %v3939
      %v3953 = vadd.f32 %v476, %v3940
      %v3954 = vadd.f32 %v477, %v3941
      %v3955 = vadd.f32 %v478, %v3942
      %v3956 = vadd.f32 %v479, %v3943
      %v3957 = vadd.f32 %v480, %v3944
      %v3958 = vadd.f32 %v481, %v3945
      %v3959 = vadd.f32 %v482, %v3946
      %v3960 = vadd.f32 %v483, %v3947
      %v3961 = vadd.f32 %v484, %v3948
      %v3962 = vadd.f32 %v485, %v3949
      %v3963 = vadd.f32 %v486, %v3950
      %v3964 = vmul.f32 %v1679, %v3951
      %v3965 = vmul.f32 %v1681, %v3952
      %v3966 = vmul.f32 %v1683, %v3953
      %v3967 = vmul.f32 %v1685, %v3954
      %v3968 = vmul.f32 %v1687, %v3955
      %v3969 = vmul.f32 %v1689, %v3956
      %v3970 = vmul.f32 %v1691, %v3957
      %v3971 = vmul.f32 %v1693, %v3958
      %v3972 = vmul.f32 %v1695, %v3959
      %v3973 = vmul.f32 %v1697, %v3960
      %v3974 = vmul.f32 %v1699, %v3961
      %v3975 = vmul.f32 %v1701, %v3962
      %v3976 = vmul.f32 %v1703, %v3963
      %vm3977 = vcmask 7168
      %3978 = vst.msk [vmem:[%s276] sm:$0xff] %vm3977, %v3964
      %3979 = vst.msk [vmem:[%s276 + $0x8] sm:$0xff] %vm3977, %v3965
      %3980 = vst.msk [vmem:[%s276 + $0x10] sm:$0xff] %vm3977, %v3966
      %3981 = vst.msk [vmem:[%s276 + $0x18] sm:$0xff] %vm3977, %v3967
      %3982 = vst.msk [vmem:[%s276 + $0x20] sm:$0xff] %vm3977, %v3968
      %3983 = vst.msk [vmem:[%s276 + $0x28] sm:$0xff] %vm3977, %v3969
      %3984 = vst.msk [vmem:[%s276 + $0x30] sm:$0xff] %vm3977, %v3970
      %3985 = vst.msk [vmem:[%s276 + $0x38] sm:$0xff] %vm3977, %v3971
      %3986 = vst.msk [vmem:[%s276 + $0x40] sm:$0xff] %vm3977, %v3972
      %3987 = vst.msk [vmem:[%s276 + $0x48] sm:$0xff] %vm3977, %v3973
      %3988 = vst.msk [vmem:[%s276 + $0x50] sm:$0xff] %vm3977, %v3974
      %3989 = vst.msk [vmem:[%s276 + $0x58] sm:$0xff] %vm3977, %v3975
      %3990 = vst.msk [vmem:[%s276 + $0x60] sm:$0xff] %vm3977, %v3976
      %s3991 = smul.u32 13, %s18
      %p3992 = scmp.lt.s32.totalorder %s3991, 25
      %s3993 = scalar_select %p3992, %s3991, 25
      %s3994 = smul.addr %s3993, 8
      %s3995 = scalar_lea.vmem %s6, %s3994
      // Predicated region
      $region45: #{tpu_custom_call.1} parent=43 // pred_check
        %p3996 = pneg %p172
      $region46: #{tpu_custom_call.1} parent=43 // pred_check_branch
        %3998 = sbr.rel (%p3996) target = $region48
      $region47: #{tpu_custom_call.1} parent=43 // pred_region
        %s3999 = smul.u32 13, %s18
      $region48: #{tpu_custom_call.1} parent=43 // pred_fallthru
        _
    $region44: #{tpu_custom_call.1} parent=5 // pred_fallthru
      _
    %p4000 = scmp.le.s32.totalorder 2, %s13
    // Predicated region
    $region49: #{tpu_custom_call.1} parent=5 // pred_check
      %p4001 = pneg %p4000
    $region50: #{tpu_custom_call.1} parent=5 // pred_check_branch
      %4003 = sbr.rel (%p4001) target = $region52
    $region51: #{tpu_custom_call.1} parent=5 // pred_region
      %s4004 = ssub.s32 %s13, 2
      // Predicated region
      $region53: #{tpu_custom_call.1} parent=51 // pred_check
        %p4005 = pneg %p178
      $region54: #{tpu_custom_call.1} parent=51 // pred_check_branch
        %4007 = sbr.rel (%p4005) target = $region56
      $region55: #{tpu_custom_call.1} parent=51 // pred_region
        %s4008 = smul.u32 13, %s19
        %p4009 = scmp.lt.s32.totalorder %s4008, 25
        %s4010 = scalar_select %p4009, %s4008, 25
        %s4011 = smul.addr %s4010, 8
        %s4012 = scalar_lea.vmem %s6, %s4011
      $region56: #{tpu_custom_call.1} parent=51 // pred_fallthru
        _
    $region52: #{tpu_custom_call.1} parent=5 // pred_fallthru
      _
  $region6: #{tpu_custom_call.1} parent=0 // loop_footer
    %s17 = sadd.s32 1, %s13
  $region7: #{tpu_custom_call.1} parent=0 // loop_footer_branch
    %12 = sbr.rel target = $region3
  $region8: #{tpu_custom_call.1} parent=0 // loop_exit
    _

</llo_original>
